<compile_context>
chip_gen: v7x
topology: tpu7x:2x2x1
jax: 0.10.0
libtpu: 0.0.40
codegen_flags: <defaults>
</compile_context>

<pallas_src>
import functools

import jax
import jax.numpy as jnp
from jax import lax
from jax.experimental import pallas as pl
from jax.experimental.pallas import tpu as pltpu


# ----------------------------------------------------------------------------
# Single fused kernel: head conv+BN+LeakyReLU, hoisted Wx gates, ConvLSTM
# recurrence (Wh term only), and tail conv.
# ----------------------------------------------------------------------------
def fused_kernel(x_ref, wc_ref, bc_ref, gamma_ref, beta_ref, maskx_ref,
                 wx_ref, whh_ref, bg_ref, wt_ref, bt_ref, maskh_ref,
                 o_ref,
                 pg_ref, gx_ref, hs_ref, ph_ref, pt_ref, *,
                 T, Cin, N, hid, H1, W1, Wp, S, padd, eps, slope):
    Lv = H1 * Wp                         # flat width-padded length of one feature map
    BS = T * S                           # whole-batch flat length (frames at stride S)
    Ltot = (T - 1) * S + Lv              # whole-batch gate-conv output length
    H2 = H1 - 2 + 2 * padd
    L2v = H2 * Wp
    Ltail = (T - 1) * S + L2v            # whole-sequence tail-conv output length
    OFF = Wp + 1                         # halo interior offset ("same"-pad top row + 1 col)
    offs = [kh * Wp + kw for kh in range(3) for kw in range(3)]

    # ---- Phase 1: head conv + BN(train) + LeakyReLU, whole batch, one matmul ----
    patches = jnp.concatenate([x_ref[:, o:o + BS] for o in offs], axis=0)   # (9*Cin, BS)
    z = jnp.dot(wc_ref[...], patches,
                preferred_element_type=jnp.float32) + bc_ref[...]           # (N, BS)
    mask = maskx_ref[...]                                                   # 1 on valid cols
    inv_cnt = 1.0 / float(T * H1 * W1)
    mean = jnp.sum(z * mask, axis=1, keepdims=True) * inv_cnt
    var = jnp.sum(jnp.square(z - mean) * mask, axis=1, keepdims=True) * inv_cnt
    y = (z - mean) * lax.rsqrt(var + eps) * gamma_ref[...] + beta_ref[...]
    y = jnp.where(y >= 0, y, slope * y)                                     # LeakyReLU(0.2)
    y = y * mask                                                            # zero all pads

    # ---- Phase 2: hoisted input-to-hidden gates for ALL frames, one matmul ----
    # y already carries the "same"-conv zero padding: its OFF leading columns, the
    # per-row pad columns and the inter-frame garbage zones are all masked to zero.
    for k, o in enumerate(offs):
        pg_ref[k * N:(k + 1) * N, :] = y[:, o:o + Ltot]                     # (9*N, Ltot)
    gx_ref[...] = (jnp.dot(wx_ref[...], pg_ref[...],
                           preferred_element_type=jnp.float32) + bg_ref[...])

    # ---- Phase 3: sequential ConvLSTM recurrence (only the Wh term in the loop) ----
    hs_ref[...] = jnp.zeros_like(hs_ref)    # slot s holds halo of h_{s-1}; slot 0 = zeros
    maskh = maskh_ref[...]
    c = jnp.zeros((hid, Lv), jnp.float32)
    for t in range(T):                      # T is small -> fully unrolled, static slices
        base = t * S
        for k, o in enumerate(offs):        # im2col of h_{t-1} halo into aligned scratch
            ph_ref[k * hid:(k + 1) * hid, :] = hs_ref[:, base + o: base + o + Lv]
        gates = gx_ref[:, base:base + Lv] + jnp.dot(
            whh_ref[...], ph_ref[...], preferred_element_type=jnp.float32)  # (4*hid, Lv)
        # i/f/o sigmoids in one shot (contiguous sublane rows); exp + approx recip on EUP
        sig = pl.reciprocal(1.0 + jnp.exp(-gates[0:3 * hid]), approx=True)
        i_g = sig[0:hid]
        f_g = sig[hid:2 * hid]
        o_g = sig[2 * hid:3 * hid]
        g_g = jnp.tanh(gates[3 * hid:4 * hid])
        c = f_g * c + i_g * g_g
        h = o_g * jnp.tanh(c) * maskh       # zero the padding columns
        hs_ref[:, (t + 1) * S + OFF:(t + 1) * S + OFF + Lv] = h             # halo of h_t

    # ---- Phase 4: tail conv over the whole sequence, one matmul + one store ----
    k = 0
    for kh in range(3):
        for kw in range(3):
            toff = (kh + 1 - padd) * Wp + (kw + 1 - padd)
            pt_ref[k * hid:(k + 1) * hid, :] = hs_ref[:, S + toff: S + toff + Ltail]
            k += 1
    o_ref[...] = (jnp.dot(wt_ref[...], pt_ref[...],
                          preferred_element_type=jnp.float32) + bt_ref[...])  # (1, Ltail)


# ----------------------------------------------------------------------------
# JAX wrapper (parameters kept in PyTorch layout; layout plumbing is one-time XLA work)
# ----------------------------------------------------------------------------
def convlstm_discriminator3_forward(params, x, opt):
    """x: (B, nc_im, H, W) float32 NCHW. Returns (B, 1, H2, W2) like the PyTorch module."""
    ker, padd = opt["ker_size"], opt["padd_size"]
    assert ker == 3 and padd in (0, 1), "kernels specialised for ker_size=3, padd_size in {0,1}"
    x = x.astype(jnp.float32)
    B, Cin, H, W = x.shape
    if padd > 0:
        x = jnp.pad(x, ((0, 0), (0, 0), (padd, padd), (padd, padd)))
    Hp, Wp = H + 2 * padd, W + 2 * padd          # padded input dims; Wp is the layout width
    H1, W1 = Hp - 2, Wp - 2                      # head output spatial dims
    Lv = H1 * Wp                                 # flat width-padded spatial length per frame
    S = Hp * Wp + 2                              # per-frame stride in the flat plane
    T = B                                        # lstm sequence length = original batch
    BS = T * S
    OFF = Wp + 1
    N = params["head_w"].shape[0]                # head / lstm input channels (= 8)
    hid = params["lstm_b"].shape[0] // 4         # lstm hidden channels (= 8)
    H2, W2 = H1 - 2 + 2 * padd, W1 - 2 + 2 * padd
    L2v = H2 * Wp
    Ltot = (T - 1) * S + Lv
    Ltail = (T - 1) * S + L2v

    # ---- one-time layout prep (XLA side) ----
    x2 = jnp.pad(x.reshape(B, Cin, Hp * Wp), ((0, 0), (0, 0), (0, 2)))       # (B,Cin,S)
    x3 = jnp.pad(jnp.transpose(x2, (1, 0, 2)).reshape(Cin, BS),
                 ((0, 0), (OFF, OFF)))                                       # (Cin, BS+2*Wp+2)

    w_head = jnp.transpose(params["head_w"], (0, 2, 3, 1)).reshape(N, 9 * Cin)
    b_head = params["head_b"].reshape(N, 1)
    gamma = params["head_gamma"].reshape(N, 1)
    beta = params["head_beta"].reshape(N, 1)
    wx = jnp.transpose(params["lstm_w"][:, :N], (0, 2, 3, 1)).reshape(4 * hid, 9 * N)
    wh = jnp.transpose(params["lstm_w"][:, N:], (0, 2, 3, 1)).reshape(4 * hid, 9 * hid)
    bg = params["lstm_b"].reshape(4 * hid, 1)
    wt = jnp.transpose(params["tail_w"], (0, 2, 3, 1)).reshape(1, 9 * hid)
    bt = params["tail_b"].reshape(1, 1)

    j = jnp.arange(BS, dtype=jnp.int32)
    q = j - OFF
    maskx = ((j >= OFF) & ((q % S) < Lv) & (((q % S) % Wp) < W1)
             ).astype(jnp.float32).reshape(1, BS)
    maskh = ((jnp.arange(Lv, dtype=jnp.int32) % Wp) < W1
             ).astype(jnp.float32).reshape(1, Lv)

    out_flat = pl.pallas_call(
        functools.partial(fused_kernel, T=T, Cin=Cin, N=N, hid=hid,
                          H1=H1, W1=W1, Wp=Wp, S=S, padd=padd, eps=1e-5, slope=0.2),
        out_shape=jax.ShapeDtypeStruct((1, Ltail), jnp.float32),
        scratch_shapes=[
            pltpu.VMEM((9 * N, Ltot), jnp.float32),        # pg: gates im2col (all frames)
            pltpu.VMEM((4 * hid, Ltot), jnp.float32),      # gx: hoisted Wx@x + b gates
            pltpu.VMEM((hid, (T + 1) * S), jnp.float32),   # hs: halos of h_{-1..T-1}
            pltpu.VMEM((9 * hid, Lv), jnp.float32),        # ph: per-step h im2col staging
            pltpu.VMEM((9 * hid, Ltail), jnp.float32),     # pt: tail im2col (all frames)
        ],
    )(x3, w_head, b_head, gamma, beta, maskx, wx, wh, bg, wt, bt, maskh)

    # strip the per-frame padding / garbage columns: (1, Ltail) -> (T, 1, H2, W2)
    out = jnp.pad(out_flat, ((0, 0), (0, T * S - Ltail))).reshape(T, S)[:, :L2v]
    return out.reshape(T, 1, H2, Wp)[:, :, :, :W2]


# ----------------------------------------------------------------------------
# Pure-JAX reference (lax.conv, f32 HIGHEST precision) of the PyTorch forward
# ----------------------------------------------------------------------------
def reference_forward(params, x, opt):
    padd = opt["padd_size"]
    dn = ("NCHW", "OIHW", "NCHW")

    def conv(inp, w, p):
        return lax.conv_general_dilated(inp, w, (1, 1), [(p, p), (p, p)],
                                        dimension_numbers=dn,
                                        precision=lax.Precision.HIGHEST)

    z = conv(x, params["head_w"], padd) + params["head_b"][None, :, None, None]
    mean = jnp.mean(z, axis=(0, 2, 3), keepdims=True)
    var = jnp.mean(jnp.square(z - mean), axis=(0, 2, 3), keepdims=True)
    z = (z - mean) * lax.rsqrt(var + 1e-5)
    z = z * params["head_gamma"][None, :, None, None] + params["head_beta"][None, :, None, None]
    z = jnp.where(z >= 0, z, 0.2 * z)

    T, _, H1, W1 = z.shape
    hid = params["lstm_b"].shape[0] // 4
    h = jnp.zeros((1, hid, H1, W1), jnp.float32)
    c = jnp.zeros((1, hid, H1, W1), jnp.float32)
    outs = []
    for t in range(T):
        comb = jnp.concatenate([z[t:t + 1], h], axis=1)
        g = conv(comb, params["lstm_w"], 1) + params["lstm_b"][None, :, None, None]
        i = jax.nn.sigmoid(g[:, 0 * hid:1 * hid])
        f = jax.nn.sigmoid(g[:, 1 * hid:2 * hid])
        o = jax.nn.sigmoid(g[:, 2 * hid:3 * hid])
        gg = jnp.tanh(g[:, 3 * hid:4 * hid])
        c = f * c + i * gg
        h = o * jnp.tanh(c)
        outs.append(h)
    hs = jnp.concatenate(outs, axis=0)
    return conv(hs, params["tail_w"], padd) + params["tail_b"][None, :, None, None]


def init_params(key, opt):
    nc_im, ker = opt["nc_im"], opt["ker_size"]
    N, hid = 8, 8                                    # fixed by ConvLSTMDiscriminator3
    ks = jax.random.split(key, 8)
    s = 0.1
    return {
        "head_w": s * jax.random.normal(ks[0], (N, nc_im, ker, ker), jnp.float32),
        "head_b": s * jax.random.normal(ks[1], (N,), jnp.float32),
        "head_gamma": 1.0 + 0.1 * jax.random.normal(ks[2], (N,), jnp.float32),
        "head_beta": 0.1 * jax.random.normal(ks[3], (N,), jnp.float32),
        "lstm_w": s * jax.random.normal(ks[4], (4 * hid, N + hid, 3, 3), jnp.float32),
        "lstm_b": s * jax.random.normal(ks[5], (4 * hid,), jnp.float32),
        "tail_w": s * jax.random.normal(ks[6], (1, hid, ker, ker), jnp.float32),
        "tail_b": s * jax.random.normal(ks[7], (1,), jnp.float32),
    }


if __name__ == "__main__":
    opt = dict(nc_im=3, ker_size=3, padd_size=0)     # SinGAN defaults
    key = jax.random.PRNGKey(0)
    kp, kx = jax.random.split(key)
    params = init_params(kp, opt)

    B, C, H, W = 4, opt["nc_im"], 16, 16             # B doubles as the ConvLSTM sequence length
    x = jax.random.normal(kx, (B, C, H, W), jnp.float32)

    fwd = jax.jit(functools.partial(convlstm_discriminator3_forward, opt=opt))
    out = jax.block_until_ready(fwd(params, x))

    expected = (B, 1, H - 4, W - 4)                  # two valid 3x3 convs (head + tail)
    assert out.shape == expected, (out.shape, expected)
    assert bool(jnp.all(jnp.isfinite(out)))

    ref = reference_forward(params, x, opt)
    err = float(jnp.max(jnp.abs(out - ref)))
    scale = float(jnp.max(jnp.abs(ref))) + 1e-6
    assert err / scale < 5e-2, ("mismatch vs reference", err, scale)
    print("KERNEL_OK")
</pallas_src>

<mosaic_0001>
module attributes {stable_mosaic.version = 11 : i64} {
  func.func @fused_kernel(%arg0: memref<3x1066xf32, #tpu.memory_space<vmem>>, %arg1: memref<8x27xf32, #tpu.memory_space<vmem>>, %arg2: memref<8x1xf32, #tpu.memory_space<vmem>>, %arg3: memref<8x1xf32, #tpu.memory_space<vmem>>, %arg4: memref<8x1xf32, #tpu.memory_space<vmem>>, %arg5: memref<1x1032xf32, #tpu.memory_space<vmem>>, %arg6: memref<32x72xf32, #tpu.memory_space<vmem>>, %arg7: memref<32x72xf32, #tpu.memory_space<vmem>>, %arg8: memref<32x1xf32, #tpu.memory_space<vmem>>, %arg9: memref<1x72xf32, #tpu.memory_space<vmem>>, %arg10: memref<1x1xf32, #tpu.memory_space<vmem>>, %arg11: memref<1x224xf32, #tpu.memory_space<vmem>>, %arg12: memref<1x966xf32, #tpu.memory_space<vmem>>, %arg13: memref<72x998xf32, #tpu.memory_space<vmem>>, %arg14: memref<32x998xf32, #tpu.memory_space<vmem>>, %arg15: memref<8x1290xf32, #tpu.memory_space<vmem>>, %arg16: memref<72x224xf32, #tpu.memory_space<vmem>>, %arg17: memref<72x966xf32, #tpu.memory_space<vmem>>) attributes {dimension_semantics = [], scalar_prefetch = 0 : i64, scratch_operands = 5 : i64, tpu.core_type = #tpu.core_type<tc>} {
    %c0 = arith.constant 0 : index
    %c0_0 = arith.constant 0 : index
    %0 = vector.load %arg0[%c0, %c0_0] : memref<3x1066xf32, #tpu.memory_space<vmem>>, vector<3x1032xf32>
    %c0_1 = arith.constant 0 : index
    %c1 = arith.constant 1 : index
    %1 = vector.load %arg0[%c0_1, %c1] : memref<3x1066xf32, #tpu.memory_space<vmem>>, vector<3x1032xf32>
    %c0_2 = arith.constant 0 : index
    %c2 = arith.constant 2 : index
    %2 = vector.load %arg0[%c0_2, %c2] : memref<3x1066xf32, #tpu.memory_space<vmem>>, vector<3x1032xf32>
    %c0_3 = arith.constant 0 : index
    %c16 = arith.constant 16 : index
    %3 = vector.load %arg0[%c0_3, %c16] : memref<3x1066xf32, #tpu.memory_space<vmem>>, vector<3x1032xf32>
    %c0_4 = arith.constant 0 : index
    %c17 = arith.constant 17 : index
    %4 = vector.load %arg0[%c0_4, %c17] : memref<3x1066xf32, #tpu.memory_space<vmem>>, vector<3x1032xf32>
    %c0_5 = arith.constant 0 : index
    %c18 = arith.constant 18 : index
    %5 = vector.load %arg0[%c0_5, %c18] : memref<3x1066xf32, #tpu.memory_space<vmem>>, vector<3x1032xf32>
    %c0_6 = arith.constant 0 : index
    %c32 = arith.constant 32 : index
    %6 = vector.load %arg0[%c0_6, %c32] : memref<3x1066xf32, #tpu.memory_space<vmem>>, vector<3x1032xf32>
    %c0_7 = arith.constant 0 : index
    %c33 = arith.constant 33 : index
    %7 = vector.load %arg0[%c0_7, %c33] : memref<3x1066xf32, #tpu.memory_space<vmem>>, vector<3x1032xf32>
    %c0_8 = arith.constant 0 : index
    %c34 = arith.constant 34 : index
    %8 = vector.load %arg0[%c0_8, %c34] : memref<3x1066xf32, #tpu.memory_space<vmem>>, vector<3x1032xf32>
    %9 = tpu.concatenate %0, %1, %2, %3, %4, %5, %6, %7, %8 in 0 : vector<3x1032xf32>, vector<3x1032xf32>, vector<3x1032xf32>, vector<3x1032xf32>, vector<3x1032xf32>, vector<3x1032xf32>, vector<3x1032xf32>, vector<3x1032xf32>, vector<3x1032xf32> -> vector<27x1032xf32>
    %c0_9 = arith.constant 0 : index
    %c0_10 = arith.constant 0 : index
    %10 = vector.load %arg1[%c0_9, %c0_10] : memref<8x27xf32, #tpu.memory_space<vmem>>, vector<8x27xf32>
    %cst = arith.constant dense<0.000000e+00> : vector<8x1032xf32>
    %11 = tpu.matmul %10, %9, %cst {dimension_numbers = #tpu.dot_dimension_numbers<[1], [0], [0], [1], [0, 0, 1, 1], [], []>} : vector<8x27xf32>, vector<27x1032xf32>, vector<8x1032xf32> -> vector<8x1032xf32>
    %c0_11 = arith.constant 0 : index
    %c0_12 = arith.constant 0 : index
    %12 = vector.load %arg2[%c0_11, %c0_12] : memref<8x1xf32, #tpu.memory_space<vmem>>, vector<8x1xf32>
    %13 = vector.broadcast %12 : vector<8x1xf32> to vector<8x1032xf32>
    %14 = arith.addf %11, %13 : vector<8x1032xf32>
    %c0_13 = arith.constant 0 : index
    %c0_14 = arith.constant 0 : index
    %15 = vector.load %arg5[%c0_13, %c0_14] : memref<1x1032xf32, #tpu.memory_space<vmem>>, vector<1x1032xf32>
    %16 = vector.broadcast %15 : vector<1x1032xf32> to vector<8x1032xf32>
    %17 = arith.mulf %14, %16 : vector<8x1032xf32>
    %cst_15 = arith.constant dense<0.000000e+00> : vector<8xf32>
    %18 = vector.multi_reduction <add>, %17, %cst_15 [1] : vector<8x1032xf32> to vector<8xf32>
    %19 = vector.shape_cast %18 : vector<8xf32> to vector<8x1xf32>
    %cst_16 = arith.constant 0.00127551018 : f32
    %20 = vector.broadcast %cst_16 : f32 to vector<8x1xf32>
    %21 = arith.mulf %19, %20 : vector<8x1xf32>
    %22 = vector.broadcast %21 : vector<8x1xf32> to vector<8x1032xf32>
    %23 = arith.subf %14, %22 : vector<8x1032xf32>
    %24 = arith.mulf %23, %23 : vector<8x1032xf32>
    %25 = vector.broadcast %15 : vector<1x1032xf32> to vector<8x1032xf32>
    %26 = arith.mulf %24, %25 : vector<8x1032xf32>
    %cst_17 = arith.constant dense<0.000000e+00> : vector<8xf32>
    %27 = vector.multi_reduction <add>, %26, %cst_17 [1] : vector<8x1032xf32> to vector<8xf32>
    %28 = vector.shape_cast %27 : vector<8xf32> to vector<8x1xf32>
    %cst_18 = arith.constant 0.00127551018 : f32
    %29 = vector.broadcast %cst_18 : f32 to vector<8x1xf32>
    %30 = arith.mulf %28, %29 : vector<8x1xf32>
    %31 = vector.broadcast %21 : vector<8x1xf32> to vector<8x1032xf32>
    %32 = arith.subf %14, %31 : vector<8x1032xf32>
    %cst_19 = arith.constant 9.99999974E-6 : f32
    %33 = vector.broadcast %cst_19 : f32 to vector<8x1xf32>
    %34 = arith.addf %30, %33 : vector<8x1xf32>
    %35 = math.rsqrt %34 : vector<8x1xf32>
    %36 = vector.broadcast %35 : vector<8x1xf32> to vector<8x1032xf32>
    %37 = arith.mulf %32, %36 : vector<8x1032xf32>
    %c0_20 = arith.constant 0 : index
    %c0_21 = arith.constant 0 : index
    %38 = vector.load %arg3[%c0_20, %c0_21] : memref<8x1xf32, #tpu.memory_space<vmem>>, vector<8x1xf32>
    %39 = vector.broadcast %38 : vector<8x1xf32> to vector<8x1032xf32>
    %40 = arith.mulf %37, %39 : vector<8x1032xf32>
    %c0_22 = arith.constant 0 : index
    %c0_23 = arith.constant 0 : index
    %41 = vector.load %arg4[%c0_22, %c0_23] : memref<8x1xf32, #tpu.memory_space<vmem>>, vector<8x1xf32>
    %42 = vector.broadcast %41 : vector<8x1xf32> to vector<8x1032xf32>
    %43 = arith.addf %40, %42 : vector<8x1032xf32>
    %cst_24 = arith.constant 0.000000e+00 : f32
    %44 = vector.broadcast %cst_24 : f32 to vector<8x1032xf32>
    %45 = arith.cmpf oge, %43, %44 : vector<8x1032xf32>
    %cst_25 = arith.constant 2.000000e-01 : f32
    %46 = vector.broadcast %cst_25 : f32 to vector<8x1032xf32>
    %47 = arith.mulf %46, %43 : vector<8x1032xf32>
    %48 = arith.select %45, %43, %47 : vector<8x1032xi1>, vector<8x1032xf32>
    %49 = vector.broadcast %15 : vector<1x1032xf32> to vector<8x1032xf32>
    %50 = arith.mulf %48, %49 : vector<8x1032xf32>
    %51 = vector.extract_strided_slice %50 {offsets = [0, 0], sizes = [8, 998], strides = [1, 1]} : vector<8x1032xf32> to vector<8x998xf32>
    %c0_26 = arith.constant 0 : index
    %c0_27 = arith.constant 0 : index
    %52 = vector.load %arg13[%c0_26, %c0_27] : memref<72x998xf32, #tpu.memory_space<vmem>>, vector<8x998xf32>
    tpu.vector_store %arg13[%c0_26, %c0_27], %51 {strides = array<i32>} : memref<72x998xf32, #tpu.memory_space<vmem>>, vector<8x998xf32>,
    %53 = vector.extract_strided_slice %50 {offsets = [0, 1], sizes = [8, 998], strides = [1, 1]} : vector<8x1032xf32> to vector<8x998xf32>
    %c8 = arith.constant 8 : index
    %c0_28 = arith.constant 0 : index
    %54 = vector.load %arg13[%c8, %c0_28] : memref<72x998xf32, #tpu.memory_space<vmem>>, vector<8x998xf32>
    tpu.vector_store %arg13[%c8, %c0_28], %53 {strides = array<i32>} : memref<72x998xf32, #tpu.memory_space<vmem>>, vector<8x998xf32>,
    %55 = vector.extract_strided_slice %50 {offsets = [0, 2], sizes = [8, 998], strides = [1, 1]} : vector<8x1032xf32> to vector<8x998xf32>
    %c16_29 = arith.constant 16 : index
    %c0_30 = arith.constant 0 : index
    %56 = vector.load %arg13[%c16_29, %c0_30] : memref<72x998xf32, #tpu.memory_space<vmem>>, vector<8x998xf32>
    tpu.vector_store %arg13[%c16_29, %c0_30], %55 {strides = array<i32>} : memref<72x998xf32, #tpu.memory_space<vmem>>, vector<8x998xf32>,
    %57 = vector.extract_strided_slice %50 {offsets = [0, 16], sizes = [8, 998], strides = [1, 1]} : vector<8x1032xf32> to vector<8x998xf32>
    %c24 = arith.constant 24 : index
    %c0_31 = arith.constant 0 : index
    %58 = vector.load %arg13[%c24, %c0_31] : memref<72x998xf32, #tpu.memory_space<vmem>>, vector<8x998xf32>
    tpu.vector_store %arg13[%c24, %c0_31], %57 {strides = array<i32>} : memref<72x998xf32, #tpu.memory_space<vmem>>, vector<8x998xf32>,
    %59 = vector.extract_strided_slice %50 {offsets = [0, 17], sizes = [8, 998], strides = [1, 1]} : vector<8x1032xf32> to vector<8x998xf32>
    %c32_32 = arith.constant 32 : index
    %c0_33 = arith.constant 0 : index
    %60 = vector.load %arg13[%c32_32, %c0_33] : memref<72x998xf32, #tpu.memory_space<vmem>>, vector<8x998xf32>
    tpu.vector_store %arg13[%c32_32, %c0_33], %59 {strides = array<i32>} : memref<72x998xf32, #tpu.memory_space<vmem>>, vector<8x998xf32>,
    %61 = vector.extract_strided_slice %50 {offsets = [0, 18], sizes = [8, 998], strides = [1, 1]} : vector<8x1032xf32> to vector<8x998xf32>
    %c40 = arith.constant 40 : index
    %c0_34 = arith.constant 0 : index
    %62 = vector.load %arg13[%c40, %c0_34] : memref<72x998xf32, #tpu.memory_space<vmem>>, vector<8x998xf32>
    tpu.vector_store %arg13[%c40, %c0_34], %61 {strides = array<i32>} : memref<72x998xf32, #tpu.memory_space<vmem>>, vector<8x998xf32>,
    %63 = vector.extract_strided_slice %50 {offsets = [0, 32], sizes = [8, 998], strides = [1, 1]} : vector<8x1032xf32> to vector<8x998xf32>
    %c48 = arith.constant 48 : index
    %c0_35 = arith.constant 0 : index
    %64 = vector.load %arg13[%c48, %c0_35] : memref<72x998xf32, #tpu.memory_space<vmem>>, vector<8x998xf32>
    tpu.vector_store %arg13[%c48, %c0_35], %63 {strides = array<i32>} : memref<72x998xf32, #tpu.memory_space<vmem>>, vector<8x998xf32>,
    %65 = vector.extract_strided_slice %50 {offsets = [0, 33], sizes = [8, 998], strides = [1, 1]} : vector<8x1032xf32> to vector<8x998xf32>
    %c56 = arith.constant 56 : index
    %c0_36 = arith.constant 0 : index
    %66 = vector.load %arg13[%c56, %c0_36] : memref<72x998xf32, #tpu.memory_space<vmem>>, vector<8x998xf32>
    tpu.vector_store %arg13[%c56, %c0_36], %65 {strides = array<i32>} : memref<72x998xf32, #tpu.memory_space<vmem>>, vector<8x998xf32>,
    %67 = vector.extract_strided_slice %50 {offsets = [0, 34], sizes = [8, 998], strides = [1, 1]} : vector<8x1032xf32> to vector<8x998xf32>
    %c64 = arith.constant 64 : index
    %c0_37 = arith.constant 0 : index
    %68 = vector.load %arg13[%c64, %c0_37] : memref<72x998xf32, #tpu.memory_space<vmem>>, vector<8x998xf32>
    tpu.vector_store %arg13[%c64, %c0_37], %67 {strides = array<i32>} : memref<72x998xf32, #tpu.memory_space<vmem>>, vector<8x998xf32>,
    %c0_38 = arith.constant 0 : index
    %c0_39 = arith.constant 0 : index
    %69 = vector.load %arg6[%c0_38, %c0_39] : memref<32x72xf32, #tpu.memory_space<vmem>>, vector<32x72xf32>
    %c0_40 = arith.constant 0 : index
    %c0_41 = arith.constant 0 : index
    %70 = vector.load %arg13[%c0_40, %c0_41] : memref<72x998xf32, #tpu.memory_space<vmem>>, vector<72x998xf32>
    %cst_42 = arith.constant dense<0.000000e+00> : vector<32x998xf32>
    %71 = tpu.matmul %69, %70, %cst_42 {dimension_numbers = #tpu.dot_dimension_numbers<[1], [0], [0], [1], [0, 0, 1, 1], [], []>} : vector<32x72xf32>, vector<72x998xf32>, vector<32x998xf32> -> vector<32x998xf32>
    %c0_43 = arith.constant 0 : index
    %c0_44 = arith.constant 0 : index
    %72 = vector.load %arg8[%c0_43, %c0_44] : memref<32x1xf32, #tpu.memory_space<vmem>>, vector<32x1xf32>
    %73 = vector.broadcast %72 : vector<32x1xf32> to vector<32x998xf32>
    %74 = arith.addf %71, %73 : vector<32x998xf32>
    %c0_45 = arith.constant 0 : index
    %c0_46 = arith.constant 0 : index
    %75 = vector.load %arg14[%c0_45, %c0_46] : memref<32x998xf32, #tpu.memory_space<vmem>>, vector<32x998xf32>
    tpu.vector_store %arg14[%c0_45, %c0_46], %74 {strides = array<i32>} : memref<32x998xf32, #tpu.memory_space<vmem>>, vector<32x998xf32>,
    %cst_47 = arith.constant 0.000000e+00 : f32
    %76 = vector.broadcast %cst_47 : f32 to vector<8x1290xf32>
    %c0_48 = arith.constant 0 : index
    %c0_49 = arith.constant 0 : index
    %77 = vector.load %arg15[%c0_48, %c0_49] : memref<8x1290xf32, #tpu.memory_space<vmem>>, vector<8x1290xf32>
    tpu.vector_store %arg15[%c0_48, %c0_49], %76 {strides = array<i32>} : memref<8x1290xf32, #tpu.memory_space<vmem>>, vector<8x1290xf32>,
    %c0_50 = arith.constant 0 : index
    %c0_51 = arith.constant 0 : index
    %78 = vector.load %arg11[%c0_50, %c0_51] : memref<1x224xf32, #tpu.memory_space<vmem>>, vector<1x224xf32>
    %cst_52 = arith.constant 0.000000e+00 : f32
    %79 = vector.broadcast %cst_52 : f32 to vector<8x224xf32>
    %c0_53 = arith.constant 0 : index
    %c0_54 = arith.constant 0 : index
    %80 = vector.load %arg15[%c0_53, %c0_54] : memref<8x1290xf32, #tpu.memory_space<vmem>>, vector<8x224xf32>
    %c0_55 = arith.constant 0 : index
    %c0_56 = arith.constant 0 : index
    %81 = vector.load %arg16[%c0_55, %c0_56] : memref<72x224xf32, #tpu.memory_space<vmem>>, vector<8x224xf32>
    tpu.vector_store %arg16[%c0_55, %c0_56], %80 {strides = array<i32>} : memref<72x224xf32, #tpu.memory_space<vmem>>, vector<8x224xf32>,
    %c0_57 = arith.constant 0 : index
    %c1_58 = arith.constant 1 : index
    %82 = vector.load %arg15[%c0_57, %c1_58] : memref<8x1290xf32, #tpu.memory_space<vmem>>, vector<8x224xf32>
    %c8_59 = arith.constant 8 : index
    %c0_60 = arith.constant 0 : index
    %83 = vector.load %arg16[%c8_59, %c0_60] : memref<72x224xf32, #tpu.memory_space<vmem>>, vector<8x224xf32>
    tpu.vector_store %arg16[%c8_59, %c0_60], %82 {strides = array<i32>} : memref<72x224xf32, #tpu.memory_space<vmem>>, vector<8x224xf32>,
    %c0_61 = arith.constant 0 : index
    %c2_62 = arith.constant 2 : index
    %84 = vector.load %arg15[%c0_61, %c2_62] : memref<8x1290xf32, #tpu.memory_space<vmem>>, vector<8x224xf32>
    %c16_63 = arith.constant 16 : index
    %c0_64 = arith.constant 0 : index
    %85 = vector.load %arg16[%c16_63, %c0_64] : memref<72x224xf32, #tpu.memory_space<vmem>>, vector<8x224xf32>
    tpu.vector_store %arg16[%c16_63, %c0_64], %84 {strides = array<i32>} : memref<72x224xf32, #tpu.memory_space<vmem>>, vector<8x224xf32>,
    %c0_65 = arith.constant 0 : index
    %c16_66 = arith.constant 16 : index
    %86 = vector.load %arg15[%c0_65, %c16_66] : memref<8x1290xf32, #tpu.memory_space<vmem>>, vector<8x224xf32>
    %c24_67 = arith.constant 24 : index
    %c0_68 = arith.constant 0 : index
    %87 = vector.load %arg16[%c24_67, %c0_68] : memref<72x224xf32, #tpu.memory_space<vmem>>, vector<8x224xf32>
    tpu.vector_store %arg16[%c24_67, %c0_68], %86 {strides = array<i32>} : memref<72x224xf32, #tpu.memory_space<vmem>>, vector<8x224xf32>,
    %c0_69 = arith.constant 0 : index
    %c17_70 = arith.constant 17 : index
    %88 = vector.load %arg15[%c0_69, %c17_70] : memref<8x1290xf32, #tpu.memory_space<vmem>>, vector<8x224xf32>
    %c32_71 = arith.constant 32 : index
    %c0_72 = arith.constant 0 : index
    %89 = vector.load %arg16[%c32_71, %c0_72] : memref<72x224xf32, #tpu.memory_space<vmem>>, vector<8x224xf32>
    tpu.vector_store %arg16[%c32_71, %c0_72], %88 {strides = array<i32>} : memref<72x224xf32, #tpu.memory_space<vmem>>, vector<8x224xf32>,
    %c0_73 = arith.constant 0 : index
    %c18_74 = arith.constant 18 : index
    %90 = vector.load %arg15[%c0_73, %c18_74] : memref<8x1290xf32, #tpu.memory_space<vmem>>, vector<8x224xf32>
    %c40_75 = arith.constant 40 : index
    %c0_76 = arith.constant 0 : index
    %91 = vector.load %arg16[%c40_75, %c0_76] : memref<72x224xf32, #tpu.memory_space<vmem>>, vector<8x224xf32>
    tpu.vector_store %arg16[%c40_75, %c0_76], %90 {strides = array<i32>} : memref<72x224xf32, #tpu.memory_space<vmem>>, vector<8x224xf32>,
    %c0_77 = arith.constant 0 : index
    %c32_78 = arith.constant 32 : index
    %92 = vector.load %arg15[%c0_77, %c32_78] : memref<8x1290xf32, #tpu.memory_space<vmem>>, vector<8x224xf32>
    %c48_79 = arith.constant 48 : index
    %c0_80 = arith.constant 0 : index
    %93 = vector.load %arg16[%c48_79, %c0_80] : memref<72x224xf32, #tpu.memory_space<vmem>>, vector<8x224xf32>
    tpu.vector_store %arg16[%c48_79, %c0_80], %92 {strides = array<i32>} : memref<72x224xf32, #tpu.memory_space<vmem>>, vector<8x224xf32>,
    %c0_81 = arith.constant 0 : index
    %c33_82 = arith.constant 33 : index
    %94 = vector.load %arg15[%c0_81, %c33_82] : memref<8x1290xf32, #tpu.memory_space<vmem>>, vector<8x224xf32>
    %c56_83 = arith.constant 56 : index
    %c0_84 = arith.constant 0 : index
    %95 = vector.load %arg16[%c56_83, %c0_84] : memref<72x224xf32, #tpu.memory_space<vmem>>, vector<8x224xf32>
    tpu.vector_store %arg16[%c56_83, %c0_84], %94 {strides = array<i32>} : memref<72x224xf32, #tpu.memory_space<vmem>>, vector<8x224xf32>,
    %c0_85 = arith.constant 0 : index
    %c34_86 = arith.constant 34 : index
    %96 = vector.load %arg15[%c0_85, %c34_86] : memref<8x1290xf32, #tpu.memory_space<vmem>>, vector<8x224xf32>
    %c64_87 = arith.constant 64 : index
    %c0_88 = arith.constant 0 : index
    %97 = vector.load %arg16[%c64_87, %c0_88] : memref<72x224xf32, #tpu.memory_space<vmem>>, vector<8x224xf32>
    tpu.vector_store %arg16[%c64_87, %c0_88], %96 {strides = array<i32>} : memref<72x224xf32, #tpu.memory_space<vmem>>, vector<8x224xf32>,
    %c0_89 = arith.constant 0 : index
    %c0_90 = arith.constant 0 : index
    %98 = vector.load %arg14[%c0_89, %c0_90] : memref<32x998xf32, #tpu.memory_space<vmem>>, vector<32x224xf32>
    %c0_91 = arith.constant 0 : index
    %c0_92 = arith.constant 0 : index
    %99 = vector.load %arg7[%c0_91, %c0_92] : memref<32x72xf32, #tpu.memory_space<vmem>>, vector<32x72xf32>
    %c0_93 = arith.constant 0 : index
    %c0_94 = arith.constant 0 : index
    %100 = vector.load %arg16[%c0_93, %c0_94] : memref<72x224xf32, #tpu.memory_space<vmem>>, vector<72x224xf32>
    %cst_95 = arith.constant dense<0.000000e+00> : vector<32x224xf32>
    %101 = tpu.matmul %99, %100, %cst_95 {dimension_numbers = #tpu.dot_dimension_numbers<[1], [0], [0], [1], [0, 0, 1, 1], [], []>} : vector<32x72xf32>, vector<72x224xf32>, vector<32x224xf32> -> vector<32x224xf32>
    %102 = arith.addf %98, %101 : vector<32x224xf32>
    %103 = vector.extract_strided_slice %102 {offsets = [0, 0], sizes = [24, 224], strides = [1, 1]} : vector<32x224xf32> to vector<24x224xf32>
    %cst_96 = arith.constant 0.000000e+00 : f32
    %104 = vector.broadcast %cst_96 : f32 to vector<24x224xf32>
    %105 = arith.subf %104, %103 : vector<24x224xf32>
    %106 = math.exp %105 : vector<24x224xf32>
    %cst_97 = arith.constant 1.000000e+00 : f32
    %107 = vector.broadcast %cst_97 : f32 to vector<24x224xf32>
    %108 = arith.addf %107, %106 : vector<24x224xf32>
    %109 = tpu.reciprocal %108 {approx = true} : vector<24x224xf32> -> vector<24x224xf32>
    %110 = vector.extract_strided_slice %109 {offsets = [0, 0], sizes = [8, 224], strides = [1, 1]} : vector<24x224xf32> to vector<8x224xf32>
    %111 = vector.extract_strided_slice %109 {offsets = [8, 0], sizes = [8, 224], strides = [1, 1]} : vector<24x224xf32> to vector<8x224xf32>
    %112 = vector.extract_strided_slice %109 {offsets = [16, 0], sizes = [8, 224], strides = [1, 1]} : vector<24x224xf32> to vector<8x224xf32>
    %113 = vector.extract_strided_slice %102 {offsets = [24, 0], sizes = [8, 224], strides = [1, 1]} : vector<32x224xf32> to vector<8x224xf32>
    %114 = math.tanh %113 : vector<8x224xf32>
    %115 = arith.mulf %111, %79 : vector<8x224xf32>
    %116 = arith.mulf %110, %114 : vector<8x224xf32>
    %117 = arith.addf %115, %116 : vector<8x224xf32>
    %118 = math.tanh %117 : vector<8x224xf32>
    %119 = arith.mulf %112, %118 : vector<8x224xf32>
    %120 = vector.broadcast %78 : vector<1x224xf32> to vector<8x224xf32>
    %121 = arith.mulf %119, %120 : vector<8x224xf32>
    %c0_98 = arith.constant 0 : index
    %c275 = arith.constant 275 : index
    %122 = vector.load %arg15[%c0_98, %c275] : memref<8x1290xf32, #tpu.memory_space<vmem>>, vector<8x224xf32>
    tpu.vector_store %arg15[%c0_98, %c275], %121 {strides = array<i32>} : memref<8x1290xf32, #tpu.memory_space<vmem>>, vector<8x224xf32>,
    %c0_99 = arith.constant 0 : index
    %c258 = arith.constant 258 : index
    %123 = vector.load %arg15[%c0_99, %c258] : memref<8x1290xf32, #tpu.memory_space<vmem>>, vector<8x224xf32>
    %c0_100 = arith.constant 0 : index
    %c0_101 = arith.constant 0 : index
    %124 = vector.load %arg16[%c0_100, %c0_101] : memref<72x224xf32, #tpu.memory_space<vmem>>, vector<8x224xf32>
    tpu.vector_store %arg16[%c0_100, %c0_101], %123 {strides = array<i32>} : memref<72x224xf32, #tpu.memory_space<vmem>>, vector<8x224xf32>,
    %c0_102 = arith.constant 0 : index
    %c259 = arith.constant 259 : index
    %125 = vector.load %arg15[%c0_102, %c259] : memref<8x1290xf32, #tpu.memory_space<vmem>>, vector<8x224xf32>
    %c8_103 = arith.constant 8 : index
    %c0_104 = arith.constant 0 : index
    %126 = vector.load %arg16[%c8_103, %c0_104] : memref<72x224xf32, #tpu.memory_space<vmem>>, vector<8x224xf32>
    tpu.vector_store %arg16[%c8_103, %c0_104], %125 {strides = array<i32>} : memref<72x224xf32, #tpu.memory_space<vmem>>, vector<8x224xf32>,
    %c0_105 = arith.constant 0 : index
    %c260 = arith.constant 260 : index
    %127 = vector.load %arg15[%c0_105, %c260] : memref<8x1290xf32, #tpu.memory_space<vmem>>, vector<8x224xf32>
    %c16_106 = arith.constant 16 : index
    %c0_107 = arith.constant 0 : index
    %128 = vector.load %arg16[%c16_106, %c0_107] : memref<72x224xf32, #tpu.memory_space<vmem>>, vector<8x224xf32>
    tpu.vector_store %arg16[%c16_106, %c0_107], %127 {strides = array<i32>} : memref<72x224xf32, #tpu.memory_space<vmem>>, vector<8x224xf32>,
    %c0_108 = arith.constant 0 : index
    %c274 = arith.constant 274 : index
    %129 = vector.load %arg15[%c0_108, %c274] : memref<8x1290xf32, #tpu.memory_space<vmem>>, vector<8x224xf32>
    %c24_109 = arith.constant 24 : index
    %c0_110 = arith.constant 0 : index
    %130 = vector.load %arg16[%c24_109, %c0_110] : memref<72x224xf32, #tpu.memory_space<vmem>>, vector<8x224xf32>
    tpu.vector_store %arg16[%c24_109, %c0_110], %129 {strides = array<i32>} : memref<72x224xf32, #tpu.memory_space<vmem>>, vector<8x224xf32>,
    %c0_111 = arith.constant 0 : index
    %c275_112 = arith.constant 275 : index
    %131 = vector.load %arg15[%c0_111, %c275_112] : memref<8x1290xf32, #tpu.memory_space<vmem>>, vector<8x224xf32>
    %c32_113 = arith.constant 32 : index
    %c0_114 = arith.constant 0 : index
    %132 = vector.load %arg16[%c32_113, %c0_114] : memref<72x224xf32, #tpu.memory_space<vmem>>, vector<8x224xf32>
    tpu.vector_store %arg16[%c32_113, %c0_114], %131 {strides = array<i32>} : memref<72x224xf32, #tpu.memory_space<vmem>>, vector<8x224xf32>,
    %c0_115 = arith.constant 0 : index
    %c276 = arith.constant 276 : index
    %133 = vector.load %arg15[%c0_115, %c276] : memref<8x1290xf32, #tpu.memory_space<vmem>>, vector<8x224xf32>
    %c40_116 = arith.constant 40 : index
    %c0_117 = arith.constant 0 : index
    %134 = vector.load %arg16[%c40_116, %c0_117] : memref<72x224xf32, #tpu.memory_space<vmem>>, vector<8x224xf32>
    tpu.vector_store %arg16[%c40_116, %c0_117], %133 {strides = array<i32>} : memref<72x224xf32, #tpu.memory_space<vmem>>, vector<8x224xf32>,
    %c0_118 = arith.constant 0 : index
    %c290 = arith.constant 290 : index
    %135 = vector.load %arg15[%c0_118, %c290] : memref<8x1290xf32, #tpu.memory_space<vmem>>, vector<8x224xf32>
    %c48_119 = arith.constant 48 : index
    %c0_120 = arith.constant 0 : index
    %136 = vector.load %arg16[%c48_119, %c0_120] : memref<72x224xf32, #tpu.memory_space<vmem>>, vector<8x224xf32>
    tpu.vector_store %arg16[%c48_119, %c0_120], %135 {strides = array<i32>} : memref<72x224xf32, #tpu.memory_space<vmem>>, vector<8x224xf32>,
    %c0_121 = arith.constant 0 : index
    %c291 = arith.constant 291 : index
    %137 = vector.load %arg15[%c0_121, %c291] : memref<8x1290xf32, #tpu.memory_space<vmem>>, vector<8x224xf32>
    %c56_122 = arith.constant 56 : index
    %c0_123 = arith.constant 0 : index
    %138 = vector.load %arg16[%c56_122, %c0_123] : memref<72x224xf32, #tpu.memory_space<vmem>>, vector<8x224xf32>
    tpu.vector_store %arg16[%c56_122, %c0_123], %137 {strides = array<i32>} : memref<72x224xf32, #tpu.memory_space<vmem>>, vector<8x224xf32>,
    %c0_124 = arith.constant 0 : index
    %c292 = arith.constant 292 : index
    %139 = vector.load %arg15[%c0_124, %c292] : memref<8x1290xf32, #tpu.memory_space<vmem>>, vector<8x224xf32>
    %c64_125 = arith.constant 64 : index
    %c0_126 = arith.constant 0 : index
    %140 = vector.load %arg16[%c64_125, %c0_126] : memref<72x224xf32, #tpu.memory_space<vmem>>, vector<8x224xf32>
    tpu.vector_store %arg16[%c64_125, %c0_126], %139 {strides = array<i32>} : memref<72x224xf32, #tpu.memory_space<vmem>>, vector<8x224xf32>,
    %c0_127 = arith.constant 0 : index
    %c258_128 = arith.constant 258 : index
    %141 = vector.load %arg14[%c0_127, %c258_128] : memref<32x998xf32, #tpu.memory_space<vmem>>, vector<32x224xf32>
    %c0_129 = arith.constant 0 : index
    %c0_130 = arith.constant 0 : index
    %142 = vector.load %arg7[%c0_129, %c0_130] : memref<32x72xf32, #tpu.memory_space<vmem>>, vector<32x72xf32>
    %c0_131 = arith.constant 0 : index
    %c0_132 = arith.constant 0 : index
    %143 = vector.load %arg16[%c0_131, %c0_132] : memref<72x224xf32, #tpu.memory_space<vmem>>, vector<72x224xf32>
    %cst_133 = arith.constant dense<0.000000e+00> : vector<32x224xf32>
    %144 = tpu.matmul %142, %143, %cst_133 {dimension_numbers = #tpu.dot_dimension_numbers<[1], [0], [0], [1], [0, 0, 1, 1], [], []>} : vector<32x72xf32>, vector<72x224xf32>, vector<32x224xf32> -> vector<32x224xf32>
    %145 = arith.addf %141, %144 : vector<32x224xf32>
    %146 = vector.extract_strided_slice %145 {offsets = [0, 0], sizes = [24, 224], strides = [1, 1]} : vector<32x224xf32> to vector<24x224xf32>
    %cst_134 = arith.constant 0.000000e+00 : f32
    %147 = vector.broadcast %cst_134 : f32 to vector<24x224xf32>
    %148 = arith.subf %147, %146 : vector<24x224xf32>
    %149 = math.exp %148 : vector<24x224xf32>
    %cst_135 = arith.constant 1.000000e+00 : f32
    %150 = vector.broadcast %cst_135 : f32 to vector<24x224xf32>
    %151 = arith.addf %150, %149 : vector<24x224xf32>
    %152 = tpu.reciprocal %151 {approx = true} : vector<24x224xf32> -> vector<24x224xf32>
    %153 = vector.extract_strided_slice %152 {offsets = [0, 0], sizes = [8, 224], strides = [1, 1]} : vector<24x224xf32> to vector<8x224xf32>
    %154 = vector.extract_strided_slice %152 {offsets = [8, 0], sizes = [8, 224], strides = [1, 1]} : vector<24x224xf32> to vector<8x224xf32>
    %155 = vector.extract_strided_slice %152 {offsets = [16, 0], sizes = [8, 224], strides = [1, 1]} : vector<24x224xf32> to vector<8x224xf32>
    %156 = vector.extract_strided_slice %145 {offsets = [24, 0], sizes = [8, 224], strides = [1, 1]} : vector<32x224xf32> to vector<8x224xf32>
    %157 = math.tanh %156 : vector<8x224xf32>
    %158 = arith.mulf %154, %117 : vector<8x224xf32>
    %159 = arith.mulf %153, %157 : vector<8x224xf32>
    %160 = arith.addf %158, %159 : vector<8x224xf32>
    %161 = math.tanh %160 : vector<8x224xf32>
    %162 = arith.mulf %155, %161 : vector<8x224xf32>
    %163 = vector.broadcast %78 : vector<1x224xf32> to vector<8x224xf32>
    %164 = arith.mulf %162, %163 : vector<8x224xf32>
    %c0_136 = arith.constant 0 : index
    %c533 = arith.constant 533 : index
    %165 = vector.load %arg15[%c0_136, %c533] : memref<8x1290xf32, #tpu.memory_space<vmem>>, vector<8x224xf32>
    tpu.vector_store %arg15[%c0_136, %c533], %164 {strides = array<i32>} : memref<8x1290xf32, #tpu.memory_space<vmem>>, vector<8x224xf32>,
    %c0_137 = arith.constant 0 : index
    %c516 = arith.constant 516 : index
    %166 = vector.load %arg15[%c0_137, %c516] : memref<8x1290xf32, #tpu.memory_space<vmem>>, vector<8x224xf32>
    %c0_138 = arith.constant 0 : index
    %c0_139 = arith.constant 0 : index
    %167 = vector.load %arg16[%c0_138, %c0_139] : memref<72x224xf32, #tpu.memory_space<vmem>>, vector<8x224xf32>
    tpu.vector_store %arg16[%c0_138, %c0_139], %166 {strides = array<i32>} : memref<72x224xf32, #tpu.memory_space<vmem>>, vector<8x224xf32>,
    %c0_140 = arith.constant 0 : index
    %c517 = arith.constant 517 : index
    %168 = vector.load %arg15[%c0_140, %c517] : memref<8x1290xf32, #tpu.memory_space<vmem>>, vector<8x224xf32>
    %c8_141 = arith.constant 8 : index
    %c0_142 = arith.constant 0 : index
    %169 = vector.load %arg16[%c8_141, %c0_142] : memref<72x224xf32, #tpu.memory_space<vmem>>, vector<8x224xf32>
    tpu.vector_store %arg16[%c8_141, %c0_142], %168 {strides = array<i32>} : memref<72x224xf32, #tpu.memory_space<vmem>>, vector<8x224xf32>,
    %c0_143 = arith.constant 0 : index
    %c518 = arith.constant 518 : index
    %170 = vector.load %arg15[%c0_143, %c518] : memref<8x1290xf32, #tpu.memory_space<vmem>>, vector<8x224xf32>
    %c16_144 = arith.constant 16 : index
    %c0_145 = arith.constant 0 : index
    %171 = vector.load %arg16[%c16_144, %c0_145] : memref<72x224xf32, #tpu.memory_space<vmem>>, vector<8x224xf32>
    tpu.vector_store %arg16[%c16_144, %c0_145], %170 {strides = array<i32>} : memref<72x224xf32, #tpu.memory_space<vmem>>, vector<8x224xf32>,
    %c0_146 = arith.constant 0 : index
    %c532 = arith.constant 532 : index
    %172 = vector.load %arg15[%c0_146, %c532] : memref<8x1290xf32, #tpu.memory_space<vmem>>, vector<8x224xf32>
    %c24_147 = arith.constant 24 : index
    %c0_148 = arith.constant 0 : index
    %173 = vector.load %arg16[%c24_147, %c0_148] : memref<72x224xf32, #tpu.memory_space<vmem>>, vector<8x224xf32>
    tpu.vector_store %arg16[%c24_147, %c0_148], %172 {strides = array<i32>} : memref<72x224xf32, #tpu.memory_space<vmem>>, vector<8x224xf32>,
    %c0_149 = arith.constant 0 : index
    %c533_150 = arith.constant 533 : index
    %174 = vector.load %arg15[%c0_149, %c533_150] : memref<8x1290xf32, #tpu.memory_space<vmem>>, vector<8x224xf32>
    %c32_151 = arith.constant 32 : index
    %c0_152 = arith.constant 0 : index
    %175 = vector.load %arg16[%c32_151, %c0_152] : memref<72x224xf32, #tpu.memory_space<vmem>>, vector<8x224xf32>
    tpu.vector_store %arg16[%c32_151, %c0_152], %174 {strides = array<i32>} : memref<72x224xf32, #tpu.memory_space<vmem>>, vector<8x224xf32>,
    %c0_153 = arith.constant 0 : index
    %c534 = arith.constant 534 : index
    %176 = vector.load %arg15[%c0_153, %c534] : memref<8x1290xf32, #tpu.memory_space<vmem>>, vector<8x224xf32>
    %c40_154 = arith.constant 40 : index
    %c0_155 = arith.constant 0 : index
    %177 = vector.load %arg16[%c40_154, %c0_155] : memref<72x224xf32, #tpu.memory_space<vmem>>, vector<8x224xf32>
    tpu.vector_store %arg16[%c40_154, %c0_155], %176 {strides = array<i32>} : memref<72x224xf32, #tpu.memory_space<vmem>>, vector<8x224xf32>,
    %c0_156 = arith.constant 0 : index
    %c548 = arith.constant 548 : index
    %178 = vector.load %arg15[%c0_156, %c548] : memref<8x1290xf32, #tpu.memory_space<vmem>>, vector<8x224xf32>
    %c48_157 = arith.constant 48 : index
    %c0_158 = arith.constant 0 : index
    %179 = vector.load %arg16[%c48_157, %c0_158] : memref<72x224xf32, #tpu.memory_space<vmem>>, vector<8x224xf32>
    tpu.vector_store %arg16[%c48_157, %c0_158], %178 {strides = array<i32>} : memref<72x224xf32, #tpu.memory_space<vmem>>, vector<8x224xf32>,
    %c0_159 = arith.constant 0 : index
    %c549 = arith.constant 549 : index
    %180 = vector.load %arg15[%c0_159, %c549] : memref<8x1290xf32, #tpu.memory_space<vmem>>, vector<8x224xf32>
    %c56_160 = arith.constant 56 : index
    %c0_161 = arith.constant 0 : index
    %181 = vector.load %arg16[%c56_160, %c0_161] : memref<72x224xf32, #tpu.memory_space<vmem>>, vector<8x224xf32>
    tpu.vector_store %arg16[%c56_160, %c0_161], %180 {strides = array<i32>} : memref<72x224xf32, #tpu.memory_space<vmem>>, vector<8x224xf32>,
    %c0_162 = arith.constant 0 : index
    %c550 = arith.constant 550 : index
    %182 = vector.load %arg15[%c0_162, %c550] : memref<8x1290xf32, #tpu.memory_space<vmem>>, vector<8x224xf32>
    %c64_163 = arith.constant 64 : index
    %c0_164 = arith.constant 0 : index
    %183 = vector.load %arg16[%c64_163, %c0_164] : memref<72x224xf32, #tpu.memory_space<vmem>>, vector<8x224xf32>
    tpu.vector_store %arg16[%c64_163, %c0_164], %182 {strides = array<i32>} : memref<72x224xf32, #tpu.memory_space<vmem>>, vector<8x224xf32>,
    %c0_165 = arith.constant 0 : index
    %c516_166 = arith.constant 516 : index
    %184 = vector.load %arg14[%c0_165, %c516_166] : memref<32x998xf32, #tpu.memory_space<vmem>>, vector<32x224xf32>
    %c0_167 = arith.constant 0 : index
    %c0_168 = arith.constant 0 : index
    %185 = vector.load %arg7[%c0_167, %c0_168] : memref<32x72xf32, #tpu.memory_space<vmem>>, vector<32x72xf32>
    %c0_169 = arith.constant 0 : index
    %c0_170 = arith.constant 0 : index
    %186 = vector.load %arg16[%c0_169, %c0_170] : memref<72x224xf32, #tpu.memory_space<vmem>>, vector<72x224xf32>
    %cst_171 = arith.constant dense<0.000000e+00> : vector<32x224xf32>
    %187 = tpu.matmul %185, %186, %cst_171 {dimension_numbers = #tpu.dot_dimension_numbers<[1], [0], [0], [1], [0, 0, 1, 1], [], []>} : vector<32x72xf32>, vector<72x224xf32>, vector<32x224xf32> -> vector<32x224xf32>
    %188 = arith.addf %184, %187 : vector<32x224xf32>
    %189 = vector.extract_strided_slice %188 {offsets = [0, 0], sizes = [24, 224], strides = [1, 1]} : vector<32x224xf32> to vector<24x224xf32>
    %cst_172 = arith.constant 0.000000e+00 : f32
    %190 = vector.broadcast %cst_172 : f32 to vector<24x224xf32>
    %191 = arith.subf %190, %189 : vector<24x224xf32>
    %192 = math.exp %191 : vector<24x224xf32>
    %cst_173 = arith.constant 1.000000e+00 : f32
    %193 = vector.broadcast %cst_173 : f32 to vector<24x224xf32>
    %194 = arith.addf %193, %192 : vector<24x224xf32>
    %195 = tpu.reciprocal %194 {approx = true} : vector<24x224xf32> -> vector<24x224xf32>
    %196 = vector.extract_strided_slice %195 {offsets = [0, 0], sizes = [8, 224], strides = [1, 1]} : vector<24x224xf32> to vector<8x224xf32>
    %197 = vector.extract_strided_slice %195 {offsets = [8, 0], sizes = [8, 224], strides = [1, 1]} : vector<24x224xf32> to vector<8x224xf32>
    %198 = vector.extract_strided_slice %195 {offsets = [16, 0], sizes = [8, 224], strides = [1, 1]} : vector<24x224xf32> to vector<8x224xf32>
    %199 = vector.extract_strided_slice %188 {offsets = [24, 0], sizes = [8, 224], strides = [1, 1]} : vector<32x224xf32> to vector<8x224xf32>
    %200 = math.tanh %199 : vector<8x224xf32>
    %201 = arith.mulf %197, %160 : vector<8x224xf32>
    %202 = arith.mulf %196, %200 : vector<8x224xf32>
    %203 = arith.addf %201, %202 : vector<8x224xf32>
    %204 = math.tanh %203 : vector<8x224xf32>
    %205 = arith.mulf %198, %204 : vector<8x224xf32>
    %206 = vector.broadcast %78 : vector<1x224xf32> to vector<8x224xf32>
    %207 = arith.mulf %205, %206 : vector<8x224xf32>
    %c0_174 = arith.constant 0 : index
    %c791 = arith.constant 791 : index
    %208 = vector.load %arg15[%c0_174, %c791] : memref<8x1290xf32, #tpu.memory_space<vmem>>, vector<8x224xf32>
    tpu.vector_store %arg15[%c0_174, %c791], %207 {strides = array<i32>} : memref<8x1290xf32, #tpu.memory_space<vmem>>, vector<8x224xf32>,
    %c0_175 = arith.constant 0 : index
    %c774 = arith.constant 774 : index
    %209 = vector.load %arg15[%c0_175, %c774] : memref<8x1290xf32, #tpu.memory_space<vmem>>, vector<8x224xf32>
    %c0_176 = arith.constant 0 : index
    %c0_177 = arith.constant 0 : index
    %210 = vector.load %arg16[%c0_176, %c0_177] : memref<72x224xf32, #tpu.memory_space<vmem>>, vector<8x224xf32>
    tpu.vector_store %arg16[%c0_176, %c0_177], %209 {strides = array<i32>} : memref<72x224xf32, #tpu.memory_space<vmem>>, vector<8x224xf32>,
    %c0_178 = arith.constant 0 : index
    %c775 = arith.constant 775 : index
    %211 = vector.load %arg15[%c0_178, %c775] : memref<8x1290xf32, #tpu.memory_space<vmem>>, vector<8x224xf32>
    %c8_179 = arith.constant 8 : index
    %c0_180 = arith.constant 0 : index
    %212 = vector.load %arg16[%c8_179, %c0_180] : memref<72x224xf32, #tpu.memory_space<vmem>>, vector<8x224xf32>
    tpu.vector_store %arg16[%c8_179, %c0_180], %211 {strides = array<i32>} : memref<72x224xf32, #tpu.memory_space<vmem>>, vector<8x224xf32>,
    %c0_181 = arith.constant 0 : index
    %c776 = arith.constant 776 : index
    %213 = vector.load %arg15[%c0_181, %c776] : memref<8x1290xf32, #tpu.memory_space<vmem>>, vector<8x224xf32>
    %c16_182 = arith.constant 16 : index
    %c0_183 = arith.constant 0 : index
    %214 = vector.load %arg16[%c16_182, %c0_183] : memref<72x224xf32, #tpu.memory_space<vmem>>, vector<8x224xf32>
    tpu.vector_store %arg16[%c16_182, %c0_183], %213 {strides = array<i32>} : memref<72x224xf32, #tpu.memory_space<vmem>>, vector<8x224xf32>,
    %c0_184 = arith.constant 0 : index
    %c790 = arith.constant 790 : index
    %215 = vector.load %arg15[%c0_184, %c790] : memref<8x1290xf32, #tpu.memory_space<vmem>>, vector<8x224xf32>
    %c24_185 = arith.constant 24 : index
    %c0_186 = arith.constant 0 : index
    %216 = vector.load %arg16[%c24_185, %c0_186] : memref<72x224xf32, #tpu.memory_space<vmem>>, vector<8x224xf32>
    tpu.vector_store %arg16[%c24_185, %c0_186], %215 {strides = array<i32>} : memref<72x224xf32, #tpu.memory_space<vmem>>, vector<8x224xf32>,
    %c0_187 = arith.constant 0 : index
    %c791_188 = arith.constant 791 : index
    %217 = vector.load %arg15[%c0_187, %c791_188] : memref<8x1290xf32, #tpu.memory_space<vmem>>, vector<8x224xf32>
    %c32_189 = arith.constant 32 : index
    %c0_190 = arith.constant 0 : index
    %218 = vector.load %arg16[%c32_189, %c0_190] : memref<72x224xf32, #tpu.memory_space<vmem>>, vector<8x224xf32>
    tpu.vector_store %arg16[%c32_189, %c0_190], %217 {strides = array<i32>} : memref<72x224xf32, #tpu.memory_space<vmem>>, vector<8x224xf32>,
    %c0_191 = arith.constant 0 : index
    %c792 = arith.constant 792 : index
    %219 = vector.load %arg15[%c0_191, %c792] : memref<8x1290xf32, #tpu.memory_space<vmem>>, vector<8x224xf32>
    %c40_192 = arith.constant 40 : index
    %c0_193 = arith.constant 0 : index
    %220 = vector.load %arg16[%c40_192, %c0_193] : memref<72x224xf32, #tpu.memory_space<vmem>>, vector<8x224xf32>
    tpu.vector_store %arg16[%c40_192, %c0_193], %219 {strides = array<i32>} : memref<72x224xf32, #tpu.memory_space<vmem>>, vector<8x224xf32>,
    %c0_194 = arith.constant 0 : index
    %c806 = arith.constant 806 : index
    %221 = vector.load %arg15[%c0_194, %c806] : memref<8x1290xf32, #tpu.memory_space<vmem>>, vector<8x224xf32>
    %c48_195 = arith.constant 48 : index
    %c0_196 = arith.constant 0 : index
    %222 = vector.load %arg16[%c48_195, %c0_196] : memref<72x224xf32, #tpu.memory_space<vmem>>, vector<8x224xf32>
    tpu.vector_store %arg16[%c48_195, %c0_196], %221 {strides = array<i32>} : memref<72x224xf32, #tpu.memory_space<vmem>>, vector<8x224xf32>,
    %c0_197 = arith.constant 0 : index
    %c807 = arith.constant 807 : index
    %223 = vector.load %arg15[%c0_197, %c807] : memref<8x1290xf32, #tpu.memory_space<vmem>>, vector<8x224xf32>
    %c56_198 = arith.constant 56 : index
    %c0_199 = arith.constant 0 : index
    %224 = vector.load %arg16[%c56_198, %c0_199] : memref<72x224xf32, #tpu.memory_space<vmem>>, vector<8x224xf32>
    tpu.vector_store %arg16[%c56_198, %c0_199], %223 {strides = array<i32>} : memref<72x224xf32, #tpu.memory_space<vmem>>, vector<8x224xf32>,
    %c0_200 = arith.constant 0 : index
    %c808 = arith.constant 808 : index
    %225 = vector.load %arg15[%c0_200, %c808] : memref<8x1290xf32, #tpu.memory_space<vmem>>, vector<8x224xf32>
    %c64_201 = arith.constant 64 : index
    %c0_202 = arith.constant 0 : index
    %226 = vector.load %arg16[%c64_201, %c0_202] : memref<72x224xf32, #tpu.memory_space<vmem>>, vector<8x224xf32>
    tpu.vector_store %arg16[%c64_201, %c0_202], %225 {strides = array<i32>} : memref<72x224xf32, #tpu.memory_space<vmem>>, vector<8x224xf32>,
    %c0_203 = arith.constant 0 : index
    %c774_204 = arith.constant 774 : index
    %227 = vector.load %arg14[%c0_203, %c774_204] : memref<32x998xf32, #tpu.memory_space<vmem>>, vector<32x224xf32>
    %c0_205 = arith.constant 0 : index
    %c0_206 = arith.constant 0 : index
    %228 = vector.load %arg7[%c0_205, %c0_206] : memref<32x72xf32, #tpu.memory_space<vmem>>, vector<32x72xf32>
    %c0_207 = arith.constant 0 : index
    %c0_208 = arith.constant 0 : index
    %229 = vector.load %arg16[%c0_207, %c0_208] : memref<72x224xf32, #tpu.memory_space<vmem>>, vector<72x224xf32>
    %cst_209 = arith.constant dense<0.000000e+00> : vector<32x224xf32>
    %230 = tpu.matmul %228, %229, %cst_209 {dimension_numbers = #tpu.dot_dimension_numbers<[1], [0], [0], [1], [0, 0, 1, 1], [], []>} : vector<32x72xf32>, vector<72x224xf32>, vector<32x224xf32> -> vector<32x224xf32>
    %231 = arith.addf %227, %230 : vector<32x224xf32>
    %232 = vector.extract_strided_slice %231 {offsets = [0, 0], sizes = [24, 224], strides = [1, 1]} : vector<32x224xf32> to vector<24x224xf32>
    %cst_210 = arith.constant 0.000000e+00 : f32
    %233 = vector.broadcast %cst_210 : f32 to vector<24x224xf32>
    %234 = arith.subf %233, %232 : vector<24x224xf32>
    %235 = math.exp %234 : vector<24x224xf32>
    %cst_211 = arith.constant 1.000000e+00 : f32
    %236 = vector.broadcast %cst_211 : f32 to vector<24x224xf32>
    %237 = arith.addf %236, %235 : vector<24x224xf32>
    %238 = tpu.reciprocal %237 {approx = true} : vector<24x224xf32> -> vector<24x224xf32>
    %239 = vector.extract_strided_slice %238 {offsets = [0, 0], sizes = [8, 224], strides = [1, 1]} : vector<24x224xf32> to vector<8x224xf32>
    %240 = vector.extract_strided_slice %238 {offsets = [8, 0], sizes = [8, 224], strides = [1, 1]} : vector<24x224xf32> to vector<8x224xf32>
    %241 = vector.extract_strided_slice %238 {offsets = [16, 0], sizes = [8, 224], strides = [1, 1]} : vector<24x224xf32> to vector<8x224xf32>
    %242 = vector.extract_strided_slice %231 {offsets = [24, 0], sizes = [8, 224], strides = [1, 1]} : vector<32x224xf32> to vector<8x224xf32>
    %243 = math.tanh %242 : vector<8x224xf32>
    %244 = arith.mulf %240, %203 : vector<8x224xf32>
    %245 = arith.mulf %239, %243 : vector<8x224xf32>
    %246 = arith.addf %244, %245 : vector<8x224xf32>
    %247 = math.tanh %246 : vector<8x224xf32>
    %248 = arith.mulf %241, %247 : vector<8x224xf32>
    %249 = vector.broadcast %78 : vector<1x224xf32> to vector<8x224xf32>
    %250 = arith.mulf %248, %249 : vector<8x224xf32>
    %c0_212 = arith.constant 0 : index
    %c1049 = arith.constant 1049 : index
    %251 = vector.load %arg15[%c0_212, %c1049] : memref<8x1290xf32, #tpu.memory_space<vmem>>, vector<8x224xf32>
    tpu.vector_store %arg15[%c0_212, %c1049], %250 {strides = array<i32>} : memref<8x1290xf32, #tpu.memory_space<vmem>>, vector<8x224xf32>,
    %c0_213 = arith.constant 0 : index
    %c275_214 = arith.constant 275 : index
    %252 = vector.load %arg15[%c0_213, %c275_214] : memref<8x1290xf32, #tpu.memory_space<vmem>>, vector<8x966xf32>
    %c0_215 = arith.constant 0 : index
    %c0_216 = arith.constant 0 : index
    %253 = vector.load %arg17[%c0_215, %c0_216] : memref<72x966xf32, #tpu.memory_space<vmem>>, vector<8x966xf32>
    tpu.vector_store %arg17[%c0_215, %c0_216], %252 {strides = array<i32>} : memref<72x966xf32, #tpu.memory_space<vmem>>, vector<8x966xf32>,
    %c0_217 = arith.constant 0 : index
    %c276_218 = arith.constant 276 : index
    %254 = vector.load %arg15[%c0_217, %c276_218] : memref<8x1290xf32, #tpu.memory_space<vmem>>, vector<8x966xf32>
    %c8_219 = arith.constant 8 : index
    %c0_220 = arith.constant 0 : index
    %255 = vector.load %arg17[%c8_219, %c0_220] : memref<72x966xf32, #tpu.memory_space<vmem>>, vector<8x966xf32>
    tpu.vector_store %arg17[%c8_219, %c0_220], %254 {strides = array<i32>} : memref<72x966xf32, #tpu.memory_space<vmem>>, vector<8x966xf32>,
    %c0_221 = arith.constant 0 : index
    %c277 = arith.constant 277 : index
    %256 = vector.load %arg15[%c0_221, %c277] : memref<8x1290xf32, #tpu.memory_space<vmem>>, vector<8x966xf32>
    %c16_222 = arith.constant 16 : index
    %c0_223 = arith.constant 0 : index
    %257 = vector.load %arg17[%c16_222, %c0_223] : memref<72x966xf32, #tpu.memory_space<vmem>>, vector<8x966xf32>
    tpu.vector_store %arg17[%c16_222, %c0_223], %256 {strides = array<i32>} : memref<72x966xf32, #tpu.memory_space<vmem>>, vector<8x966xf32>,
    %c0_224 = arith.constant 0 : index
    %c291_225 = arith.constant 291 : index
    %258 = vector.load %arg15[%c0_224, %c291_225] : memref<8x1290xf32, #tpu.memory_space<vmem>>, vector<8x966xf32>
    %c24_226 = arith.constant 24 : index
    %c0_227 = arith.constant 0 : index
    %259 = vector.load %arg17[%c24_226, %c0_227] : memref<72x966xf32, #tpu.memory_space<vmem>>, vector<8x966xf32>
    tpu.vector_store %arg17[%c24_226, %c0_227], %258 {strides = array<i32>} : memref<72x966xf32, #tpu.memory_space<vmem>>, vector<8x966xf32>,
    %c0_228 = arith.constant 0 : index
    %c292_229 = arith.constant 292 : index
    %260 = vector.load %arg15[%c0_228, %c292_229] : memref<8x1290xf32, #tpu.memory_space<vmem>>, vector<8x966xf32>
    %c32_230 = arith.constant 32 : index
    %c0_231 = arith.constant 0 : index
    %261 = vector.load %arg17[%c32_230, %c0_231] : memref<72x966xf32, #tpu.memory_space<vmem>>, vector<8x966xf32>
    tpu.vector_store %arg17[%c32_230, %c0_231], %260 {strides = array<i32>} : memref<72x966xf32, #tpu.memory_space<vmem>>, vector<8x966xf32>,
    %c0_232 = arith.constant 0 : index
    %c293 = arith.constant 293 : index
    %262 = vector.load %arg15[%c0_232, %c293] : memref<8x1290xf32, #tpu.memory_space<vmem>>, vector<8x966xf32>
    %c40_233 = arith.constant 40 : index
    %c0_234 = arith.constant 0 : index
    %263 = vector.load %arg17[%c40_233, %c0_234] : memref<72x966xf32, #tpu.memory_space<vmem>>, vector<8x966xf32>
    tpu.vector_store %arg17[%c40_233, %c0_234], %262 {strides = array<i32>} : memref<72x966xf32, #tpu.memory_space<vmem>>, vector<8x966xf32>,
    %c0_235 = arith.constant 0 : index
    %c307 = arith.constant 307 : index
    %264 = vector.load %arg15[%c0_235, %c307] : memref<8x1290xf32, #tpu.memory_space<vmem>>, vector<8x966xf32>
    %c48_236 = arith.constant 48 : index
    %c0_237 = arith.constant 0 : index
    %265 = vector.load %arg17[%c48_236, %c0_237] : memref<72x966xf32, #tpu.memory_space<vmem>>, vector<8x966xf32>
    tpu.vector_store %arg17[%c48_236, %c0_237], %264 {strides = array<i32>} : memref<72x966xf32, #tpu.memory_space<vmem>>, vector<8x966xf32>,
    %c0_238 = arith.constant 0 : index
    %c308 = arith.constant 308 : index
    %266 = vector.load %arg15[%c0_238, %c308] : memref<8x1290xf32, #tpu.memory_space<vmem>>, vector<8x966xf32>
    %c56_239 = arith.constant 56 : index
    %c0_240 = arith.constant 0 : index
    %267 = vector.load %arg17[%c56_239, %c0_240] : memref<72x966xf32, #tpu.memory_space<vmem>>, vector<8x966xf32>
    tpu.vector_store %arg17[%c56_239, %c0_240], %266 {strides = array<i32>} : memref<72x966xf32, #tpu.memory_space<vmem>>, vector<8x966xf32>,
    %c0_241 = arith.constant 0 : index
    %c309 = arith.constant 309 : index
    %268 = vector.load %arg15[%c0_241, %c309] : memref<8x1290xf32, #tpu.memory_space<vmem>>, vector<8x966xf32>
    %c64_242 = arith.constant 64 : index
    %c0_243 = arith.constant 0 : index
    %269 = vector.load %arg17[%c64_242, %c0_243] : memref<72x966xf32, #tpu.memory_space<vmem>>, vector<8x966xf32>
    tpu.vector_store %arg17[%c64_242, %c0_243], %268 {strides = array<i32>} : memref<72x966xf32, #tpu.memory_space<vmem>>, vector<8x966xf32>,
    %c0_244 = arith.constant 0 : index
    %c0_245 = arith.constant 0 : index
    %270 = vector.load %arg9[%c0_244, %c0_245] : memref<1x72xf32, #tpu.memory_space<vmem>>, vector<1x72xf32>
    %c0_246 = arith.constant 0 : index
    %c0_247 = arith.constant 0 : index
    %271 = vector.load %arg17[%c0_246, %c0_247] : memref<72x966xf32, #tpu.memory_space<vmem>>, vector<72x966xf32>
    %cst_248 = arith.constant dense<0.000000e+00> : vector<1x966xf32>
    %272 = tpu.matmul %270, %271, %cst_248 {dimension_numbers = #tpu.dot_dimension_numbers<[1], [0], [0], [1], [0, 0, 1, 1], [], []>} : vector<1x72xf32>, vector<72x966xf32>, vector<1x966xf32> -> vector<1x966xf32>
    %c0_249 = arith.constant 0 : index
    %c0_250 = arith.constant 0 : index
    %273 = vector.load %arg10[%c0_249, %c0_250] : memref<1x1xf32, #tpu.memory_space<vmem>>, vector<1x1xf32>
    %274 = vector.broadcast %273 : vector<1x1xf32> to vector<1x966xf32>
    %275 = arith.addf %272, %274 : vector<1x966xf32>
    %c0_251 = arith.constant 0 : index
    %c0_252 = arith.constant 0 : index
    %276 = vector.load %arg12[%c0_251, %c0_252] : memref<1x966xf32, #tpu.memory_space<vmem>>, vector<1x966xf32>
    tpu.vector_store %arg12[%c0_251, %c0_252], %275 {strides = array<i32>} : memref<1x966xf32, #tpu.memory_space<vmem>>, vector<1x966xf32>,
    return
  }
}

</mosaic_0001>

<llo_original>
// kernel: convlstm_discriminator3_forward.1
$region0: #{convlstm_discriminator3_forward.1}
  #allocation0 [shape = 'u32[]', space=smem, size = 0x4, offset = 0x4, fixed_abs, tag = 'smem constant byte address 0x4 - core index']
  #allocation1 [shape = 'u32[144,128]{1,0:T(1,128)}', space=vmem, size = 0x12000, scoped, tag = 'internal scratch']
  #allocation2 [shape = 'f32[72,998]{1,0:T(8,128)}', space=vmem, size = 0x48000, scoped, tag = 'scratch operand']
  #allocation3 [shape = 'f32[32,998]{1,0:T(8,128)}', space=vmem, size = 0x20000, scoped, tag = 'scratch operand']
  #allocation4 [shape = 'f32[8,1290]{1,0:T(8,128)}', space=vmem, size = 0xb000, scoped, tag = 'scratch operand']
  #allocation5 [shape = 'f32[72,224]{1,0:T(8,128)}', space=vmem, size = 0x12000, scoped, tag = 'scratch operand']
  #allocation6 [shape = 'f32[72,966]{1,0:T(8,128)}', space=vmem, size = 0x48000, scoped, tag = 'scratch operand']
  #allocation7 [shape = 'f32[1,1]{1,0:T(1,128)S(1)}', space=vmem, size = 0x200, scoped, tag = 'scoped memory for convlstm_discriminator3_forward.1']
  %s0 = inlined_call_operand.vmem [shape: f32[3,1066], index: 0, kind: input, shape index: {}]
  %s1 = inlined_call_operand.vmem [shape: f32[8,27], index: 1, kind: input, shape index: {}]
  %s2 = inlined_call_operand.vmem [shape: f32[8,1], index: 2, kind: input, shape index: {}]
  %s3 = inlined_call_operand.vmem [shape: f32[8,1], index: 3, kind: input, shape index: {}]
  %s4 = inlined_call_operand.vmem [shape: f32[8,1], index: 4, kind: input, shape index: {}]
  %s5 = inlined_call_operand.vmem [shape: f32[1,1032], index: 5, kind: input, shape index: {}]
  %s6 = inlined_call_operand.vmem [shape: f32[32,72], index: 6, kind: input, shape index: {}]
  %s7 = inlined_call_operand.vmem [shape: f32[32,72], index: 7, kind: input, shape index: {}]
  %s8 = inlined_call_operand.vmem [shape: f32[32,1], index: 8, kind: input, shape index: {}]
  %s9 = inlined_call_operand.vmem [shape: f32[1,72], index: 9, kind: input, shape index: {}]
  %s10 = inlined_call_operand.<no memory space> [shape: f32[1,1], index: 10, kind: input, shape index: {}]
  %s11 = inlined_call_operand.vmem [shape: f32[1,224], index: 11, kind: input, shape index: {}]
  %s12 = inlined_call_operand.vmem [shape: f32[1,966], index: 12, kind: output, shape index: {}]
  %s13 = sld [smem:[#allocation0]]
  $region58: #{convlstm_discriminator3_forward.1} parent=0
    _
  %s15 = ssub.s32 1, %s13
  %s16 = scalar_select 0, %s15, %s13
  %v17 = vstv %s10
  %18 = vst [vmem:[#allocation7] sm:$0x1] %v17
  // Predicated region
  $region2: #{convlstm_discriminator3_forward.1} parent=0 // pred_check
    _
  $region3: #{convlstm_discriminator3_forward.1} parent=0 // pred_check_branch
    %20 = sbr.rel (0) target = $region5
  $region4: #{convlstm_discriminator3_forward.1} parent=0 // pred_region
    _
  $region5: #{convlstm_discriminator3_forward.1} parent=0 // pred_fallthru
    _
  // Predicated region
  $region6: #{convlstm_discriminator3_forward.1} parent=0 // pred_check
    _
  $region7: #{convlstm_discriminator3_forward.1} parent=0 // pred_check_branch
    %22 = sbr.rel (0) target = $region9
  $region8: #{convlstm_discriminator3_forward.1} parent=0 // pred_region
    _
  $region9: #{convlstm_discriminator3_forward.1} parent=0 // pred_fallthru
    _
  // Predicated region
  $region10: #{convlstm_discriminator3_forward.1} parent=0 // pred_check
    _
  $region11: #{convlstm_discriminator3_forward.1} parent=0 // pred_check_branch
    %24 = sbr.rel (0) target = $region13
  $region12: #{convlstm_discriminator3_forward.1} parent=0 // pred_region
    _
  $region13: #{convlstm_discriminator3_forward.1} parent=0 // pred_fallthru
    _
  // Predicated region
  $region14: #{convlstm_discriminator3_forward.1} parent=0 // pred_check
    _
  $region15: #{convlstm_discriminator3_forward.1} parent=0 // pred_check_branch
    %26 = sbr.rel (0) target = $region17
  $region16: #{convlstm_discriminator3_forward.1} parent=0 // pred_region
    _
  $region17: #{convlstm_discriminator3_forward.1} parent=0 // pred_fallthru
    _
  // Predicated region
  $region18: #{convlstm_discriminator3_forward.1} parent=0 // pred_check
    _
  $region19: #{convlstm_discriminator3_forward.1} parent=0 // pred_check_branch
    %28 = sbr.rel (0) target = $region21
  $region20: #{convlstm_discriminator3_forward.1} parent=0 // pred_region
    _
  $region21: #{convlstm_discriminator3_forward.1} parent=0 // pred_fallthru
    _
  // Predicated region
  $region22: #{convlstm_discriminator3_forward.1} parent=0 // pred_check
    _
  $region23: #{convlstm_discriminator3_forward.1} parent=0 // pred_check_branch
    %30 = sbr.rel (0) target = $region25
  $region24: #{convlstm_discriminator3_forward.1} parent=0 // pred_region
    _
  $region25: #{convlstm_discriminator3_forward.1} parent=0 // pred_fallthru
    _
  // Predicated region
  $region26: #{convlstm_discriminator3_forward.1} parent=0 // pred_check
    _
  $region27: #{convlstm_discriminator3_forward.1} parent=0 // pred_check_branch
    %32 = sbr.rel (0) target = $region29
  $region28: #{convlstm_discriminator3_forward.1} parent=0 // pred_region
    _
  $region29: #{convlstm_discriminator3_forward.1} parent=0 // pred_fallthru
    _
  // Predicated region
  $region30: #{convlstm_discriminator3_forward.1} parent=0 // pred_check
    _
  $region31: #{convlstm_discriminator3_forward.1} parent=0 // pred_check_branch
    %34 = sbr.rel (0) target = $region33
  $region32: #{convlstm_discriminator3_forward.1} parent=0 // pred_region
    _
  $region33: #{convlstm_discriminator3_forward.1} parent=0 // pred_fallthru
    _
  // Predicated region
  $region34: #{convlstm_discriminator3_forward.1} parent=0 // pred_check
    _
  $region35: #{convlstm_discriminator3_forward.1} parent=0 // pred_check_branch
    %36 = sbr.rel (0) target = $region37
  $region36: #{convlstm_discriminator3_forward.1} parent=0 // pred_region
    _
  $region37: #{convlstm_discriminator3_forward.1} parent=0 // pred_fallthru
    _
  // Predicated region
  $region38: #{convlstm_discriminator3_forward.1} parent=0 // pred_check
    _
  $region39: #{convlstm_discriminator3_forward.1} parent=0 // pred_check_branch
    %38 = sbr.rel (0) target = $region41
  $region40: #{convlstm_discriminator3_forward.1} parent=0 // pred_region
    _
  $region41: #{convlstm_discriminator3_forward.1} parent=0 // pred_fallthru
    _
  // Predicated region
  $region42: #{convlstm_discriminator3_forward.1} parent=0 // pred_check
    _
  $region43: #{convlstm_discriminator3_forward.1} parent=0 // pred_check_branch
    %40 = sbr.rel (0) target = $region45
  $region44: #{convlstm_discriminator3_forward.1} parent=0 // pred_region
    _
  $region45: #{convlstm_discriminator3_forward.1} parent=0 // pred_fallthru
    _
  // Predicated region
  $region46: #{convlstm_discriminator3_forward.1} parent=0 // pred_check
    _
  $region47: #{convlstm_discriminator3_forward.1} parent=0 // pred_check_branch
    %42 = sbr.rel (0) target = $region49
  $region48: #{convlstm_discriminator3_forward.1} parent=0 // pred_region
    _
  $region49: #{convlstm_discriminator3_forward.1} parent=0 // pred_fallthru
    _
  %v43 = vld [vmem:[%s0] sm:$0x77]
  %v44 = vld [vmem:[%s0 + $0x8] sm:$0x77]
  %v45 = vld [vmem:[%s0 + $0x10] sm:$0x77]
  %v46 = vld [vmem:[%s0 + $0x18] sm:$0x77]
  %v47 = vld [vmem:[%s0 + $0x20] sm:$0x7]
  %v53 = vcombine.high %v43, %v43
  %v54 = vcombine.high %v44, %v44
  %v55 = vcombine.high %v45, %v45
  %v56 = vcombine.high %v46, %v46
  %v61 = vrot.slane %v43, 5
  %v62 = vrot.slane %v53, 5
  %v63 = vrot.slane %v44, 5
  %v64 = vrot.slane %v54, 5
  %v65 = vrot.slane %v45, 5
  %v66 = vrot.slane %v55, 5
  %v67 = vrot.slane %v46, 5
  %v68 = vrot.slane %v56, 5
  %v69 = vrot.slane %v47, 5
  %70 = vrot.lane.b32.xlu0 %v61, 127
  %v71 = vpop.permute.xlu0 %70
  %72 = vrot.lane.b32.xlu0 %v62, 127
  %v73 = vpop.permute.xlu0 %72
  %74 = vrot.lane.b32.xlu0 %v63, 127
  %v75 = vpop.permute.xlu0 %74
  %76 = vrot.lane.b32.xlu0 %v64, 127
  %v77 = vpop.permute.xlu0 %76
  %78 = vrot.lane.b32.xlu0 %v65, 127
  %v79 = vpop.permute.xlu0 %78
  %80 = vrot.lane.b32.xlu0 %v66, 127
  %v81 = vpop.permute.xlu0 %80
  %82 = vrot.lane.b32.xlu0 %v67, 127
  %v83 = vpop.permute.xlu0 %82
  %84 = vrot.lane.b32.xlu0 %v68, 127
  %v85 = vpop.permute.xlu0 %84
  %86 = vrot.lane.b32.xlu0 %v69, 127
  %v87 = vpop.permute.xlu0 %86
  %vm88 = vcmask 1039360
  %v89 = vsel %vm88, %v71, %v73
  %v90 = vsel %vm88, %v73, %v75
  %v91 = vsel %vm88, %v75, %v77
  %v92 = vsel %vm88, %v77, %v79
  %v93 = vsel %vm88, %v79, %v81
  %v94 = vsel %vm88, %v81, %v83
  %v95 = vsel %vm88, %v83, %v85
  %v96 = vsel %vm88, %v85, %v87
  %v106 = vrot.slane %v43, 2
  %v107 = vrot.slane %v53, 2
  %v108 = vrot.slane %v44, 2
  %v109 = vrot.slane %v54, 2
  %v110 = vrot.slane %v45, 2
  %v111 = vrot.slane %v55, 2
  %v112 = vrot.slane %v46, 2
  %v113 = vrot.slane %v56, 2
  %v114 = vrot.slane %v47, 2
  %115 = vrot.lane.b32.xlu0 %v106, 126
  %v116 = vpop.permute.xlu0 %115
  %117 = vrot.lane.b32.xlu0 %v107, 126
  %v118 = vpop.permute.xlu0 %117
  %119 = vrot.lane.b32.xlu0 %v108, 126
  %v120 = vpop.permute.xlu0 %119
  %121 = vrot.lane.b32.xlu0 %v109, 126
  %v122 = vpop.permute.xlu0 %121
  %123 = vrot.lane.b32.xlu0 %v110, 126
  %v124 = vpop.permute.xlu0 %123
  %125 = vrot.lane.b32.xlu0 %v111, 126
  %v126 = vpop.permute.xlu0 %125
  %127 = vrot.lane.b32.xlu0 %v112, 126
  %v128 = vpop.permute.xlu0 %127
  %129 = vrot.lane.b32.xlu0 %v113, 126
  %v130 = vpop.permute.xlu0 %129
  %131 = vrot.lane.b32.xlu0 %v114, 126
  %v132 = vpop.permute.xlu0 %131
  %vm133 = vcmask 1031168
  %v134 = vsel %vm133, %v116, %v118
  %v135 = vsel %vm133, %v118, %v120
  %v136 = vsel %vm133, %v120, %v122
  %v137 = vsel %vm133, %v122, %v124
  %v138 = vsel %vm133, %v124, %v126
  %v139 = vsel %vm133, %v126, %v128
  %v140 = vsel %vm133, %v128, %v130
  %v141 = vsel %vm133, %v130, %v132
  %v151 = vrot.slane %v43, 7
  %v152 = vrot.slane %v53, 7
  %v153 = vrot.slane %v44, 7
  %v154 = vrot.slane %v54, 7
  %v155 = vrot.slane %v45, 7
  %v156 = vrot.slane %v55, 7
  %v157 = vrot.slane %v46, 7
  %v158 = vrot.slane %v56, 7
  %v159 = vrot.slane %v47, 7
  %160 = vrot.lane.b32.xlu0 %v151, 112
  %v161 = vpop.permute.xlu0 %160
  %162 = vrot.lane.b32.xlu0 %v152, 112
  %v163 = vpop.permute.xlu0 %162
  %164 = vrot.lane.b32.xlu0 %v153, 112
  %v165 = vpop.permute.xlu0 %164
  %166 = vrot.lane.b32.xlu0 %v154, 112
  %v167 = vpop.permute.xlu0 %166
  %168 = vrot.lane.b32.xlu0 %v155, 112
  %v169 = vpop.permute.xlu0 %168
  %170 = vrot.lane.b32.xlu0 %v156, 112
  %v171 = vpop.permute.xlu0 %170
  %172 = vrot.lane.b32.xlu0 %v157, 112
  %v173 = vpop.permute.xlu0 %172
  %174 = vrot.lane.b32.xlu0 %v158, 112
  %v175 = vpop.permute.xlu0 %174
  %176 = vrot.lane.b32.xlu0 %v159, 112
  %v177 = vpop.permute.xlu0 %176
  %vm178 = vcmask 916480
  %v179 = vsel %vm178, %v161, %v163
  %v180 = vsel %vm178, %v163, %v165
  %v181 = vsel %vm178, %v165, %v167
  %v182 = vsel %vm178, %v167, %v169
  %v183 = vsel %vm178, %v169, %v171
  %v184 = vsel %vm178, %v171, %v173
  %v185 = vsel %vm178, %v173, %v175
  %v186 = vsel %vm178, %v175, %v177
  %v196 = vcombine.low %v43, %v43
  %v197 = vcombine.low %v44, %v44
  %v198 = vcombine.low %v45, %v45
  %v199 = vcombine.low %v46, %v46
  %v200 = vcombine.low %v47, %v47
  %201 = vrot.lane.b32.xlu0 %v196, 111
  %v202 = vpop.permute.xlu0 %201
  %203 = vrot.lane.b32.xlu0 %v43, 111
  %v204 = vpop.permute.xlu0 %203
  %205 = vrot.lane.b32.xlu0 %v197, 111
  %v206 = vpop.permute.xlu0 %205
  %207 = vrot.lane.b32.xlu0 %v44, 111
  %v208 = vpop.permute.xlu0 %207
  %209 = vrot.lane.b32.xlu0 %v198, 111
  %v210 = vpop.permute.xlu0 %209
  %211 = vrot.lane.b32.xlu0 %v45, 111
  %v212 = vpop.permute.xlu0 %211
  %213 = vrot.lane.b32.xlu0 %v199, 111
  %v214 = vpop.permute.xlu0 %213
  %215 = vrot.lane.b32.xlu0 %v46, 111
  %v216 = vpop.permute.xlu0 %215
  %217 = vrot.lane.b32.xlu0 %v200, 111
  %v218 = vpop.permute.xlu0 %217
  %vm219 = vcmask 908288
  %v220 = vsel %vm219, %v202, %v204
  %v221 = vsel %vm219, %v204, %v206
  %v222 = vsel %vm219, %v206, %v208
  %v223 = vsel %vm219, %v208, %v210
  %v224 = vsel %vm219, %v210, %v212
  %v225 = vsel %vm219, %v212, %v214
  %v226 = vsel %vm219, %v214, %v216
  %v227 = vsel %vm219, %v216, %v218
  %v237 = vrot.slane %v43, 1
  %v238 = vrot.slane %v53, 1
  %v239 = vrot.slane %v44, 1
  %v240 = vrot.slane %v54, 1
  %v241 = vrot.slane %v45, 1
  %v242 = vrot.slane %v55, 1
  %v243 = vrot.slane %v46, 1
  %v244 = vrot.slane %v56, 1
  %v245 = vrot.slane %v47, 1
  %246 = vrot.lane.b32.xlu0 %v237, 110
  %v247 = vpop.permute.xlu0 %246
  %248 = vrot.lane.b32.xlu0 %v238, 110
  %v249 = vpop.permute.xlu0 %248
  %250 = vrot.lane.b32.xlu0 %v239, 110
  %v251 = vpop.permute.xlu0 %250
  %252 = vrot.lane.b32.xlu0 %v240, 110
  %v253 = vpop.permute.xlu0 %252
  %254 = vrot.lane.b32.xlu0 %v241, 110
  %v255 = vpop.permute.xlu0 %254
  %256 = vrot.lane.b32.xlu0 %v242, 110
  %v257 = vpop.permute.xlu0 %256
  %258 = vrot.lane.b32.xlu0 %v243, 110
  %v259 = vpop.permute.xlu0 %258
  %260 = vrot.lane.b32.xlu0 %v244, 110
  %v261 = vpop.permute.xlu0 %260
  %262 = vrot.lane.b32.xlu0 %v245, 110
  %v263 = vpop.permute.xlu0 %262
  %vm264 = vcmask 900096
  %v265 = vsel %vm264, %v247, %v249
  %v266 = vsel %vm264, %v249, %v251
  %v267 = vsel %vm264, %v251, %v253
  %v268 = vsel %vm264, %v253, %v255
  %v269 = vsel %vm264, %v255, %v257
  %v270 = vsel %vm264, %v257, %v259
  %v271 = vsel %vm264, %v259, %v261
  %v272 = vsel %vm264, %v261, %v263
  %v282 = vrot.slane %v43, 6
  %v283 = vrot.slane %v53, 6
  %v284 = vrot.slane %v44, 6
  %v285 = vrot.slane %v54, 6
  %v286 = vrot.slane %v45, 6
  %v287 = vrot.slane %v55, 6
  %v288 = vrot.slane %v46, 6
  %v289 = vrot.slane %v56, 6
  %v290 = vrot.slane %v47, 6
  %291 = vrot.lane.b32.xlu0 %v282, 96
  %v292 = vpop.permute.xlu0 %291
  %293 = vrot.lane.b32.xlu0 %v283, 96
  %v294 = vpop.permute.xlu0 %293
  %295 = vrot.lane.b32.xlu0 %v284, 96
  %v296 = vpop.permute.xlu0 %295
  %297 = vrot.lane.b32.xlu0 %v285, 96
  %v298 = vpop.permute.xlu0 %297
  %299 = vrot.lane.b32.xlu0 %v286, 96
  %v300 = vpop.permute.xlu0 %299
  %301 = vrot.lane.b32.xlu0 %v287, 96
  %v302 = vpop.permute.xlu0 %301
  %303 = vrot.lane.b32.xlu0 %v288, 96
  %v304 = vpop.permute.xlu0 %303
  %305 = vrot.lane.b32.xlu0 %v289, 96
  %v306 = vpop.permute.xlu0 %305
  %307 = vrot.lane.b32.xlu0 %v290, 96
  %v308 = vpop.permute.xlu0 %307
  %vm309 = vcmask 785408
  %v310 = vsel %vm309, %v292, %v294
  %v311 = vsel %vm309, %v294, %v296
  %v312 = vsel %vm309, %v296, %v298
  %v313 = vsel %vm309, %v298, %v300
  %v314 = vsel %vm309, %v300, %v302
  %v315 = vsel %vm309, %v302, %v304
  %v316 = vsel %vm309, %v304, %v306
  %v317 = vsel %vm309, %v306, %v308
  %v327 = vrot.slane %v43, 3
  %v328 = vrot.slane %v53, 3
  %v329 = vrot.slane %v44, 3
  %v330 = vrot.slane %v54, 3
  %v331 = vrot.slane %v45, 3
  %v332 = vrot.slane %v55, 3
  %v333 = vrot.slane %v46, 3
  %v334 = vrot.slane %v56, 3
  %v335 = vrot.slane %v47, 3
  %336 = vrot.lane.b32.xlu0 %v327, 95
  %v337 = vpop.permute.xlu0 %336
  %338 = vrot.lane.b32.xlu0 %v328, 95
  %v339 = vpop.permute.xlu0 %338
  %340 = vrot.lane.b32.xlu0 %v329, 95
  %v341 = vpop.permute.xlu0 %340
  %342 = vrot.lane.b32.xlu0 %v330, 95
  %v343 = vpop.permute.xlu0 %342
  %344 = vrot.lane.b32.xlu0 %v331, 95
  %v345 = vpop.permute.xlu0 %344
  %346 = vrot.lane.b32.xlu0 %v332, 95
  %v347 = vpop.permute.xlu0 %346
  %348 = vrot.lane.b32.xlu0 %v333, 95
  %v349 = vpop.permute.xlu0 %348
  %350 = vrot.lane.b32.xlu0 %v334, 95
  %v351 = vpop.permute.xlu0 %350
  %352 = vrot.lane.b32.xlu0 %v335, 95
  %v353 = vpop.permute.xlu0 %352
  %vm354 = vcmask 777216
  %v355 = vsel %vm354, %v337, %v339
  %v356 = vsel %vm354, %v339, %v341
  %v357 = vsel %vm354, %v341, %v343
  %v358 = vsel %vm354, %v343, %v345
  %v359 = vsel %vm354, %v345, %v347
  %v360 = vsel %vm354, %v347, %v349
  %v361 = vsel %vm354, %v349, %v351
  %v362 = vsel %vm354, %v351, %v353
  %372 = vrot.lane.b32.xlu0 %v43, 94
  %v373 = vpop.permute.xlu0 %372
  %374 = vrot.lane.b32.xlu0 %v53, 94
  %v375 = vpop.permute.xlu0 %374
  %376 = vrot.lane.b32.xlu0 %v44, 94
  %v377 = vpop.permute.xlu0 %376
  %378 = vrot.lane.b32.xlu0 %v54, 94
  %v379 = vpop.permute.xlu0 %378
  %380 = vrot.lane.b32.xlu0 %v45, 94
  %v381 = vpop.permute.xlu0 %380
  %382 = vrot.lane.b32.xlu0 %v55, 94
  %v383 = vpop.permute.xlu0 %382
  %384 = vrot.lane.b32.xlu0 %v46, 94
  %v385 = vpop.permute.xlu0 %384
  %386 = vrot.lane.b32.xlu0 %v56, 94
  %v387 = vpop.permute.xlu0 %386
  %388 = vrot.lane.b32.xlu0 %v47, 94
  %v389 = vpop.permute.xlu0 %388
  %vm390 = vcmask 769024
  %v391 = vsel %vm390, %v373, %v375
  %v392 = vsel %vm390, %v375, %v377
  %v393 = vsel %vm390, %v377, %v379
  %v394 = vsel %vm390, %v379, %v381
  %v395 = vsel %vm390, %v381, %v383
  %v396 = vsel %vm390, %v383, %v385
  %v397 = vsel %vm390, %v385, %v387
  %v398 = vsel %vm390, %v387, %v389
  %vm399 = vcmask 1042432
  %v400 = vsel %vm399, %v43, %v89
  %v401 = vsel %vm399, %v53, %v90
  %v402 = vsel %vm399, %v44, %v91
  %v403 = vsel %vm399, %v54, %v92
  %v404 = vsel %vm399, %v45, %v93
  %v405 = vsel %vm399, %v55, %v94
  %v406 = vsel %vm399, %v46, %v95
  %v407 = vsel %vm399, %v56, %v96
  %v408 = vsel %vm399, %v47, %v87
  %vm409 = vcmask 1045504
  %v410 = vsel %vm409, %v400, %v134
  %v411 = vsel %vm409, %v401, %v135
  %v412 = vsel %vm409, %v402, %v136
  %v413 = vsel %vm409, %v403, %v137
  %v414 = vsel %vm409, %v404, %v138
  %v415 = vsel %vm409, %v405, %v139
  %v416 = vsel %vm409, %v406, %v140
  %v417 = vsel %vm409, %v407, %v141
  %v418 = vsel %vm409, %v408, %v132
  %vm419 = vcmask 1040384
  %v420 = vsel %vm419, %v134, %v179
  %v421 = vsel %vm419, %v135, %v180
  %v422 = vsel %vm419, %v136, %v181
  %v423 = vsel %vm419, %v137, %v182
  %v424 = vsel %vm419, %v138, %v183
  %v425 = vsel %vm419, %v139, %v184
  %v426 = vsel %vm419, %v140, %v185
  %v427 = vsel %vm419, %v141, %v186
  %v428 = vsel %vm419, %v132, %v177
  %vm429 = vcmask 1043456
  %v430 = vsel %vm429, %v420, %v220
  %v431 = vsel %vm429, %v421, %v221
  %v432 = vsel %vm429, %v422, %v222
  %v433 = vsel %vm429, %v423, %v223
  %v434 = vsel %vm429, %v424, %v224
  %v435 = vsel %vm429, %v425, %v225
  %v436 = vsel %vm429, %v426, %v226
  %v437 = vsel %vm429, %v427, %v227
  %v438 = vsel %vm429, %v428, %v218
  %vm439 = vcmask 1046528
  %v440 = vsel %vm439, %v430, %v265
  %v441 = vsel %vm439, %v431, %v266
  %v442 = vsel %vm439, %v432, %v267
  %v443 = vsel %vm439, %v433, %v268
  %v444 = vsel %vm439, %v434, %v269
  %v445 = vsel %vm439, %v435, %v270
  %v446 = vsel %vm439, %v436, %v271
  %v447 = vsel %vm439, %v437, %v272
  %v448 = vsel %vm439, %v438, %v263
  %vm449 = vcmask 1041408
  %v450 = vsel %vm449, %v265, %v310
  %v451 = vsel %vm449, %v266, %v311
  %v452 = vsel %vm449, %v267, %v312
  %v453 = vsel %vm449, %v268, %v313
  %v454 = vsel %vm449, %v269, %v314
  %v455 = vsel %vm449, %v270, %v315
  %v456 = vsel %vm449, %v271, %v316
  %v457 = vsel %vm449, %v272, %v317
  %v458 = vsel %vm449, %v263, %v308
  %vm459 = vcmask 1044480
  %v460 = vsel %vm459, %v450, %v355
  %v461 = vsel %vm459, %v451, %v356
  %v462 = vsel %vm459, %v452, %v357
  %v463 = vsel %vm459, %v453, %v358
  %v464 = vsel %vm459, %v454, %v359
  %v465 = vsel %vm459, %v455, %v360
  %v466 = vsel %vm459, %v456, %v361
  %v467 = vsel %vm459, %v457, %v362
  %v468 = vsel %vm459, %v458, %v353
  %v469 = vld [vmem:[%s1] sm:$0xff]
  %v470 = vld [vmem:[%s2] sm:$0xff]
  %472 = vset.pattern.permute.xlu0 0
  %473 = vperm.xlu0 %472, %v470
  %v474 = vpop.permute.xlu0 %473
  %vm476 = vcmask 220160
  %v478 = vsel %vm476, %v469, 0
  %v480 = vsel %vm399, %v391, 0
  %v482 = vsel %vm399, %v392, 0
  %v484 = vsel %vm399, %v393, 0
  %v486 = vsel %vm399, %v394, 0
  %v488 = vsel %vm399, %v395, 0
  %v490 = vsel %vm399, %v396, 0
  %v492 = vsel %vm399, %v397, 0
  %v494 = vsel %vm399, %v398, 0
  %v496 = vsel %vm399, %v389, 0
  %498 = vmatprep.subr.mxu0 %v411
  %499 = vmatpush1.msra.mxu0 %v410
  %500 = vmatprep.subr.mxu0 %v441
  %501 = vmatpush1.msra.mxu0 %v440
  %502 = vmatprep.subr.mxu0 %v461
  %503 = vmatpush1.msra.mxu0 %v460
  %504 = vmatprep.subr.mxu0 %v482
  %505 = vmatpush1.msra.mxu0 %v480
  %506 = vmatprep.subr.mxu0 0.0
  %507 = vmatpush1.msra.mxu0 0.0
  %508 = vmatprep.subr.mxu0 0.0
  %509 = vmatpush1.msra.mxu0 0.0
  %510 = vmatprep.subr.mxu0 0.0
  %511 = vmatpush1.msra.mxu0 0.0
  %512 = vmatprep.subr.mxu0 0.0
  %513 = vmatpush1.msra.mxu0 0.0
  %514 = vmatprep.subr.mxu0 0.0
  %515 = vmatpush1.msra.mxu0 0.0
  %516 = vmatprep.subr.mxu0 0.0
  %517 = vmatpush1.msra.mxu0 0.0
  %518 = vmatprep.subr.mxu0 0.0
  %519 = vmatpush1.msra.mxu0 0.0
  %520 = vmatprep.subr.mxu0 0.0
  %521 = vmatpush1.msra.mxu0 0.0
  %522 = vmatprep.subr.mxu0 0.0
  %523 = vmatpush1.msra.mxu0 0.0
  %524 = vmatprep.subr.mxu0 0.0
  %525 = vmatpush1.msra.mxu0 0.0
  %526 = vmatprep.subr.mxu0 0.0
  %527 = vmatpush1.msra.mxu0 0.0
  %528 = vmatprep.subr.mxu0 0.0
  %529 = vmatpush1.msra.mxu0 0.0
  %530 = vmatprep.subr.mxu0 0.0
  %531 = vmatpush1.msra.mxu0 0.0
  %532 = vmatprep.subr.mxu0 0.0
  %533 = vmatpush1.msra.mxu0 0.0
  %534 = vmatprep.subr.mxu0 0.0
  %535 = vmatpush1.msra.mxu0 0.0
  %536 = vmatprep.subr.mxu0 0.0
  %537 = vmatpush1.msra.mxu0 0.0
  %538 = vmatprep.subr.mxu0 0.0
  %539 = vmatpush1.msra.mxu0 0.0
  %540 = vmatprep.subr.mxu0 0.0
  %541 = vmatpush1.msra.mxu0 0.0
  %542 = vmatprep.subr.mxu0 0.0
  %543 = vmatpush1.msra.mxu0 0.0
  %544 = vmatprep.subr.mxu0 0.0
  %545 = vmatpush1.msra.mxu0 0.0
  %546 = vmatprep.subr.mxu0 0.0
  %547 = vmatpush1.msra.mxu0 0.0
  %548 = vmatprep.subr.mxu0 0.0
  %549 = vmatpush1.msra.mxu0 0.0
  %550 = vmatprep.subr.mxu0 0.0
  %551 = vmatpush1.msra.mxu0 0.0
  %552 = vmatprep.subr.mxu0 0.0
  %553 = vmatpush1.msra.mxu0 0.0
  %554 = vmatprep.subr.mxu0 0.0
  %555 = vmatpush1.msra.mxu0 0.0
  %556 = vmatprep.subr.mxu0 0.0
  %557 = vmatpush1.msra.mxu0 0.0
  %558 = vmatprep.subr.mxu0 0.0
  %559 = vmatpush1.msra.mxu0 0.0
  %560 = vmatprep.subr.mxu0 0.0
  %561 = vmatpush1.msra.mxu0 0.0
  %562 = vmatprep.mubr.f32.mxu0 0.0
  %563 = vmatmul.mubr.f32.gmra.mrb[0].mxu0 %v478
  %v564 = vpop.f32.mrb[0].mxu0
  %v565 = vadd.f32 %v474, %v564
  %v566 = vpop.f32.mrb[0].mxu0
  %v567 = vadd.f32 %v474, %v566
  %568 = vdwg.mxu0
  %569 = vmatprep.subr.mxu0 %v413
  %570 = vmatpush1.msra.mxu0 %v412
  %571 = vmatprep.subr.mxu0 %v443
  %572 = vmatpush1.msra.mxu0 %v442
  %573 = vmatprep.subr.mxu0 %v463
  %574 = vmatpush1.msra.mxu0 %v462
  %575 = vmatprep.subr.mxu0 %v486
  %576 = vmatpush1.msra.mxu0 %v484
  %577 = vmatprep.subr.mxu0 0.0
  %578 = vmatpush1.msra.mxu0 0.0
  %579 = vmatprep.subr.mxu0 0.0
  %580 = vmatpush1.msra.mxu0 0.0
  %581 = vmatprep.subr.mxu0 0.0
  %582 = vmatpush1.msra.mxu0 0.0
  %583 = vmatprep.subr.mxu0 0.0
  %584 = vmatpush1.msra.mxu0 0.0
  %585 = vmatprep.subr.mxu0 0.0
  %586 = vmatpush1.msra.mxu0 0.0
  %587 = vmatprep.subr.mxu0 0.0
  %588 = vmatpush1.msra.mxu0 0.0
  %589 = vmatprep.subr.mxu0 0.0
  %590 = vmatpush1.msra.mxu0 0.0
  %591 = vmatprep.subr.mxu0 0.0
  %592 = vmatpush1.msra.mxu0 0.0
  %593 = vmatprep.subr.mxu0 0.0
  %594 = vmatpush1.msra.mxu0 0.0
  %595 = vmatprep.subr.mxu0 0.0
  %596 = vmatpush1.msra.mxu0 0.0
  %597 = vmatprep.subr.mxu0 0.0
  %598 = vmatpush1.msra.mxu0 0.0
  %599 = vmatprep.subr.mxu0 0.0
  %600 = vmatpush1.msra.mxu0 0.0
  %601 = vmatprep.subr.mxu0 0.0
  %602 = vmatpush1.msra.mxu0 0.0
  %603 = vmatprep.subr.mxu0 0.0
  %604 = vmatpush1.msra.mxu0 0.0
  %605 = vmatprep.subr.mxu0 0.0
  %606 = vmatpush1.msra.mxu0 0.0
  %607 = vmatprep.subr.mxu0 0.0
  %608 = vmatpush1.msra.mxu0 0.0
  %609 = vmatprep.subr.mxu0 0.0
  %610 = vmatpush1.msra.mxu0 0.0
  %611 = vmatprep.subr.mxu0 0.0
  %612 = vmatpush1.msra.mxu0 0.0
  %613 = vmatprep.subr.mxu0 0.0
  %614 = vmatpush1.msra.mxu0 0.0
  %615 = vmatprep.subr.mxu0 0.0
  %616 = vmatpush1.msra.mxu0 0.0
  %617 = vmatprep.subr.mxu0 0.0
  %618 = vmatpush1.msra.mxu0 0.0
  %619 = vmatprep.subr.mxu0 0.0
  %620 = vmatpush1.msra.mxu0 0.0
  %621 = vmatprep.subr.mxu0 0.0
  %622 = vmatpush1.msra.mxu0 0.0
  %623 = vmatprep.subr.mxu0 0.0
  %624 = vmatpush1.msra.mxu0 0.0
  %625 = vmatprep.subr.mxu0 0.0
  %626 = vmatpush1.msra.mxu0 0.0
  %627 = vmatprep.subr.mxu0 0.0
  %628 = vmatpush1.msra.mxu0 0.0
  %629 = vmatprep.subr.mxu0 0.0
  %630 = vmatpush1.msra.mxu0 0.0
  %631 = vmatprep.subr.mxu0 0.0
  %632 = vmatpush1.msra.mxu0 0.0
  %633 = vmatprep.mubr.f32.mxu0 0.0
  %634 = vmatmul.mubr.f32.gmra.mrb[0].mxu0 %v478
  %v635 = vpop.f32.mrb[0].mxu0
  %v636 = vadd.f32 %v474, %v635
  %v637 = vpop.f32.mrb[0].mxu0
  %v638 = vadd.f32 %v474, %v637
  %639 = vdwg.mxu0
  %640 = vmatprep.subr.mxu0 %v415
  %641 = vmatpush1.msra.mxu0 %v414
  %642 = vmatprep.subr.mxu0 %v445
  %643 = vmatpush1.msra.mxu0 %v444
  %644 = vmatprep.subr.mxu0 %v465
  %645 = vmatpush1.msra.mxu0 %v464
  %646 = vmatprep.subr.mxu0 %v490
  %647 = vmatpush1.msra.mxu0 %v488
  %648 = vmatprep.subr.mxu0 0.0
  %649 = vmatpush1.msra.mxu0 0.0
  %650 = vmatprep.subr.mxu0 0.0
  %651 = vmatpush1.msra.mxu0 0.0
  %652 = vmatprep.subr.mxu0 0.0
  %653 = vmatpush1.msra.mxu0 0.0
  %654 = vmatprep.subr.mxu0 0.0
  %655 = vmatpush1.msra.mxu0 0.0
  %656 = vmatprep.subr.mxu0 0.0
  %657 = vmatpush1.msra.mxu0 0.0
  %658 = vmatprep.subr.mxu0 0.0
  %659 = vmatpush1.msra.mxu0 0.0
  %660 = vmatprep.subr.mxu0 0.0
  %661 = vmatpush1.msra.mxu0 0.0
  %662 = vmatprep.subr.mxu0 0.0
  %663 = vmatpush1.msra.mxu0 0.0
  %664 = vmatprep.subr.mxu0 0.0
  %665 = vmatpush1.msra.mxu0 0.0
  %666 = vmatprep.subr.mxu0 0.0
  %667 = vmatpush1.msra.mxu0 0.0
  %668 = vmatprep.subr.mxu0 0.0
  %669 = vmatpush1.msra.mxu0 0.0
  %670 = vmatprep.subr.mxu0 0.0
  %671 = vmatpush1.msra.mxu0 0.0
  %672 = vmatprep.subr.mxu0 0.0
  %673 = vmatpush1.msra.mxu0 0.0
  %674 = vmatprep.subr.mxu0 0.0
  %675 = vmatpush1.msra.mxu0 0.0
  %676 = vmatprep.subr.mxu0 0.0
  %677 = vmatpush1.msra.mxu0 0.0
  %678 = vmatprep.subr.mxu0 0.0
  %679 = vmatpush1.msra.mxu0 0.0
  %680 = vmatprep.subr.mxu0 0.0
  %681 = vmatpush1.msra.mxu0 0.0
  %682 = vmatprep.subr.mxu0 0.0
  %683 = vmatpush1.msra.mxu0 0.0
  %684 = vmatprep.subr.mxu0 0.0
  %685 = vmatpush1.msra.mxu0 0.0
  %686 = vmatprep.subr.mxu0 0.0
  %687 = vmatpush1.msra.mxu0 0.0
  %688 = vmatprep.subr.mxu0 0.0
  %689 = vmatpush1.msra.mxu0 0.0
  %690 = vmatprep.subr.mxu0 0.0
  %691 = vmatpush1.msra.mxu0 0.0
  %692 = vmatprep.subr.mxu0 0.0
  %693 = vmatpush1.msra.mxu0 0.0
  %694 = vmatprep.subr.mxu0 0.0
  %695 = vmatpush1.msra.mxu0 0.0
  %696 = vmatprep.subr.mxu0 0.0
  %697 = vmatpush1.msra.mxu0 0.0
  %698 = vmatprep.subr.mxu0 0.0
  %699 = vmatpush1.msra.mxu0 0.0
  %700 = vmatprep.subr.mxu0 0.0
  %701 = vmatpush1.msra.mxu0 0.0
  %702 = vmatprep.subr.mxu0 0.0
  %703 = vmatpush1.msra.mxu0 0.0
  %704 = vmatprep.mubr.f32.mxu0 0.0
  %705 = vmatmul.mubr.f32.gmra.mrb[0].mxu0 %v478
  %v706 = vpop.f32.mrb[0].mxu0
  %v707 = vadd.f32 %v474, %v706
  %v708 = vpop.f32.mrb[0].mxu0
  %v709 = vadd.f32 %v474, %v708
  %710 = vdwg.mxu0
  %711 = vmatprep.subr.mxu0 %v417
  %712 = vmatpush1.msra.mxu0 %v416
  %713 = vmatprep.subr.mxu0 %v447
  %714 = vmatpush1.msra.mxu0 %v446
  %715 = vmatprep.subr.mxu0 %v467
  %716 = vmatpush1.msra.mxu0 %v466
  %717 = vmatprep.subr.mxu0 %v494
  %718 = vmatpush1.msra.mxu0 %v492
  %719 = vmatprep.subr.mxu0 0.0
  %720 = vmatpush1.msra.mxu0 0.0
  %721 = vmatprep.subr.mxu0 0.0
  %722 = vmatpush1.msra.mxu0 0.0
  %723 = vmatprep.subr.mxu0 0.0
  %724 = vmatpush1.msra.mxu0 0.0
  %725 = vmatprep.subr.mxu0 0.0
  %726 = vmatpush1.msra.mxu0 0.0
  %727 = vmatprep.subr.mxu0 0.0
  %728 = vmatpush1.msra.mxu0 0.0
  %729 = vmatprep.subr.mxu0 0.0
  %730 = vmatpush1.msra.mxu0 0.0
  %731 = vmatprep.subr.mxu0 0.0
  %732 = vmatpush1.msra.mxu0 0.0
  %733 = vmatprep.subr.mxu0 0.0
  %734 = vmatpush1.msra.mxu0 0.0
  %735 = vmatprep.subr.mxu0 0.0
  %736 = vmatpush1.msra.mxu0 0.0
  %737 = vmatprep.subr.mxu0 0.0
  %738 = vmatpush1.msra.mxu0 0.0
  %739 = vmatprep.subr.mxu0 0.0
  %740 = vmatpush1.msra.mxu0 0.0
  %741 = vmatprep.subr.mxu0 0.0
  %742 = vmatpush1.msra.mxu0 0.0
  %743 = vmatprep.subr.mxu0 0.0
  %744 = vmatpush1.msra.mxu0 0.0
  %745 = vmatprep.subr.mxu0 0.0
  %746 = vmatpush1.msra.mxu0 0.0
  %747 = vmatprep.subr.mxu0 0.0
  %748 = vmatpush1.msra.mxu0 0.0
  %749 = vmatprep.subr.mxu0 0.0
  %750 = vmatpush1.msra.mxu0 0.0
  %751 = vmatprep.subr.mxu0 0.0
  %752 = vmatpush1.msra.mxu0 0.0
  %753 = vmatprep.subr.mxu0 0.0
  %754 = vmatpush1.msra.mxu0 0.0
  %755 = vmatprep.subr.mxu0 0.0
  %756 = vmatpush1.msra.mxu0 0.0
  %757 = vmatprep.subr.mxu0 0.0
  %758 = vmatpush1.msra.mxu0 0.0
  %759 = vmatprep.subr.mxu0 0.0
  %760 = vmatpush1.msra.mxu0 0.0
  %761 = vmatprep.subr.mxu0 0.0
  %762 = vmatpush1.msra.mxu0 0.0
  %763 = vmatprep.subr.mxu0 0.0
  %764 = vmatpush1.msra.mxu0 0.0
  %765 = vmatprep.subr.mxu0 0.0
  %766 = vmatpush1.msra.mxu0 0.0
  %767 = vmatprep.subr.mxu0 0.0
  %768 = vmatpush1.msra.mxu0 0.0
  %769 = vmatprep.subr.mxu0 0.0
  %770 = vmatpush1.msra.mxu0 0.0
  %771 = vmatprep.subr.mxu0 0.0
  %772 = vmatpush1.msra.mxu0 0.0
  %773 = vmatprep.subr.mxu0 0.0
  %774 = vmatpush1.msra.mxu0 0.0
  %775 = vmatprep.mubr.f32.mxu0 0.0
  %776 = vmatmul.mubr.f32.gmra.mrb[0].mxu0 %v478
  %v777 = vpop.f32.mrb[0].mxu0
  %v778 = vadd.f32 %v474, %v777
  %v779 = vpop.f32.mrb[0].mxu0
  %v780 = vadd.f32 %v474, %v779
  %781 = vdwg.mxu0
  %782 = vmatprep.subr.mxu0 0.0
  %783 = vmatpush1.msra.mxu0 %v418
  %784 = vmatprep.subr.mxu0 0.0
  %785 = vmatpush1.msra.mxu0 %v448
  %786 = vmatprep.subr.mxu0 0.0
  %787 = vmatpush1.msra.mxu0 %v468
  %788 = vmatprep.subr.mxu0 0.0
  %789 = vmatpush1.msra.mxu0 %v496
  %790 = vmatprep.subr.mxu0 0.0
  %791 = vmatpush1.msra.mxu0 0.0
  %792 = vmatprep.subr.mxu0 0.0
  %793 = vmatpush1.msra.mxu0 0.0
  %794 = vmatprep.subr.mxu0 0.0
  %795 = vmatpush1.msra.mxu0 0.0
  %796 = vmatprep.subr.mxu0 0.0
  %797 = vmatpush1.msra.mxu0 0.0
  %798 = vmatprep.subr.mxu0 0.0
  %799 = vmatpush1.msra.mxu0 0.0
  %800 = vmatprep.subr.mxu0 0.0
  %801 = vmatpush1.msra.mxu0 0.0
  %802 = vmatprep.subr.mxu0 0.0
  %803 = vmatpush1.msra.mxu0 0.0
  %804 = vmatprep.subr.mxu0 0.0
  %805 = vmatpush1.msra.mxu0 0.0
  %806 = vmatprep.subr.mxu0 0.0
  %807 = vmatpush1.msra.mxu0 0.0
  %808 = vmatprep.subr.mxu0 0.0
  %809 = vmatpush1.msra.mxu0 0.0
  %810 = vmatprep.subr.mxu0 0.0
  %811 = vmatpush1.msra.mxu0 0.0
  %812 = vmatprep.subr.mxu0 0.0
  %813 = vmatpush1.msra.mxu0 0.0
  %814 = vmatprep.subr.mxu0 0.0
  %815 = vmatpush1.msra.mxu0 0.0
  %816 = vmatprep.subr.mxu0 0.0
  %817 = vmatpush1.msra.mxu0 0.0
  %818 = vmatprep.subr.mxu0 0.0
  %819 = vmatpush1.msra.mxu0 0.0
  %820 = vmatprep.subr.mxu0 0.0
  %821 = vmatpush1.msra.mxu0 0.0
  %822 = vmatprep.subr.mxu0 0.0
  %823 = vmatpush1.msra.mxu0 0.0
  %824 = vmatprep.subr.mxu0 0.0
  %825 = vmatpush1.msra.mxu0 0.0
  %826 = vmatprep.subr.mxu0 0.0
  %827 = vmatpush1.msra.mxu0 0.0
  %828 = vmatprep.subr.mxu0 0.0
  %829 = vmatpush1.msra.mxu0 0.0
  %830 = vmatprep.subr.mxu0 0.0
  %831 = vmatpush1.msra.mxu0 0.0
  %832 = vmatprep.subr.mxu0 0.0
  %833 = vmatpush1.msra.mxu0 0.0
  %834 = vmatprep.subr.mxu0 0.0
  %835 = vmatpush1.msra.mxu0 0.0
  %836 = vmatprep.subr.mxu0 0.0
  %837 = vmatpush1.msra.mxu0 0.0
  %838 = vmatprep.subr.mxu0 0.0
  %839 = vmatpush1.msra.mxu0 0.0
  %840 = vmatprep.subr.mxu0 0.0
  %841 = vmatpush1.msra.mxu0 0.0
  %842 = vmatprep.subr.mxu0 0.0
  %843 = vmatpush1.msra.mxu0 0.0
  %844 = vmatprep.subr.mxu0 0.0
  %845 = vmatpush1.msra.mxu0 0.0
  %846 = vmatprep.mubr.f32.mxu0 0.0
  %847 = vmatmul.mubr.f32.gmra.mrb[0].mxu0 %v478
  %v848 = vpop.f32.mrb[0].mxu0
  %v849 = vadd.f32 %v474, %v848
  %v850 = vpop.f32.mrb[0].mxu0
  %851 = vdwg.mxu0
  %v852 = vld [vmem:[%s5] sm:$0xff]
  %v853 = vld [vmem:[%s5 + $0x8] sm:$0x1]
  %v856 = vlaneseq
  %v857 = vshrl.u32 %v856, 7
  %v858 = vsub.s32 0, %v857
  %v859 = vrot.slane %v852, %v858
  %v860 = vlaneseq
  %v861 = vshrl.u32 %v860, 7
  %v862 = vsub.s32 1, %v861
  %v863 = vrot.slane %v852, %v862
  %v864 = vlaneseq
  %v865 = vshrl.u32 %v864, 7
  %v866 = vsub.s32 2, %v865
  %v867 = vrot.slane %v852, %v866
  %v868 = vlaneseq
  %v869 = vshrl.u32 %v868, 7
  %v870 = vsub.s32 3, %v869
  %v871 = vrot.slane %v852, %v870
  %v872 = vlaneseq
  %v873 = vshrl.u32 %v872, 7
  %v874 = vsub.s32 4, %v873
  %v875 = vrot.slane %v852, %v874
  %v876 = vlaneseq
  %v877 = vshrl.u32 %v876, 7
  %v878 = vsub.s32 5, %v877
  %v879 = vrot.slane %v852, %v878
  %v880 = vlaneseq
  %v881 = vshrl.u32 %v880, 7
  %v882 = vsub.s32 6, %v881
  %v883 = vrot.slane %v852, %v882
  %v884 = vlaneseq
  %v885 = vshrl.u32 %v884, 7
  %v886 = vsub.s32 7, %v885
  %v887 = vrot.slane %v852, %v886
  %v888 = vlaneseq
  %v889 = vshrl.u32 %v888, 7
  %v890 = vsub.s32 0, %v889
  %v891 = vrot.slane %v853, %v890
  %v901 = vmul.f32 %v565, %v859
  %v902 = vmul.f32 %v567, %v863
  %v903 = vmul.f32 %v636, %v867
  %v904 = vmul.f32 %v638, %v871
  %v905 = vmul.f32 %v707, %v875
  %v906 = vmul.f32 %v709, %v879
  %v907 = vmul.f32 %v778, %v883
  %v908 = vmul.f32 %v780, %v887
  %v909 = vmul.f32 %v849, %v891
  %v910 = vadd.f32 %v901, %v902
  %v911 = vadd.f32 %v910, %v903
  %v912 = vadd.f32 %v911, %v904
  %v913 = vadd.f32 %v912, %v905
  %v914 = vadd.f32 %v913, %v906
  %v915 = vadd.f32 %v914, %v907
  %v916 = vadd.f32 %v915, %v908
  %vm917 = vcmask 64512
  %v918 = vsel %vm917, %v909, 0.0
  %v919 = vadd.f32 %v916, %v918
  %920 = vadd.xlane.f32.xlu0 %v919
  %v921 = vpop.xlane.xlu0 %920
  %v922 = vmul.f32 %v921, 0.0012755102
  %v923 = vsub.f32 %v565, %v922
  %v924 = vsub.f32 %v567, %v922
  %v925 = vsub.f32 %v636, %v922
  %v926 = vsub.f32 %v638, %v922
  %v927 = vsub.f32 %v707, %v922
  %v928 = vsub.f32 %v709, %v922
  %v929 = vsub.f32 %v778, %v922
  %v930 = vsub.f32 %v780, %v922
  %v931 = vsub.f32 %v849, %v922
  %v932 = vmul.f32 %v923, %v923
  %v933 = vmul.f32 %v924, %v924
  %v934 = vmul.f32 %v925, %v925
  %v935 = vmul.f32 %v926, %v926
  %v936 = vmul.f32 %v927, %v927
  %v937 = vmul.f32 %v928, %v928
  %v938 = vmul.f32 %v929, %v929
  %v939 = vmul.f32 %v930, %v930
  %v940 = vmul.f32 %v931, %v931
  %v941 = vmul.f32 %v932, %v859
  %v942 = vmul.f32 %v933, %v863
  %v943 = vmul.f32 %v934, %v867
  %v944 = vmul.f32 %v935, %v871
  %v945 = vmul.f32 %v936, %v875
  %v946 = vmul.f32 %v937, %v879
  %v947 = vmul.f32 %v938, %v883
  %v948 = vmul.f32 %v939, %v887
  %v949 = vmul.f32 %v940, %v891
  %v950 = vadd.f32 %v941, %v942
  %v951 = vadd.f32 %v950, %v943
  %v952 = vadd.f32 %v951, %v944
  %v953 = vadd.f32 %v952, %v945
  %v954 = vadd.f32 %v953, %v946
  %v955 = vadd.f32 %v954, %v947
  %v956 = vadd.f32 %v955, %v948
  %v957 = vsel %vm917, %v949, 0.0
  %v958 = vadd.f32 %v956, %v957
  %959 = vadd.xlane.f32.xlu0 %v958
  %v960 = vpop.xlane.xlu0 %959
  %v961 = vmul.f32 %v960, 0.0012755102
  %v962 = vadd.f32 %v961, 1e-05
  %v963 = vrsqrt.pop %v962
  %v964 = vmul.f32 %v923, %v963
  %v965 = vmul.f32 %v924, %v963
  %v966 = vmul.f32 %v925, %v963
  %v967 = vmul.f32 %v926, %v963
  %v968 = vmul.f32 %v927, %v963
  %v969 = vmul.f32 %v928, %v963
  %v970 = vmul.f32 %v929, %v963
  %v971 = vmul.f32 %v930, %v963
  %v972 = vmul.f32 %v931, %v963
  %v973 = vld [vmem:[%s3] sm:$0xff]
  %975 = vset.pattern.permute.xlu0 0
  %976 = vperm.xlu0 %975, %v973
  %v977 = vpop.permute.xlu0 %976
  %v979 = vmul.f32 %v964, %v977
  %v980 = vmul.f32 %v965, %v977
  %v981 = vmul.f32 %v966, %v977
  %v982 = vmul.f32 %v967, %v977
  %v983 = vmul.f32 %v968, %v977
  %v984 = vmul.f32 %v969, %v977
  %v985 = vmul.f32 %v970, %v977
  %v986 = vmul.f32 %v971, %v977
  %v987 = vmul.f32 %v972, %v977
  %v988 = vld [vmem:[%s4] sm:$0xff]
  %990 = vset.pattern.permute.xlu0 0
  %991 = vperm.xlu0 %990, %v988
  %v992 = vpop.permute.xlu0 %991
  %v994 = vadd.f32 %v979, %v992
  %v995 = vadd.f32 %v980, %v992
  %v996 = vadd.f32 %v981, %v992
  %v997 = vadd.f32 %v982, %v992
  %v998 = vadd.f32 %v983, %v992
  %v999 = vadd.f32 %v984, %v992
  %v1000 = vadd.f32 %v985, %v992
  %v1001 = vadd.f32 %v986, %v992
  %v1002 = vadd.f32 %v987, %v992
  %vm1003 = vcmp.ge.f32.partialorder %v994, 0.0
  %vm1004 = vcmp.ge.f32.partialorder %v995, 0.0
  %vm1005 = vcmp.ge.f32.partialorder %v996, 0.0
  %vm1006 = vcmp.ge.f32.partialorder %v997, 0.0
  %vm1007 = vcmp.ge.f32.partialorder %v998, 0.0
  %vm1008 = vcmp.ge.f32.partialorder %v999, 0.0
  %vm1009 = vcmp.ge.f32.partialorder %v1000, 0.0
  %vm1010 = vcmp.ge.f32.partialorder %v1001, 0.0
  %vm1011 = vcmp.ge.f32.partialorder %v1002, 0.0
  %v1012 = vmul.f32 %v994, 0.2
  %v1013 = vmul.f32 %v995, 0.2
  %v1014 = vmul.f32 %v996, 0.2
  %v1015 = vmul.f32 %v997, 0.2
  %v1016 = vmul.f32 %v998, 0.2
  %v1017 = vmul.f32 %v999, 0.2
  %v1018 = vmul.f32 %v1000, 0.2
  %v1019 = vmul.f32 %v1001, 0.2
  %v1020 = vmul.f32 %v1002, 0.2
  %v1021 = vsel %vm1003, %v994, %v1012
  %v1022 = vsel %vm1004, %v995, %v1013
  %v1023 = vsel %vm1005, %v996, %v1014
  %v1024 = vsel %vm1006, %v997, %v1015
  %v1025 = vsel %vm1007, %v998, %v1016
  %v1026 = vsel %vm1008, %v999, %v1017
  %v1027 = vsel %vm1009, %v1000, %v1018
  %v1028 = vsel %vm1010, %v1001, %v1019
  %v1029 = vsel %vm1011, %v1002, %v1020
  %v1030 = vmul.f32 %v1021, %v859
  %v1031 = vmul.f32 %v1022, %v863
  %v1032 = vmul.f32 %v1023, %v867
  %v1033 = vmul.f32 %v1024, %v871
  %v1034 = vmul.f32 %v1025, %v875
  %v1035 = vmul.f32 %v1026, %v879
  %v1036 = vmul.f32 %v1027, %v883
  %v1037 = vmul.f32 %v1028, %v887
  %v1038 = vmul.f32 %v1029, %v891
  %1039 = vst [vmem:[#allocation2] sm:$0xff] %v1030
  %1040 = vst [vmem:[#allocation2 + $0x8] sm:$0xff] %v1031
  %1041 = vst [vmem:[#allocation2 + $0x10] sm:$0xff] %v1032
  %1042 = vst [vmem:[#allocation2 + $0x18] sm:$0xff] %v1033
  %1043 = vst [vmem:[#allocation2 + $0x20] sm:$0xff] %v1034
  %1044 = vst [vmem:[#allocation2 + $0x28] sm:$0xff] %v1035
  %1045 = vst [vmem:[#allocation2 + $0x30] sm:$0xff] %v1036
  %vm1046 = vcmask 834560
  %1047 = vst.msk [vmem:[#allocation2 + $0x38] sm:$0xff] %vm1046, %v1037
  %1056 = vrot.lane.b32.xlu0 %v1030, 127
  %v1057 = vpop.permute.xlu0 %1056
  %1058 = vrot.lane.b32.xlu0 %v1031, 127
  %v1059 = vpop.permute.xlu0 %1058
  %1060 = vrot.lane.b32.xlu0 %v1032, 127
  %v1061 = vpop.permute.xlu0 %1060
  %1062 = vrot.lane.b32.xlu0 %v1033, 127
  %v1063 = vpop.permute.xlu0 %1062
  %1064 = vrot.lane.b32.xlu0 %v1034, 127
  %v1065 = vpop.permute.xlu0 %1064
  %1066 = vrot.lane.b32.xlu0 %v1035, 127
  %v1067 = vpop.permute.xlu0 %1066
  %1068 = vrot.lane.b32.xlu0 %v1036, 127
  %v1069 = vpop.permute.xlu0 %1068
  %1070 = vrot.lane.b32.xlu0 %v1037, 127
  %v1071 = vpop.permute.xlu0 %1070
  %v1072 = vsel %vm88, %v1057, %v1059
  %v1073 = vsel %vm88, %v1059, %v1061
  %v1074 = vsel %vm88, %v1061, %v1063
  %v1075 = vsel %vm88, %v1063, %v1065
  %v1076 = vsel %vm88, %v1065, %v1067
  %v1077 = vsel %vm88, %v1067, %v1069
  %v1078 = vsel %vm88, %v1069, %v1071
  %1087 = vst [vmem:[#allocation2 + $0x40] sm:$0xff] %v1072
  %1088 = vst [vmem:[#allocation2 + $0x48] sm:$0xff] %v1073
  %1089 = vst [vmem:[#allocation2 + $0x50] sm:$0xff] %v1074
  %1090 = vst [vmem:[#allocation2 + $0x58] sm:$0xff] %v1075
  %1091 = vst [vmem:[#allocation2 + $0x60] sm:$0xff] %v1076
  %1092 = vst [vmem:[#allocation2 + $0x68] sm:$0xff] %v1077
  %1093 = vst [vmem:[#allocation2 + $0x70] sm:$0xff] %v1078
  %1094 = vst.msk [vmem:[#allocation2 + $0x78] sm:$0xff] %vm1046, %v1071
  %1095 = vrot.lane.b32.xlu0 %v1030, 126
  %v1096 = vpop.permute.xlu0 %1095
  %1097 = vrot.lane.b32.xlu0 %v1031, 126
  %v1098 = vpop.permute.xlu0 %1097
  %1099 = vrot.lane.b32.xlu0 %v1032, 126
  %v1100 = vpop.permute.xlu0 %1099
  %1101 = vrot.lane.b32.xlu0 %v1033, 126
  %v1102 = vpop.permute.xlu0 %1101
  %1103 = vrot.lane.b32.xlu0 %v1034, 126
  %v1104 = vpop.permute.xlu0 %1103
  %1105 = vrot.lane.b32.xlu0 %v1035, 126
  %v1106 = vpop.permute.xlu0 %1105
  %1107 = vrot.lane.b32.xlu0 %v1036, 126
  %v1108 = vpop.permute.xlu0 %1107
  %1109 = vrot.lane.b32.xlu0 %v1037, 126
  %v1110 = vpop.permute.xlu0 %1109
  %v1111 = vsel %vm133, %v1096, %v1098
  %v1112 = vsel %vm133, %v1098, %v1100
  %v1113 = vsel %vm133, %v1100, %v1102
  %v1114 = vsel %vm133, %v1102, %v1104
  %v1115 = vsel %vm133, %v1104, %v1106
  %v1116 = vsel %vm133, %v1106, %v1108
  %v1117 = vsel %vm133, %v1108, %v1110
  %1126 = vst [vmem:[#allocation2 + $0x80] sm:$0xff] %v1111
  %1127 = vst [vmem:[#allocation2 + $0x88] sm:$0xff] %v1112
  %1128 = vst [vmem:[#allocation2 + $0x90] sm:$0xff] %v1113
  %1129 = vst [vmem:[#allocation2 + $0x98] sm:$0xff] %v1114
  %1130 = vst [vmem:[#allocation2 + $0xa0] sm:$0xff] %v1115
  %1131 = vst [vmem:[#allocation2 + $0xa8] sm:$0xff] %v1116
  %1132 = vst [vmem:[#allocation2 + $0xb0] sm:$0xff] %v1117
  %1133 = vst.msk [vmem:[#allocation2 + $0xb8] sm:$0xff] %vm1046, %v1110
  %1134 = vrot.lane.b32.xlu0 %v1030, 112
  %v1135 = vpop.permute.xlu0 %1134
  %1136 = vrot.lane.b32.xlu0 %v1031, 112
  %v1137 = vpop.permute.xlu0 %1136
  %1138 = vrot.lane.b32.xlu0 %v1032, 112
  %v1139 = vpop.permute.xlu0 %1138
  %1140 = vrot.lane.b32.xlu0 %v1033, 112
  %v1141 = vpop.permute.xlu0 %1140
  %1142 = vrot.lane.b32.xlu0 %v1034, 112
  %v1143 = vpop.permute.xlu0 %1142
  %1144 = vrot.lane.b32.xlu0 %v1035, 112
  %v1145 = vpop.permute.xlu0 %1144
  %1146 = vrot.lane.b32.xlu0 %v1036, 112
  %v1147 = vpop.permute.xlu0 %1146
  %1148 = vrot.lane.b32.xlu0 %v1037, 112
  %v1149 = vpop.permute.xlu0 %1148
  %v1150 = vsel %vm178, %v1135, %v1137
  %v1151 = vsel %vm178, %v1137, %v1139
  %v1152 = vsel %vm178, %v1139, %v1141
  %v1153 = vsel %vm178, %v1141, %v1143
  %v1154 = vsel %vm178, %v1143, %v1145
  %v1155 = vsel %vm178, %v1145, %v1147
  %v1156 = vsel %vm178, %v1147, %v1149
  %1165 = vst [vmem:[#allocation2 + $0xc0] sm:$0xff] %v1150
  %1166 = vst [vmem:[#allocation2 + $0xc8] sm:$0xff] %v1151
  %1167 = vst [vmem:[#allocation2 + $0xd0] sm:$0xff] %v1152
  %1168 = vst [vmem:[#allocation2 + $0xd8] sm:$0xff] %v1153
  %1169 = vst [vmem:[#allocation2 + $0xe0] sm:$0xff] %v1154
  %1170 = vst [vmem:[#allocation2 + $0xe8] sm:$0xff] %v1155
  %1171 = vst [vmem:[#allocation2 + $0xf0] sm:$0xff] %v1156
  %1172 = vst.msk [vmem:[#allocation2 + $0xf8] sm:$0xff] %vm1046, %v1149
  %1173 = vrot.lane.b32.xlu0 %v1030, 111
  %v1174 = vpop.permute.xlu0 %1173
  %1175 = vrot.lane.b32.xlu0 %v1031, 111
  %v1176 = vpop.permute.xlu0 %1175
  %1177 = vrot.lane.b32.xlu0 %v1032, 111
  %v1178 = vpop.permute.xlu0 %1177
  %1179 = vrot.lane.b32.xlu0 %v1033, 111
  %v1180 = vpop.permute.xlu0 %1179
  %1181 = vrot.lane.b32.xlu0 %v1034, 111
  %v1182 = vpop.permute.xlu0 %1181
  %1183 = vrot.lane.b32.xlu0 %v1035, 111
  %v1184 = vpop.permute.xlu0 %1183
  %1185 = vrot.lane.b32.xlu0 %v1036, 111
  %v1186 = vpop.permute.xlu0 %1185
  %1187 = vrot.lane.b32.xlu0 %v1037, 111
  %v1188 = vpop.permute.xlu0 %1187
  %v1189 = vsel %vm219, %v1174, %v1176
  %v1190 = vsel %vm219, %v1176, %v1178
  %v1191 = vsel %vm219, %v1178, %v1180
  %v1192 = vsel %vm219, %v1180, %v1182
  %v1193 = vsel %vm219, %v1182, %v1184
  %v1194 = vsel %vm219, %v1184, %v1186
  %v1195 = vsel %vm219, %v1186, %v1188
  %1204 = vst [vmem:[#allocation2 + $0x100] sm:$0xff] %v1189
  %1205 = vst [vmem:[#allocation2 + $0x108] sm:$0xff] %v1190
  %1206 = vst [vmem:[#allocation2 + $0x110] sm:$0xff] %v1191
  %1207 = vst [vmem:[#allocation2 + $0x118] sm:$0xff] %v1192
  %1208 = vst [vmem:[#allocation2 + $0x120] sm:$0xff] %v1193
  %1209 = vst [vmem:[#allocation2 + $0x128] sm:$0xff] %v1194
  %1210 = vst [vmem:[#allocation2 + $0x130] sm:$0xff] %v1195
  %1211 = vst.msk [vmem:[#allocation2 + $0x138] sm:$0xff] %vm1046, %v1188
  %1212 = vrot.lane.b32.xlu0 %v1030, 110
  %v1213 = vpop.permute.xlu0 %1212
  %1214 = vrot.lane.b32.xlu0 %v1031, 110
  %v1215 = vpop.permute.xlu0 %1214
  %1216 = vrot.lane.b32.xlu0 %v1032, 110
  %v1217 = vpop.permute.xlu0 %1216
  %1218 = vrot.lane.b32.xlu0 %v1033, 110
  %v1219 = vpop.permute.xlu0 %1218
  %1220 = vrot.lane.b32.xlu0 %v1034, 110
  %v1221 = vpop.permute.xlu0 %1220
  %1222 = vrot.lane.b32.xlu0 %v1035, 110
  %v1223 = vpop.permute.xlu0 %1222
  %1224 = vrot.lane.b32.xlu0 %v1036, 110
  %v1225 = vpop.permute.xlu0 %1224
  %1226 = vrot.lane.b32.xlu0 %v1037, 110
  %v1227 = vpop.permute.xlu0 %1226
  %v1228 = vsel %vm264, %v1213, %v1215
  %v1229 = vsel %vm264, %v1215, %v1217
  %v1230 = vsel %vm264, %v1217, %v1219
  %v1231 = vsel %vm264, %v1219, %v1221
  %v1232 = vsel %vm264, %v1221, %v1223
  %v1233 = vsel %vm264, %v1223, %v1225
  %v1234 = vsel %vm264, %v1225, %v1227
  %1243 = vst [vmem:[#allocation2 + $0x140] sm:$0xff] %v1228
  %1244 = vst [vmem:[#allocation2 + $0x148] sm:$0xff] %v1229
  %1245 = vst [vmem:[#allocation2 + $0x150] sm:$0xff] %v1230
  %1246 = vst [vmem:[#allocation2 + $0x158] sm:$0xff] %v1231
  %1247 = vst [vmem:[#allocation2 + $0x160] sm:$0xff] %v1232
  %1248 = vst [vmem:[#allocation2 + $0x168] sm:$0xff] %v1233
  %1249 = vst [vmem:[#allocation2 + $0x170] sm:$0xff] %v1234
  %1250 = vst.msk [vmem:[#allocation2 + $0x178] sm:$0xff] %vm1046, %v1227
  %1252 = vrot.lane.b32.xlu0 %v1030, 96
  %v1253 = vpop.permute.xlu0 %1252
  %1254 = vrot.lane.b32.xlu0 %v1031, 96
  %v1255 = vpop.permute.xlu0 %1254
  %1256 = vrot.lane.b32.xlu0 %v1032, 96
  %v1257 = vpop.permute.xlu0 %1256
  %1258 = vrot.lane.b32.xlu0 %v1033, 96
  %v1259 = vpop.permute.xlu0 %1258
  %1260 = vrot.lane.b32.xlu0 %v1034, 96
  %v1261 = vpop.permute.xlu0 %1260
  %1262 = vrot.lane.b32.xlu0 %v1035, 96
  %v1263 = vpop.permute.xlu0 %1262
  %1264 = vrot.lane.b32.xlu0 %v1036, 96
  %v1265 = vpop.permute.xlu0 %1264
  %1266 = vrot.lane.b32.xlu0 %v1037, 96
  %v1267 = vpop.permute.xlu0 %1266
  %1268 = vrot.lane.b32.xlu0 %v1038, 96
  %v1269 = vpop.permute.xlu0 %1268
  %v1270 = vsel %vm309, %v1253, %v1255
  %v1271 = vsel %vm309, %v1255, %v1257
  %v1272 = vsel %vm309, %v1257, %v1259
  %v1273 = vsel %vm309, %v1259, %v1261
  %v1274 = vsel %vm309, %v1261, %v1263
  %v1275 = vsel %vm309, %v1263, %v1265
  %v1276 = vsel %vm309, %v1265, %v1267
  %v1277 = vsel %vm309, %v1267, %v1269
  %1286 = vst [vmem:[#allocation2 + $0x180] sm:$0xff] %v1270
  %1287 = vst [vmem:[#allocation2 + $0x188] sm:$0xff] %v1271
  %1288 = vst [vmem:[#allocation2 + $0x190] sm:$0xff] %v1272
  %1289 = vst [vmem:[#allocation2 + $0x198] sm:$0xff] %v1273
  %1290 = vst [vmem:[#allocation2 + $0x1a0] sm:$0xff] %v1274
  %1291 = vst [vmem:[#allocation2 + $0x1a8] sm:$0xff] %v1275
  %1292 = vst [vmem:[#allocation2 + $0x1b0] sm:$0xff] %v1276
  %1293 = vst.msk [vmem:[#allocation2 + $0x1b8] sm:$0xff] %vm1046, %v1277
  %1294 = vrot.lane.b32.xlu0 %v1030, 95
  %v1295 = vpop.permute.xlu0 %1294
  %1296 = vrot.lane.b32.xlu0 %v1031, 95
  %v1297 = vpop.permute.xlu0 %1296
  %1298 = vrot.lane.b32.xlu0 %v1032, 95
  %v1299 = vpop.permute.xlu0 %1298
  %1300 = vrot.lane.b32.xlu0 %v1033, 95
  %v1301 = vpop.permute.xlu0 %1300
  %1302 = vrot.lane.b32.xlu0 %v1034, 95
  %v1303 = vpop.permute.xlu0 %1302
  %1304 = vrot.lane.b32.xlu0 %v1035, 95
  %v1305 = vpop.permute.xlu0 %1304
  %1306 = vrot.lane.b32.xlu0 %v1036, 95
  %v1307 = vpop.permute.xlu0 %1306
  %1308 = vrot.lane.b32.xlu0 %v1037, 95
  %v1309 = vpop.permute.xlu0 %1308
  %1310 = vrot.lane.b32.xlu0 %v1038, 95
  %v1311 = vpop.permute.xlu0 %1310
  %v1312 = vsel %vm354, %v1295, %v1297
  %v1313 = vsel %vm354, %v1297, %v1299
  %v1314 = vsel %vm354, %v1299, %v1301
  %v1315 = vsel %vm354, %v1301, %v1303
  %v1316 = vsel %vm354, %v1303, %v1305
  %v1317 = vsel %vm354, %v1305, %v1307
  %v1318 = vsel %vm354, %v1307, %v1309
  %v1319 = vsel %vm354, %v1309, %v1311
  %1328 = vst [vmem:[#allocation2 + $0x1c0] sm:$0xff] %v1312
  %1329 = vst [vmem:[#allocation2 + $0x1c8] sm:$0xff] %v1313
  %1330 = vst [vmem:[#allocation2 + $0x1d0] sm:$0xff] %v1314
  %1331 = vst [vmem:[#allocation2 + $0x1d8] sm:$0xff] %v1315
  %1332 = vst [vmem:[#allocation2 + $0x1e0] sm:$0xff] %v1316
  %1333 = vst [vmem:[#allocation2 + $0x1e8] sm:$0xff] %v1317
  %1334 = vst [vmem:[#allocation2 + $0x1f0] sm:$0xff] %v1318
  %1335 = vst.msk [vmem:[#allocation2 + $0x1f8] sm:$0xff] %vm1046, %v1319
  %1336 = vrot.lane.b32.xlu0 %v1030, 94
  %v1337 = vpop.permute.xlu0 %1336
  %1338 = vrot.lane.b32.xlu0 %v1031, 94
  %v1339 = vpop.permute.xlu0 %1338
  %1340 = vrot.lane.b32.xlu0 %v1032, 94
  %v1341 = vpop.permute.xlu0 %1340
  %1342 = vrot.lane.b32.xlu0 %v1033, 94
  %v1343 = vpop.permute.xlu0 %1342
  %1344 = vrot.lane.b32.xlu0 %v1034, 94
  %v1345 = vpop.permute.xlu0 %1344
  %1346 = vrot.lane.b32.xlu0 %v1035, 94
  %v1347 = vpop.permute.xlu0 %1346
  %1348 = vrot.lane.b32.xlu0 %v1036, 94
  %v1349 = vpop.permute.xlu0 %1348
  %1350 = vrot.lane.b32.xlu0 %v1037, 94
  %v1351 = vpop.permute.xlu0 %1350
  %1352 = vrot.lane.b32.xlu0 %v1038, 94
  %v1353 = vpop.permute.xlu0 %1352
  %v1354 = vsel %vm390, %v1337, %v1339
  %v1355 = vsel %vm390, %v1339, %v1341
  %v1356 = vsel %vm390, %v1341, %v1343
  %v1357 = vsel %vm390, %v1343, %v1345
  %v1358 = vsel %vm390, %v1345, %v1347
  %v1359 = vsel %vm390, %v1347, %v1349
  %v1360 = vsel %vm390, %v1349, %v1351
  %v1361 = vsel %vm390, %v1351, %v1353
  %1370 = vst [vmem:[#allocation2 + $0x200] sm:$0xff] %v1354
  %1371 = vst [vmem:[#allocation2 + $0x208] sm:$0xff] %v1355
  %1372 = vst [vmem:[#allocation2 + $0x210] sm:$0xff] %v1356
  %1373 = vst [vmem:[#allocation2 + $0x218] sm:$0xff] %v1357
  %1374 = vst [vmem:[#allocation2 + $0x220] sm:$0xff] %v1358
  %1375 = vst [vmem:[#allocation2 + $0x228] sm:$0xff] %v1359
  %1376 = vst [vmem:[#allocation2 + $0x230] sm:$0xff] %v1360
  %1377 = vst.msk [vmem:[#allocation2 + $0x238] sm:$0xff] %vm1046, %v1361
  %v1378 = vld [vmem:[%s6] sm:$0xff]
  %v1379 = vld [vmem:[%s6 + $0x8] sm:$0xff]
  %v1380 = vld [vmem:[%s6 + $0x10] sm:$0xff]
  %v1381 = vld [vmem:[%s6 + $0x18] sm:$0xff]
  %v1382 = vld [vmem:[#allocation2] sm:$0xff]
  %v1383 = vld [vmem:[#allocation2 + $0x8] sm:$0xff]
  %v1384 = vld [vmem:[#allocation2 + $0x10] sm:$0xff]
  %v1385 = vld [vmem:[#allocation2 + $0x18] sm:$0xff]
  %v1386 = vld [vmem:[#allocation2 + $0x20] sm:$0xff]
  %v1387 = vld [vmem:[#allocation2 + $0x28] sm:$0xff]
  %v1388 = vld [vmem:[#allocation2 + $0x30] sm:$0xff]
  %v1389 = vld [vmem:[#allocation2 + $0x38] sm:$0xff]
  %v1390 = vld [vmem:[#allocation2 + $0x40] sm:$0xff]
  %v1391 = vld [vmem:[#allocation2 + $0x48] sm:$0xff]
  %v1392 = vld [vmem:[#allocation2 + $0x50] sm:$0xff]
  %v1393 = vld [vmem:[#allocation2 + $0x58] sm:$0xff]
  %v1394 = vld [vmem:[#allocation2 + $0x60] sm:$0xff]
  %v1395 = vld [vmem:[#allocation2 + $0x68] sm:$0xff]
  %v1396 = vld [vmem:[#allocation2 + $0x70] sm:$0xff]
  %v1397 = vld [vmem:[#allocation2 + $0x78] sm:$0xff]
  %v1398 = vld [vmem:[#allocation2 + $0x80] sm:$0xff]
  %v1399 = vld [vmem:[#allocation2 + $0x88] sm:$0xff]
  %v1400 = vld [vmem:[#allocation2 + $0x90] sm:$0xff]
  %v1401 = vld [vmem:[#allocation2 + $0x98] sm:$0xff]
  %v1402 = vld [vmem:[#allocation2 + $0xa0] sm:$0xff]
  %v1403 = vld [vmem:[#allocation2 + $0xa8] sm:$0xff]
  %v1404 = vld [vmem:[#allocation2 + $0xb0] sm:$0xff]
  %v1405 = vld [vmem:[#allocation2 + $0xb8] sm:$0xff]
  %v1406 = vld [vmem:[#allocation2 + $0xc0] sm:$0xff]
  %v1407 = vld [vmem:[#allocation2 + $0xc8] sm:$0xff]
  %v1408 = vld [vmem:[#allocation2 + $0xd0] sm:$0xff]
  %v1409 = vld [vmem:[#allocation2 + $0xd8] sm:$0xff]
  %v1410 = vld [vmem:[#allocation2 + $0xe0] sm:$0xff]
  %v1411 = vld [vmem:[#allocation2 + $0xe8] sm:$0xff]
  %v1412 = vld [vmem:[#allocation2 + $0xf0] sm:$0xff]
  %v1413 = vld [vmem:[#allocation2 + $0xf8] sm:$0xff]
  %v1414 = vld [vmem:[#allocation2 + $0x100] sm:$0xff]
  %v1415 = vld [vmem:[#allocation2 + $0x108] sm:$0xff]
  %v1416 = vld [vmem:[#allocation2 + $0x110] sm:$0xff]
  %v1417 = vld [vmem:[#allocation2 + $0x118] sm:$0xff]
  %v1418 = vld [vmem:[#allocation2 + $0x120] sm:$0xff]
  %v1419 = vld [vmem:[#allocation2 + $0x128] sm:$0xff]
  %v1420 = vld [vmem:[#allocation2 + $0x130] sm:$0xff]
  %v1421 = vld [vmem:[#allocation2 + $0x138] sm:$0xff]
  %v1422 = vld [vmem:[#allocation2 + $0x140] sm:$0xff]
  %v1423 = vld [vmem:[#allocation2 + $0x148] sm:$0xff]
  %v1424 = vld [vmem:[#allocation2 + $0x150] sm:$0xff]
  %v1425 = vld [vmem:[#allocation2 + $0x158] sm:$0xff]
  %v1426 = vld [vmem:[#allocation2 + $0x160] sm:$0xff]
  %v1427 = vld [vmem:[#allocation2 + $0x168] sm:$0xff]
  %v1428 = vld [vmem:[#allocation2 + $0x170] sm:$0xff]
  %v1429 = vld [vmem:[#allocation2 + $0x178] sm:$0xff]
  %v1430 = vld [vmem:[#allocation2 + $0x180] sm:$0xff]
  %v1431 = vld [vmem:[#allocation2 + $0x188] sm:$0xff]
  %v1432 = vld [vmem:[#allocation2 + $0x190] sm:$0xff]
  %v1433 = vld [vmem:[#allocation2 + $0x198] sm:$0xff]
  %v1434 = vld [vmem:[#allocation2 + $0x1a0] sm:$0xff]
  %v1435 = vld [vmem:[#allocation2 + $0x1a8] sm:$0xff]
  %v1436 = vld [vmem:[#allocation2 + $0x1b0] sm:$0xff]
  %v1437 = vld [vmem:[#allocation2 + $0x1b8] sm:$0xff]
  %v1438 = vld [vmem:[#allocation2 + $0x1c0] sm:$0xff]
  %v1439 = vld [vmem:[#allocation2 + $0x1c8] sm:$0xff]
  %v1440 = vld [vmem:[#allocation2 + $0x1d0] sm:$0xff]
  %v1441 = vld [vmem:[#allocation2 + $0x1d8] sm:$0xff]
  %v1442 = vld [vmem:[#allocation2 + $0x1e0] sm:$0xff]
  %v1443 = vld [vmem:[#allocation2 + $0x1e8] sm:$0xff]
  %v1444 = vld [vmem:[#allocation2 + $0x1f0] sm:$0xff]
  %v1445 = vld [vmem:[#allocation2 + $0x1f8] sm:$0xff]
  %v1446 = vld [vmem:[#allocation2 + $0x200] sm:$0xff]
  %v1447 = vld [vmem:[#allocation2 + $0x208] sm:$0xff]
  %v1448 = vld [vmem:[#allocation2 + $0x210] sm:$0xff]
  %v1449 = vld [vmem:[#allocation2 + $0x218] sm:$0xff]
  %v1450 = vld [vmem:[#allocation2 + $0x220] sm:$0xff]
  %v1451 = vld [vmem:[#allocation2 + $0x228] sm:$0xff]
  %v1452 = vld [vmem:[#allocation2 + $0x230] sm:$0xff]
  %v1453 = vld [vmem:[#allocation2 + $0x238] sm:$0xff]
  %v1454 = vld [vmem:[%s8] sm:$0xff]
  %v1455 = vld [vmem:[%s8 + $0x8] sm:$0xff]
  %v1456 = vld [vmem:[%s8 + $0x10] sm:$0xff]
  %v1457 = vld [vmem:[%s8 + $0x18] sm:$0xff]
  %1459 = vset.pattern.permute.xlu0 0
  %1460 = vperm.xlu0 %1459, %v1454
  %v1461 = vpop.permute.xlu0 %1460
  %1464 = vset.pattern.permute.xlu0 0
  %1465 = vperm.xlu0 %1464, %v1455
  %v1466 = vpop.permute.xlu0 %1465
  %1469 = vset.pattern.permute.xlu0 0
  %1470 = vperm.xlu0 %1469, %v1456
  %v1471 = vpop.permute.xlu0 %1470
  %1474 = vset.pattern.permute.xlu0 0
  %1475 = vperm.xlu0 %1474, %v1457
  %v1476 = vpop.permute.xlu0 %1475
  %vm1478 = vcmask 588800
  %v1480 = vsel %vm1478, %v1378, 0
  %v1483 = vsel %vm1478, %v1379, 0
  %v1486 = vsel %vm1478, %v1380, 0
  %v1489 = vsel %vm1478, %v1381, 0
  %1491 = vmatprep.subr.mxu0 %v1383
  %1492 = vmatpush1.msra.mxu0 %v1382
  %1493 = vmatprep.subr.mxu0 %v1391
  %1494 = vmatpush1.msra.mxu0 %v1390
  %1495 = vmatprep.subr.mxu0 %v1399
  %1496 = vmatpush1.msra.mxu0 %v1398
  %1497 = vmatprep.subr.mxu0 %v1407
  %1498 = vmatpush1.msra.mxu0 %v1406
  %1499 = vmatprep.subr.mxu0 %v1415
  %1500 = vmatpush1.msra.mxu0 %v1414
  %1501 = vmatprep.subr.mxu0 %v1423
  %1502 = vmatpush1.msra.mxu0 %v1422
  %1503 = vmatprep.subr.mxu0 %v1431
  %1504 = vmatpush1.msra.mxu0 %v1430
  %1505 = vmatprep.subr.mxu0 %v1439
  %1506 = vmatpush1.msra.mxu0 %v1438
  %1507 = vmatprep.subr.mxu0 %v1447
  %1508 = vmatpush1.msra.mxu0 %v1446
  %1509 = vmatprep.subr.mxu0 0.0
  %1510 = vmatpush1.msra.mxu0 0.0
  %1511 = vmatprep.subr.mxu0 0.0
  %1512 = vmatpush1.msra.mxu0 0.0
  %1513 = vmatprep.subr.mxu0 0.0
  %1514 = vmatpush1.msra.mxu0 0.0
  %1515 = vmatprep.subr.mxu0 0.0
  %1516 = vmatpush1.msra.mxu0 0.0
  %1517 = vmatprep.subr.mxu0 0.0
  %1518 = vmatpush1.msra.mxu0 0.0
  %1519 = vmatprep.subr.mxu0 0.0
  %1520 = vmatpush1.msra.mxu0 0.0
  %1521 = vmatprep.subr.mxu0 0.0
  %1522 = vmatpush1.msra.mxu0 0.0
  %1523 = vmatprep.subr.mxu0 0.0
  %1524 = vmatpush1.msra.mxu0 0.0
  %1525 = vmatprep.subr.mxu0 0.0
  %1526 = vmatpush1.msra.mxu0 0.0
  %1527 = vmatprep.subr.mxu0 0.0
  %1528 = vmatpush1.msra.mxu0 0.0
  %1529 = vmatprep.subr.mxu0 0.0
  %1530 = vmatpush1.msra.mxu0 0.0
  %1531 = vmatprep.subr.mxu0 0.0
  %1532 = vmatpush1.msra.mxu0 0.0
  %1533 = vmatprep.subr.mxu0 0.0
  %1534 = vmatpush1.msra.mxu0 0.0
  %1535 = vmatprep.subr.mxu0 0.0
  %1536 = vmatpush1.msra.mxu0 0.0
  %1537 = vmatprep.subr.mxu0 0.0
  %1538 = vmatpush1.msra.mxu0 0.0
  %1539 = vmatprep.subr.mxu0 0.0
  %1540 = vmatpush1.msra.mxu0 0.0
  %1541 = vmatprep.subr.mxu0 0.0
  %1542 = vmatpush1.msra.mxu0 0.0
  %1543 = vmatprep.subr.mxu0 0.0
  %1544 = vmatpush1.msra.mxu0 0.0
  %1545 = vmatprep.subr.mxu0 0.0
  %1546 = vmatpush1.msra.mxu0 0.0
  %1547 = vmatprep.subr.mxu0 0.0
  %1548 = vmatpush1.msra.mxu0 0.0
  %1549 = vmatprep.subr.mxu0 0.0
  %1550 = vmatpush1.msra.mxu0 0.0
  %1551 = vmatprep.subr.mxu0 0.0
  %1552 = vmatpush1.msra.mxu0 0.0
  %1553 = vmatprep.subr.mxu0 0.0
  %1554 = vmatpush1.msra.mxu0 0.0
  %1555 = vmatprep.mubr.f32.mxu0 0.0
  %1556 = vmatmul.mubr.f32.gmra.mrb[0].mxu0 %v1480
  %v1557 = vpop.f32.mrb[0].mxu0
  %v1558 = vadd.f32 %v1461, %v1557
  %v1559 = vpop.f32.mrb[0].mxu0
  %v1560 = vadd.f32 %v1461, %v1559
  %1561 = vmatprep.mubr.f32.mxu0 0.0
  %1562 = vmatmul.mubr.f32.gmra.mrb[0].mxu0 %v1483
  %v1563 = vpop.f32.mrb[0].mxu0
  %v1564 = vadd.f32 %v1466, %v1563
  %v1565 = vpop.f32.mrb[0].mxu0
  %v1566 = vadd.f32 %v1466, %v1565
  %1567 = vmatprep.mubr.f32.mxu0 0.0
  %1568 = vmatmul.mubr.f32.gmra.mrb[0].mxu0 %v1486
  %v1569 = vpop.f32.mrb[0].mxu0
  %v1570 = vadd.f32 %v1471, %v1569
  %v1571 = vpop.f32.mrb[0].mxu0
  %v1572 = vadd.f32 %v1471, %v1571
  %1573 = vmatprep.mubr.f32.mxu0 0.0
  %1574 = vmatmul.mubr.f32.gmra.mrb[0].mxu0 %v1489
  %v1575 = vpop.f32.mrb[0].mxu0
  %v1576 = vadd.f32 %v1476, %v1575
  %v1577 = vpop.f32.mrb[0].mxu0
  %v1578 = vadd.f32 %v1476, %v1577
  %1579 = vdwg.mxu0
  %1580 = vmatprep.subr.mxu0 %v1385
  %1581 = vmatpush1.msra.mxu0 %v1384
  %1582 = vmatprep.subr.mxu0 %v1393
  %1583 = vmatpush1.msra.mxu0 %v1392
  %1584 = vmatprep.subr.mxu0 %v1401
  %1585 = vmatpush1.msra.mxu0 %v1400
  %1586 = vmatprep.subr.mxu0 %v1409
  %1587 = vmatpush1.msra.mxu0 %v1408
  %1588 = vmatprep.subr.mxu0 %v1417
  %1589 = vmatpush1.msra.mxu0 %v1416
  %1590 = vmatprep.subr.mxu0 %v1425
  %1591 = vmatpush1.msra.mxu0 %v1424
  %1592 = vmatprep.subr.mxu0 %v1433
  %1593 = vmatpush1.msra.mxu0 %v1432
  %1594 = vmatprep.subr.mxu0 %v1441
  %1595 = vmatpush1.msra.mxu0 %v1440
  %1596 = vmatprep.subr.mxu0 %v1449
  %1597 = vmatpush1.msra.mxu0 %v1448
  %1598 = vmatprep.subr.mxu0 0.0
  %1599 = vmatpush1.msra.mxu0 0.0
  %1600 = vmatprep.subr.mxu0 0.0
  %1601 = vmatpush1.msra.mxu0 0.0
  %1602 = vmatprep.subr.mxu0 0.0
  %1603 = vmatpush1.msra.mxu0 0.0
  %1604 = vmatprep.subr.mxu0 0.0
  %1605 = vmatpush1.msra.mxu0 0.0
  %1606 = vmatprep.subr.mxu0 0.0
  %1607 = vmatpush1.msra.mxu0 0.0
  %1608 = vmatprep.subr.mxu0 0.0
  %1609 = vmatpush1.msra.mxu0 0.0
  %1610 = vmatprep.subr.mxu0 0.0
  %1611 = vmatpush1.msra.mxu0 0.0
  %1612 = vmatprep.subr.mxu0 0.0
  %1613 = vmatpush1.msra.mxu0 0.0
  %1614 = vmatprep.subr.mxu0 0.0
  %1615 = vmatpush1.msra.mxu0 0.0
  %1616 = vmatprep.subr.mxu0 0.0
  %1617 = vmatpush1.msra.mxu0 0.0
  %1618 = vmatprep.subr.mxu0 0.0
  %1619 = vmatpush1.msra.mxu0 0.0
  %1620 = vmatprep.subr.mxu0 0.0
  %1621 = vmatpush1.msra.mxu0 0.0
  %1622 = vmatprep.subr.mxu0 0.0
  %1623 = vmatpush1.msra.mxu0 0.0
  %1624 = vmatprep.subr.mxu0 0.0
  %1625 = vmatpush1.msra.mxu0 0.0
  %1626 = vmatprep.subr.mxu0 0.0
  %1627 = vmatpush1.msra.mxu0 0.0
  %1628 = vmatprep.subr.mxu0 0.0
  %1629 = vmatpush1.msra.mxu0 0.0
  %1630 = vmatprep.subr.mxu0 0.0
  %1631 = vmatpush1.msra.mxu0 0.0
  %1632 = vmatprep.subr.mxu0 0.0
  %1633 = vmatpush1.msra.mxu0 0.0
  %1634 = vmatprep.subr.mxu0 0.0
  %1635 = vmatpush1.msra.mxu0 0.0
  %1636 = vmatprep.subr.mxu0 0.0
  %1637 = vmatpush1.msra.mxu0 0.0
  %1638 = vmatprep.subr.mxu0 0.0
  %1639 = vmatpush1.msra.mxu0 0.0
  %1640 = vmatprep.subr.mxu0 0.0
  %1641 = vmatpush1.msra.mxu0 0.0
  %1642 = vmatprep.subr.mxu0 0.0
  %1643 = vmatpush1.msra.mxu0 0.0
  %1644 = vmatprep.mubr.f32.mxu0 0.0
  %1645 = vmatmul.mubr.f32.gmra.mrb[0].mxu0 %v1480
  %v1646 = vpop.f32.mrb[0].mxu0
  %v1647 = vadd.f32 %v1461, %v1646
  %v1648 = vpop.f32.mrb[0].mxu0
  %v1649 = vadd.f32 %v1461, %v1648
  %1650 = vmatprep.mubr.f32.mxu0 0.0
  %1651 = vmatmul.mubr.f32.gmra.mrb[0].mxu0 %v1483
  %v1652 = vpop.f32.mrb[0].mxu0
  %v1653 = vadd.f32 %v1466, %v1652
  %v1654 = vpop.f32.mrb[0].mxu0
  %v1655 = vadd.f32 %v1466, %v1654
  %1656 = vmatprep.mubr.f32.mxu0 0.0
  %1657 = vmatmul.mubr.f32.gmra.mrb[0].mxu0 %v1486
  %v1658 = vpop.f32.mrb[0].mxu0
  %v1659 = vadd.f32 %v1471, %v1658
  %v1660 = vpop.f32.mrb[0].mxu0
  %v1661 = vadd.f32 %v1471, %v1660
  %1662 = vmatprep.mubr.f32.mxu0 0.0
  %1663 = vmatmul.mubr.f32.gmra.mrb[0].mxu0 %v1489
  %v1664 = vpop.f32.mrb[0].mxu0
  %v1665 = vadd.f32 %v1476, %v1664
  %v1666 = vpop.f32.mrb[0].mxu0
  %v1667 = vadd.f32 %v1476, %v1666
  %1668 = vdwg.mxu0
  %1669 = vmatprep.subr.mxu0 %v1387
  %1670 = vmatpush1.msra.mxu0 %v1386
  %1671 = vmatprep.subr.mxu0 %v1395
  %1672 = vmatpush1.msra.mxu0 %v1394
  %1673 = vmatprep.subr.mxu0 %v1403
  %1674 = vmatpush1.msra.mxu0 %v1402
  %1675 = vmatprep.subr.mxu0 %v1411
  %1676 = vmatpush1.msra.mxu0 %v1410
  %1677 = vmatprep.subr.mxu0 %v1419
  %1678 = vmatpush1.msra.mxu0 %v1418
  %1679 = vmatprep.subr.mxu0 %v1427
  %1680 = vmatpush1.msra.mxu0 %v1426
  %1681 = vmatprep.subr.mxu0 %v1435
  %1682 = vmatpush1.msra.mxu0 %v1434
  %1683 = vmatprep.subr.mxu0 %v1443
  %1684 = vmatpush1.msra.mxu0 %v1442
  %1685 = vmatprep.subr.mxu0 %v1451
  %1686 = vmatpush1.msra.mxu0 %v1450
  %1687 = vmatprep.subr.mxu0 0.0
  %1688 = vmatpush1.msra.mxu0 0.0
  %1689 = vmatprep.subr.mxu0 0.0
  %1690 = vmatpush1.msra.mxu0 0.0
  %1691 = vmatprep.subr.mxu0 0.0
  %1692 = vmatpush1.msra.mxu0 0.0
  %1693 = vmatprep.subr.mxu0 0.0
  %1694 = vmatpush1.msra.mxu0 0.0
  %1695 = vmatprep.subr.mxu0 0.0
  %1696 = vmatpush1.msra.mxu0 0.0
  %1697 = vmatprep.subr.mxu0 0.0
  %1698 = vmatpush1.msra.mxu0 0.0
  %1699 = vmatprep.subr.mxu0 0.0
  %1700 = vmatpush1.msra.mxu0 0.0
  %1701 = vmatprep.subr.mxu0 0.0
  %1702 = vmatpush1.msra.mxu0 0.0
  %1703 = vmatprep.subr.mxu0 0.0
  %1704 = vmatpush1.msra.mxu0 0.0
  %1705 = vmatprep.subr.mxu0 0.0
  %1706 = vmatpush1.msra.mxu0 0.0
  %1707 = vmatprep.subr.mxu0 0.0
  %1708 = vmatpush1.msra.mxu0 0.0
  %1709 = vmatprep.subr.mxu0 0.0
  %1710 = vmatpush1.msra.mxu0 0.0
  %1711 = vmatprep.subr.mxu0 0.0
  %1712 = vmatpush1.msra.mxu0 0.0
  %1713 = vmatprep.subr.mxu0 0.0
  %1714 = vmatpush1.msra.mxu0 0.0
  %1715 = vmatprep.subr.mxu0 0.0
  %1716 = vmatpush1.msra.mxu0 0.0
  %1717 = vmatprep.subr.mxu0 0.0
  %1718 = vmatpush1.msra.mxu0 0.0
  %1719 = vmatprep.subr.mxu0 0.0
  %1720 = vmatpush1.msra.mxu0 0.0
  %1721 = vmatprep.subr.mxu0 0.0
  %1722 = vmatpush1.msra.mxu0 0.0
  %1723 = vmatprep.subr.mxu0 0.0
  %1724 = vmatpush1.msra.mxu0 0.0
  %1725 = vmatprep.subr.mxu0 0.0
  %1726 = vmatpush1.msra.mxu0 0.0
  %1727 = vmatprep.subr.mxu0 0.0
  %1728 = vmatpush1.msra.mxu0 0.0
  %1729 = vmatprep.subr.mxu0 0.0
  %1730 = vmatpush1.msra.mxu0 0.0
  %1731 = vmatprep.subr.mxu0 0.0
  %1732 = vmatpush1.msra.mxu0 0.0
  %1733 = vmatprep.mubr.f32.mxu0 0.0
  %1734 = vmatmul.mubr.f32.gmra.mrb[0].mxu0 %v1480
  %v1735 = vpop.f32.mrb[0].mxu0
  %v1736 = vadd.f32 %v1461, %v1735
  %v1737 = vpop.f32.mrb[0].mxu0
  %v1738 = vadd.f32 %v1461, %v1737
  %1739 = vmatprep.mubr.f32.mxu0 0.0
  %1740 = vmatmul.mubr.f32.gmra.mrb[0].mxu0 %v1483
  %v1741 = vpop.f32.mrb[0].mxu0
  %v1742 = vadd.f32 %v1466, %v1741
  %v1743 = vpop.f32.mrb[0].mxu0
  %v1744 = vadd.f32 %v1466, %v1743
  %1745 = vmatprep.mubr.f32.mxu0 0.0
  %1746 = vmatmul.mubr.f32.gmra.mrb[0].mxu0 %v1486
  %v1747 = vpop.f32.mrb[0].mxu0
  %v1748 = vadd.f32 %v1471, %v1747
  %v1749 = vpop.f32.mrb[0].mxu0
  %v1750 = vadd.f32 %v1471, %v1749
  %1751 = vmatprep.mubr.f32.mxu0 0.0
  %1752 = vmatmul.mubr.f32.gmra.mrb[0].mxu0 %v1489
  %v1753 = vpop.f32.mrb[0].mxu0
  %v1754 = vadd.f32 %v1476, %v1753
  %v1755 = vpop.f32.mrb[0].mxu0
  %v1756 = vadd.f32 %v1476, %v1755
  %1757 = vdwg.mxu0
  %1758 = vmatprep.subr.mxu0 %v1389
  %1759 = vmatpush1.msra.mxu0 %v1388
  %1760 = vmatprep.subr.mxu0 %v1397
  %1761 = vmatpush1.msra.mxu0 %v1396
  %1762 = vmatprep.subr.mxu0 %v1405
  %1763 = vmatpush1.msra.mxu0 %v1404
  %1764 = vmatprep.subr.mxu0 %v1413
  %1765 = vmatpush1.msra.mxu0 %v1412
  %1766 = vmatprep.subr.mxu0 %v1421
  %1767 = vmatpush1.msra.mxu0 %v1420
  %1768 = vmatprep.subr.mxu0 %v1429
  %1769 = vmatpush1.msra.mxu0 %v1428
  %1770 = vmatprep.subr.mxu0 %v1437
  %1771 = vmatpush1.msra.mxu0 %v1436
  %1772 = vmatprep.subr.mxu0 %v1445
  %1773 = vmatpush1.msra.mxu0 %v1444
  %1774 = vmatprep.subr.mxu0 %v1453
  %1775 = vmatpush1.msra.mxu0 %v1452
  %1776 = vmatprep.subr.mxu0 0.0
  %1777 = vmatpush1.msra.mxu0 0.0
  %1778 = vmatprep.subr.mxu0 0.0
  %1779 = vmatpush1.msra.mxu0 0.0
  %1780 = vmatprep.subr.mxu0 0.0
  %1781 = vmatpush1.msra.mxu0 0.0
  %1782 = vmatprep.subr.mxu0 0.0
  %1783 = vmatpush1.msra.mxu0 0.0
  %1784 = vmatprep.subr.mxu0 0.0
  %1785 = vmatpush1.msra.mxu0 0.0
  %1786 = vmatprep.subr.mxu0 0.0
  %1787 = vmatpush1.msra.mxu0 0.0
  %1788 = vmatprep.subr.mxu0 0.0
  %1789 = vmatpush1.msra.mxu0 0.0
  %1790 = vmatprep.subr.mxu0 0.0
  %1791 = vmatpush1.msra.mxu0 0.0
  %1792 = vmatprep.subr.mxu0 0.0
  %1793 = vmatpush1.msra.mxu0 0.0
  %1794 = vmatprep.subr.mxu0 0.0
  %1795 = vmatpush1.msra.mxu0 0.0
  %1796 = vmatprep.subr.mxu0 0.0
  %1797 = vmatpush1.msra.mxu0 0.0
  %1798 = vmatprep.subr.mxu0 0.0
  %1799 = vmatpush1.msra.mxu0 0.0
  %1800 = vmatprep.subr.mxu0 0.0
  %1801 = vmatpush1.msra.mxu0 0.0
  %1802 = vmatprep.subr.mxu0 0.0
  %1803 = vmatpush1.msra.mxu0 0.0
  %1804 = vmatprep.subr.mxu0 0.0
  %1805 = vmatpush1.msra.mxu0 0.0
  %1806 = vmatprep.subr.mxu0 0.0
  %1807 = vmatpush1.msra.mxu0 0.0
  %1808 = vmatprep.subr.mxu0 0.0
  %1809 = vmatpush1.msra.mxu0 0.0
  %1810 = vmatprep.subr.mxu0 0.0
  %1811 = vmatpush1.msra.mxu0 0.0
  %1812 = vmatprep.subr.mxu0 0.0
  %1813 = vmatpush1.msra.mxu0 0.0
  %1814 = vmatprep.subr.mxu0 0.0
  %1815 = vmatpush1.msra.mxu0 0.0
  %1816 = vmatprep.subr.mxu0 0.0
  %1817 = vmatpush1.msra.mxu0 0.0
  %1818 = vmatprep.subr.mxu0 0.0
  %1819 = vmatpush1.msra.mxu0 0.0
  %1820 = vmatprep.subr.mxu0 0.0
  %1821 = vmatpush1.msra.mxu0 0.0
  %1822 = vmatprep.mubr.f32.mxu0 0.0
  %1823 = vmatmul.mubr.f32.gmra.mrb[0].mxu0 %v1480
  %v1824 = vpop.f32.mrb[0].mxu0
  %v1825 = vadd.f32 %v1461, %v1824
  %v1826 = vpop.f32.mrb[0].mxu0
  %v1827 = vadd.f32 %v1461, %v1826
  %1828 = vmatprep.mubr.f32.mxu0 0.0
  %1829 = vmatmul.mubr.f32.gmra.mrb[0].mxu0 %v1483
  %v1830 = vpop.f32.mrb[0].mxu0
  %v1831 = vadd.f32 %v1466, %v1830
  %v1832 = vpop.f32.mrb[0].mxu0
  %v1833 = vadd.f32 %v1466, %v1832
  %1834 = vmatprep.mubr.f32.mxu0 0.0
  %1835 = vmatmul.mubr.f32.gmra.mrb[0].mxu0 %v1486
  %v1836 = vpop.f32.mrb[0].mxu0
  %v1837 = vadd.f32 %v1471, %v1836
  %v1838 = vpop.f32.mrb[0].mxu0
  %v1839 = vadd.f32 %v1471, %v1838
  %1840 = vmatprep.mubr.f32.mxu0 0.0
  %1841 = vmatmul.mubr.f32.gmra.mrb[0].mxu0 %v1489
  %v1842 = vpop.f32.mrb[0].mxu0
  %v1843 = vadd.f32 %v1476, %v1842
  %v1844 = vpop.f32.mrb[0].mxu0
  %v1845 = vadd.f32 %v1476, %v1844
  %1846 = vdwg.mxu0
  %1847 = vst [vmem:[#allocation3] sm:$0xff] %v1558
  %1848 = vst [vmem:[#allocation3 + $0x8] sm:$0xff] %v1560
  %1849 = vst [vmem:[#allocation3 + $0x10] sm:$0xff] %v1647
  %1850 = vst [vmem:[#allocation3 + $0x18] sm:$0xff] %v1649
  %1851 = vst [vmem:[#allocation3 + $0x20] sm:$0xff] %v1736
  %1852 = vst [vmem:[#allocation3 + $0x28] sm:$0xff] %v1738
  %1853 = vst [vmem:[#allocation3 + $0x30] sm:$0xff] %v1825
  %1854 = vst.msk [vmem:[#allocation3 + $0x38] sm:$0xff] %vm1046, %v1827
  %1855 = vst [vmem:[#allocation3 + $0x40] sm:$0xff] %v1564
  %1856 = vst [vmem:[#allocation3 + $0x48] sm:$0xff] %v1566
  %1857 = vst [vmem:[#allocation3 + $0x50] sm:$0xff] %v1653
  %1858 = vst [vmem:[#allocation3 + $0x58] sm:$0xff] %v1655
  %1859 = vst [vmem:[#allocation3 + $0x60] sm:$0xff] %v1742
  %1860 = vst [vmem:[#allocation3 + $0x68] sm:$0xff] %v1744
  %1861 = vst [vmem:[#allocation3 + $0x70] sm:$0xff] %v1831
  %1862 = vst.msk [vmem:[#allocation3 + $0x78] sm:$0xff] %vm1046, %v1833
  %1863 = vst [vmem:[#allocation3 + $0x80] sm:$0xff] %v1570
  %1864 = vst [vmem:[#allocation3 + $0x88] sm:$0xff] %v1572
  %1865 = vst [vmem:[#allocation3 + $0x90] sm:$0xff] %v1659
  %1866 = vst [vmem:[#allocation3 + $0x98] sm:$0xff] %v1661
  %1867 = vst [vmem:[#allocation3 + $0xa0] sm:$0xff] %v1748
  %1868 = vst [vmem:[#allocation3 + $0xa8] sm:$0xff] %v1750
  %1869 = vst [vmem:[#allocation3 + $0xb0] sm:$0xff] %v1837
  %1870 = vst.msk [vmem:[#allocation3 + $0xb8] sm:$0xff] %vm1046, %v1839
  %1871 = vst [vmem:[#allocation3 + $0xc0] sm:$0xff] %v1576
  %1872 = vst [vmem:[#allocation3 + $0xc8] sm:$0xff] %v1578
  %1873 = vst [vmem:[#allocation3 + $0xd0] sm:$0xff] %v1665
  %1874 = vst [vmem:[#allocation3 + $0xd8] sm:$0xff] %v1667
  %1875 = vst [vmem:[#allocation3 + $0xe0] sm:$0xff] %v1754
  %1876 = vst [vmem:[#allocation3 + $0xe8] sm:$0xff] %v1756
  %1877 = vst [vmem:[#allocation3 + $0xf0] sm:$0xff] %v1843
  %1878 = vst.msk [vmem:[#allocation3 + $0xf8] sm:$0xff] %vm1046, %v1845
  %1879 = vst [vmem:[#allocation4] sm:$0xff] 0.0
  %1880 = vst [vmem:[#allocation4 + $0x8] sm:$0xff] 0.0
  %1881 = vst [vmem:[#allocation4 + $0x10] sm:$0xff] 0.0
  %1882 = vst [vmem:[#allocation4 + $0x18] sm:$0xff] 0.0
  %1883 = vst [vmem:[#allocation4 + $0x20] sm:$0xff] 0.0
  %1884 = vst [vmem:[#allocation4 + $0x28] sm:$0xff] 0.0
  %1885 = vst [vmem:[#allocation4 + $0x30] sm:$0xff] 0.0
  %1886 = vst [vmem:[#allocation4 + $0x38] sm:$0xff] 0.0
  %1887 = vst [vmem:[#allocation4 + $0x40] sm:$0xff] 0.0
  %1888 = vst [vmem:[#allocation4 + $0x48] sm:$0xff] 0.0
  %vm1889 = vcmask 80896
  %1890 = vst.msk [vmem:[#allocation4 + $0x50] sm:$0xff] %vm1889, 0.0
  %v1891 = vld [vmem:[%s11] sm:$0x3]
  %v1892 = vld [vmem:[#allocation4] sm:$0xff]
  %v1893 = vld [vmem:[#allocation4 + $0x8] sm:$0xff]
  %1894 = vst [vmem:[#allocation5] sm:$0xff] %v1892
  %1895 = vst.msk [vmem:[#allocation5 + $0x8] sm:$0xff] %vm309, %v1893
  %v1896 = vld [vmem:[#allocation4] sm:$0xff]
  %v1897 = vld [vmem:[#allocation4 + $0x8] sm:$0xff]
  %1900 = vrot.lane.b32.xlu0 %v1896, 127
  %v1901 = vpop.permute.xlu0 %1900
  %1902 = vrot.lane.b32.xlu0 %v1897, 127
  %v1903 = vpop.permute.xlu0 %1902
  %v1904 = vsel %vm88, %v1901, %v1903
  %1907 = vst [vmem:[#allocation5 + $0x10] sm:$0xff] %v1904
  %1908 = vst.msk [vmem:[#allocation5 + $0x18] sm:$0xff] %vm309, %v1903
  %v1909 = vld [vmem:[#allocation4] sm:$0xff]
  %v1910 = vld [vmem:[#allocation4 + $0x8] sm:$0xff]
  %1913 = vrot.lane.b32.xlu0 %v1909, 126
  %v1914 = vpop.permute.xlu0 %1913
  %1915 = vrot.lane.b32.xlu0 %v1910, 126
  %v1916 = vpop.permute.xlu0 %1915
  %v1917 = vsel %vm133, %v1914, %v1916
  %1920 = vst [vmem:[#allocation5 + $0x20] sm:$0xff] %v1917
  %1921 = vst.msk [vmem:[#allocation5 + $0x28] sm:$0xff] %vm309, %v1916
  %v1922 = vld [vmem:[#allocation4] sm:$0xff]
  %v1923 = vld [vmem:[#allocation4 + $0x8] sm:$0xff]
  %1926 = vrot.lane.b32.xlu0 %v1922, 112
  %v1927 = vpop.permute.xlu0 %1926
  %1928 = vrot.lane.b32.xlu0 %v1923, 112
  %v1929 = vpop.permute.xlu0 %1928
  %v1930 = vsel %vm178, %v1927, %v1929
  %1933 = vst [vmem:[#allocation5 + $0x30] sm:$0xff] %v1930
  %1934 = vst.msk [vmem:[#allocation5 + $0x38] sm:$0xff] %vm309, %v1929
  %v1935 = vld [vmem:[#allocation4] sm:$0xff]
  %v1936 = vld [vmem:[#allocation4 + $0x8] sm:$0xff]
  %1939 = vrot.lane.b32.xlu0 %v1935, 111
  %v1940 = vpop.permute.xlu0 %1939
  %1941 = vrot.lane.b32.xlu0 %v1936, 111
  %v1942 = vpop.permute.xlu0 %1941
  %v1943 = vsel %vm219, %v1940, %v1942
  %1946 = vst [vmem:[#allocation5 + $0x40] sm:$0xff] %v1943
  %1947 = vst.msk [vmem:[#allocation5 + $0x48] sm:$0xff] %vm309, %v1942
  %v1948 = vld [vmem:[#allocation4] sm:$0xff]
  %v1949 = vld [vmem:[#allocation4 + $0x8] sm:$0xff]
  %1952 = vrot.lane.b32.xlu0 %v1948, 110
  %v1953 = vpop.permute.xlu0 %1952
  %1954 = vrot.lane.b32.xlu0 %v1949, 110
  %v1955 = vpop.permute.xlu0 %1954
  %v1956 = vsel %vm264, %v1953, %v1955
  %1959 = vst [vmem:[#allocation5 + $0x50] sm:$0xff] %v1956
  %1960 = vst.msk [vmem:[#allocation5 + $0x58] sm:$0xff] %vm309, %v1955
  %v1961 = vld [vmem:[#allocation4] sm:$0xff]
  %v1962 = vld [vmem:[#allocation4 + $0x8] sm:$0xff]
  %1965 = vrot.lane.b32.xlu0 %v1961, 96
  %v1966 = vpop.permute.xlu0 %1965
  %1967 = vrot.lane.b32.xlu0 %v1962, 96
  %v1968 = vpop.permute.xlu0 %1967
  %v1969 = vsel %vm309, %v1966, %v1968
  %1972 = vst [vmem:[#allocation5 + $0x60] sm:$0xff] %v1969
  %1973 = vst.msk [vmem:[#allocation5 + $0x68] sm:$0xff] %vm309, %v1968
  %v1974 = vld [vmem:[#allocation4] sm:$0xff]
  %v1975 = vld [vmem:[#allocation4 + $0x8] sm:$0xff]
  %v1976 = vld [vmem:[#allocation4 + $0x10] sm:$0xff]
  %1980 = vrot.lane.b32.xlu0 %v1974, 95
  %v1981 = vpop.permute.xlu0 %1980
  %1982 = vrot.lane.b32.xlu0 %v1975, 95
  %v1983 = vpop.permute.xlu0 %1982
  %1984 = vrot.lane.b32.xlu0 %v1976, 95
  %v1985 = vpop.permute.xlu0 %1984
  %v1986 = vsel %vm354, %v1981, %v1983
  %v1987 = vsel %vm354, %v1983, %v1985
  %1990 = vst [vmem:[#allocation5 + $0x70] sm:$0xff] %v1986
  %1991 = vst.msk [vmem:[#allocation5 + $0x78] sm:$0xff] %vm309, %v1987
  %v1992 = vld [vmem:[#allocation4] sm:$0xff]
  %v1993 = vld [vmem:[#allocation4 + $0x8] sm:$0xff]
  %v1994 = vld [vmem:[#allocation4 + $0x10] sm:$0xff]
  %1998 = vrot.lane.b32.xlu0 %v1992, 94
  %v1999 = vpop.permute.xlu0 %1998
  %2000 = vrot.lane.b32.xlu0 %v1993, 94
  %v2001 = vpop.permute.xlu0 %2000
  %2002 = vrot.lane.b32.xlu0 %v1994, 94
  %v2003 = vpop.permute.xlu0 %2002
  %v2004 = vsel %vm390, %v1999, %v2001
  %v2005 = vsel %vm390, %v2001, %v2003
  %2008 = vst [vmem:[#allocation5 + $0x80] sm:$0xff] %v2004
  %2009 = vst.msk [vmem:[#allocation5 + $0x88] sm:$0xff] %vm309, %v2005
  %v2010 = vld [vmem:[#allocation3] sm:$0xff]
  %v2011 = vld [vmem:[#allocation3 + $0x8] sm:$0xff]
  %v2012 = vld [vmem:[#allocation3 + $0x40] sm:$0xff]
  %v2013 = vld [vmem:[#allocation3 + $0x48] sm:$0xff]
  %v2014 = vld [vmem:[#allocation3 + $0x80] sm:$0xff]
  %v2015 = vld [vmem:[#allocation3 + $0x88] sm:$0xff]
  %v2016 = vld [vmem:[#allocation3 + $0xc0] sm:$0xff]
  %v2017 = vld [vmem:[#allocation3 + $0xc8] sm:$0xff]
  %v2018 = vld [vmem:[%s7] sm:$0xff]
  %v2019 = vld [vmem:[%s7 + $0x8] sm:$0xff]
  %v2020 = vld [vmem:[%s7 + $0x10] sm:$0xff]
  %v2021 = vld [vmem:[%s7 + $0x18] sm:$0xff]
  %v2022 = vld [vmem:[#allocation5] sm:$0xff]
  %v2023 = vld [vmem:[#allocation5 + $0x8] sm:$0xff]
  %v2024 = vld [vmem:[#allocation5 + $0x10] sm:$0xff]
  %v2025 = vld [vmem:[#allocation5 + $0x18] sm:$0xff]
  %v2026 = vld [vmem:[#allocation5 + $0x20] sm:$0xff]
  %v2027 = vld [vmem:[#allocation5 + $0x28] sm:$0xff]
  %v2028 = vld [vmem:[#allocation5 + $0x30] sm:$0xff]
  %v2029 = vld [vmem:[#allocation5 + $0x38] sm:$0xff]
  %v2030 = vld [vmem:[#allocation5 + $0x40] sm:$0xff]
  %v2031 = vld [vmem:[#allocation5 + $0x48] sm:$0xff]
  %v2032 = vld [vmem:[#allocation5 + $0x50] sm:$0xff]
  %v2033 = vld [vmem:[#allocation5 + $0x58] sm:$0xff]
  %v2034 = vld [vmem:[#allocation5 + $0x60] sm:$0xff]
  %v2035 = vld [vmem:[#allocation5 + $0x68] sm:$0xff]
  %v2036 = vld [vmem:[#allocation5 + $0x70] sm:$0xff]
  %v2037 = vld [vmem:[#allocation5 + $0x78] sm:$0xff]
  %v2038 = vld [vmem:[#allocation5 + $0x80] sm:$0xff]
  %v2039 = vld [vmem:[#allocation5 + $0x88] sm:$0xff]
  %v2041 = vsel %vm1478, %v2018, 0
  %v2044 = vsel %vm1478, %v2019, 0
  %v2047 = vsel %vm1478, %v2020, 0
  %v2050 = vsel %vm1478, %v2021, 0
  %2052 = vmatprep.subr.mxu0 %v2023
  %2053 = vmatpush1.msra.mxu0 %v2022
  %2054 = vmatprep.subr.mxu0 %v2025
  %2055 = vmatpush1.msra.mxu0 %v2024
  %2056 = vmatprep.subr.mxu0 %v2027
  %2057 = vmatpush1.msra.mxu0 %v2026
  %2058 = vmatprep.subr.mxu0 %v2029
  %2059 = vmatpush1.msra.mxu0 %v2028
  %2060 = vmatprep.subr.mxu0 %v2031
  %2061 = vmatpush1.msra.mxu0 %v2030
  %2062 = vmatprep.subr.mxu0 %v2033
  %2063 = vmatpush1.msra.mxu0 %v2032
  %2064 = vmatprep.subr.mxu0 %v2035
  %2065 = vmatpush1.msra.mxu0 %v2034
  %2066 = vmatprep.subr.mxu0 %v2037
  %2067 = vmatpush1.msra.mxu0 %v2036
  %2068 = vmatprep.subr.mxu0 %v2039
  %2069 = vmatpush1.msra.mxu0 %v2038
  %2070 = vmatprep.subr.mxu0 0.0
  %2071 = vmatpush1.msra.mxu0 0.0
  %2072 = vmatprep.subr.mxu0 0.0
  %2073 = vmatpush1.msra.mxu0 0.0
  %2074 = vmatprep.subr.mxu0 0.0
  %2075 = vmatpush1.msra.mxu0 0.0
  %2076 = vmatprep.subr.mxu0 0.0
  %2077 = vmatpush1.msra.mxu0 0.0
  %2078 = vmatprep.subr.mxu0 0.0
  %2079 = vmatpush1.msra.mxu0 0.0
  %2080 = vmatprep.subr.mxu0 0.0
  %2081 = vmatpush1.msra.mxu0 0.0
  %2082 = vmatprep.subr.mxu0 0.0
  %2083 = vmatpush1.msra.mxu0 0.0
  %2084 = vmatprep.subr.mxu0 0.0
  %2085 = vmatpush1.msra.mxu0 0.0
  %2086 = vmatprep.subr.mxu0 0.0
  %2087 = vmatpush1.msra.mxu0 0.0
  %2088 = vmatprep.subr.mxu0 0.0
  %2089 = vmatpush1.msra.mxu0 0.0
  %2090 = vmatprep.subr.mxu0 0.0
  %2091 = vmatpush1.msra.mxu0 0.0
  %2092 = vmatprep.subr.mxu0 0.0
  %2093 = vmatpush1.msra.mxu0 0.0
  %2094 = vmatprep.subr.mxu0 0.0
  %2095 = vmatpush1.msra.mxu0 0.0
  %2096 = vmatprep.subr.mxu0 0.0
  %2097 = vmatpush1.msra.mxu0 0.0
  %2098 = vmatprep.subr.mxu0 0.0
  %2099 = vmatpush1.msra.mxu0 0.0
  %2100 = vmatprep.subr.mxu0 0.0
  %2101 = vmatpush1.msra.mxu0 0.0
  %2102 = vmatprep.subr.mxu0 0.0
  %2103 = vmatpush1.msra.mxu0 0.0
  %2104 = vmatprep.subr.mxu0 0.0
  %2105 = vmatpush1.msra.mxu0 0.0
  %2106 = vmatprep.subr.mxu0 0.0
  %2107 = vmatpush1.msra.mxu0 0.0
  %2108 = vmatprep.subr.mxu0 0.0
  %2109 = vmatpush1.msra.mxu0 0.0
  %2110 = vmatprep.subr.mxu0 0.0
  %2111 = vmatpush1.msra.mxu0 0.0
  %2112 = vmatprep.subr.mxu0 0.0
  %2113 = vmatpush1.msra.mxu0 0.0
  %2114 = vmatprep.subr.mxu0 0.0
  %2115 = vmatpush1.msra.mxu0 0.0
  %2116 = vmatprep.mubr.f32.mxu0 0.0
  %2117 = vmatmul.mubr.f32.gmra.mrb[0].mxu0 %v2041
  %v2118 = vpop.f32.mrb[0].mxu0
  %v2119 = vadd.f32 0.0, %v2118
  %v2120 = vpop.f32.mrb[0].mxu0
  %v2121 = vadd.f32 0.0, %v2120
  %2122 = vmatprep.mubr.f32.mxu0 0.0
  %2123 = vmatmul.mubr.f32.gmra.mrb[0].mxu0 %v2044
  %v2124 = vpop.f32.mrb[0].mxu0
  %v2125 = vadd.f32 0.0, %v2124
  %v2126 = vpop.f32.mrb[0].mxu0
  %v2127 = vadd.f32 0.0, %v2126
  %2128 = vmatprep.mubr.f32.mxu0 0.0
  %2129 = vmatmul.mubr.f32.gmra.mrb[0].mxu0 %v2047
  %v2130 = vpop.f32.mrb[0].mxu0
  %v2131 = vadd.f32 0.0, %v2130
  %v2132 = vpop.f32.mrb[0].mxu0
  %v2133 = vadd.f32 0.0, %v2132
  %2134 = vmatprep.mubr.f32.mxu0 0.0
  %2135 = vmatmul.mubr.f32.gmra.mrb[0].mxu0 %v2050
  %v2136 = vpop.f32.mrb[0].mxu0
  %v2137 = vadd.f32 0.0, %v2136
  %v2138 = vpop.f32.mrb[0].mxu0
  %v2139 = vadd.f32 0.0, %v2138
  %2140 = vdwg.mxu0
  %v2141 = vadd.f32 %v2010, %v2119
  %v2142 = vadd.f32 %v2011, %v2121
  %v2143 = vadd.f32 %v2012, %v2125
  %v2144 = vadd.f32 %v2013, %v2127
  %v2145 = vadd.f32 %v2014, %v2131
  %v2146 = vadd.f32 %v2015, %v2133
  %v2147 = vadd.f32 %v2016, %v2137
  %v2148 = vadd.f32 %v2017, %v2139
  %v2149 = vsub.f32 0.0, %v2141
  %v2150 = vsub.f32 0.0, %v2142
  %v2151 = vsub.f32 0.0, %v2143
  %v2152 = vsub.f32 0.0, %v2144
  %v2153 = vsub.f32 0.0, %v2145
  %v2154 = vsub.f32 0.0, %v2146
  %v2155 = vmul.f32 %v2149, 1.442695
  %v2156 = vpow.pop %v2155
  %v2157 = vmul.f32 %v2150, 1.442695
  %v2158 = vpow.pop %v2157
  %v2159 = vmul.f32 %v2151, 1.442695
  %v2160 = vpow.pop %v2159
  %v2161 = vmul.f32 %v2152, 1.442695
  %v2162 = vpow.pop %v2161
  %v2163 = vmul.f32 %v2153, 1.442695
  %v2164 = vpow.pop %v2163
  %v2165 = vmul.f32 %v2154, 1.442695
  %v2166 = vpow.pop %v2165
  %v2167 = vadd.f32 %v2156, 1.0
  %v2168 = vadd.f32 %v2158, 1.0
  %v2169 = vadd.f32 %v2160, 1.0
  %v2170 = vadd.f32 %v2162, 1.0
  %v2171 = vadd.f32 %v2164, 1.0
  %v2172 = vadd.f32 %v2166, 1.0
  %v2173 = vrcp.pop %v2167
  %v2174 = vrcp.pop %v2168
  %v2175 = vrcp.pop %v2169
  %v2176 = vrcp.pop %v2170
  %v2177 = vrcp.pop %v2171
  %v2178 = vrcp.pop %v2172
  %v2179 = vtanh.pop %v2147
  %v2180 = vtanh.pop %v2148
  %v2181 = vmul.f32 %v2175, 0.0
  %v2182 = vmul.f32 %v2176, 0.0
  %v2183 = vmul.f32 %v2173, %v2179
  %v2184 = vmul.f32 %v2174, %v2180
  %v2185 = vadd.f32 %v2181, %v2183
  %v2186 = vadd.f32 %v2182, %v2184
  %v2187 = vtanh.pop %v2185
  %v2188 = vtanh.pop %v2186
  %v2189 = vmul.f32 %v2177, %v2187
  %v2190 = vmul.f32 %v2178, %v2188
  %v2192 = vlaneseq
  %v2193 = vshrl.u32 %v2192, 7
  %v2194 = vsub.s32 0, %v2193
  %v2195 = vrot.slane %v1891, %v2194
  %v2196 = vlaneseq
  %v2197 = vshrl.u32 %v2196, 7
  %v2198 = vsub.s32 1, %v2197
  %v2199 = vrot.slane %v1891, %v2198
  %v2202 = vmul.f32 %v2189, %v2195
  %v2203 = vmul.f32 %v2190, %v2199
  %2206 = vrot.lane.b32.xlu0 %v2202, 19
  %v2207 = vpop.permute.xlu0 %2206
  %2208 = vrot.lane.b32.xlu0 %v2203, 19
  %v2209 = vpop.permute.xlu0 %2208
  %vm2210 = vcmask 154624
  %v2211 = vsel %vm2210, %v2207, %v2209
  %vm2214 = vcmask 1047704
  %2215 = vst.msk [vmem:[#allocation4 + $0x10] sm:$0xff] %vm2214, %v2207
  %vm2216 = vcmask 941056
  %2217 = vst.msk [vmem:[#allocation4 + $0x18] sm:$0xff] %vm2216, %v2211
  %v2218 = vld [vmem:[#allocation4 + $0x10] sm:$0xff]
  %v2219 = vld [vmem:[#allocation4 + $0x18] sm:$0xff]
  %2222 = vrot.lane.b32.xlu0 %v2218, 126
  %v2223 = vpop.permute.xlu0 %2222
  %2224 = vrot.lane.b32.xlu0 %v2219, 126
  %v2225 = vpop.permute.xlu0 %2224
  %v2226 = vsel %vm133, %v2223, %v2225
  %2229 = vst [vmem:[#allocation5] sm:$0xff] %v2226
  %2230 = vst.msk [vmem:[#allocation5 + $0x8] sm:$0xff] %vm309, %v2225
  %v2231 = vld [vmem:[#allocation4 + $0x10] sm:$0xff]
  %v2232 = vld [vmem:[#allocation4 + $0x18] sm:$0xff]
  %2235 = vrot.lane.b32.xlu0 %v2231, 125
  %v2236 = vpop.permute.xlu0 %2235
  %2237 = vrot.lane.b32.xlu0 %v2232, 125
  %v2238 = vpop.permute.xlu0 %2237
  %vm2239 = vcmask 1022976
  %v2240 = vsel %vm2239, %v2236, %v2238
  %2243 = vst [vmem:[#allocation5 + $0x10] sm:$0xff] %v2240
  %2244 = vst.msk [vmem:[#allocation5 + $0x18] sm:$0xff] %vm309, %v2238
  %v2245 = vld [vmem:[#allocation4 + $0x10] sm:$0xff]
  %v2246 = vld [vmem:[#allocation4 + $0x18] sm:$0xff]
  %2249 = vrot.lane.b32.xlu0 %v2245, 124
  %v2250 = vpop.permute.xlu0 %2249
  %2251 = vrot.lane.b32.xlu0 %v2246, 124
  %v2252 = vpop.permute.xlu0 %2251
  %vm2253 = vcmask 1014784
  %v2254 = vsel %vm2253, %v2250, %v2252
  %2257 = vst [vmem:[#allocation5 + $0x20] sm:$0xff] %v2254
  %2258 = vst.msk [vmem:[#allocation5 + $0x28] sm:$0xff] %vm309, %v2252
  %v2259 = vld [vmem:[#allocation4 + $0x10] sm:$0xff]
  %v2260 = vld [vmem:[#allocation4 + $0x18] sm:$0xff]
  %2263 = vrot.lane.b32.xlu0 %v2259, 110
  %v2264 = vpop.permute.xlu0 %2263
  %2265 = vrot.lane.b32.xlu0 %v2260, 110
  %v2266 = vpop.permute.xlu0 %2265
  %v2267 = vsel %vm264, %v2264, %v2266
  %2270 = vst [vmem:[#allocation5 + $0x30] sm:$0xff] %v2267
  %2271 = vst.msk [vmem:[#allocation5 + $0x38] sm:$0xff] %vm309, %v2266
  %v2272 = vld [vmem:[#allocation4 + $0x10] sm:$0xff]
  %v2273 = vld [vmem:[#allocation4 + $0x18] sm:$0xff]
  %2276 = vrot.lane.b32.xlu0 %v2272, 109
  %v2277 = vpop.permute.xlu0 %2276
  %2278 = vrot.lane.b32.xlu0 %v2273, 109
  %v2279 = vpop.permute.xlu0 %2278
  %vm2280 = vcmask 891904
  %v2281 = vsel %vm2280, %v2277, %v2279
  %2284 = vst [vmem:[#allocation5 + $0x40] sm:$0xff] %v2281
  %2285 = vst.msk [vmem:[#allocation5 + $0x48] sm:$0xff] %vm309, %v2279
  %v2286 = vld [vmem:[#allocation4 + $0x10] sm:$0xff]
  %v2287 = vld [vmem:[#allocation4 + $0x18] sm:$0xff]
  %2290 = vrot.lane.b32.xlu0 %v2286, 108
  %v2291 = vpop.permute.xlu0 %2290
  %2292 = vrot.lane.b32.xlu0 %v2287, 108
  %v2293 = vpop.permute.xlu0 %2292
  %vm2294 = vcmask 883712
  %v2295 = vsel %vm2294, %v2291, %v2293
  %2298 = vst [vmem:[#allocation5 + $0x50] sm:$0xff] %v2295
  %2299 = vst.msk [vmem:[#allocation5 + $0x58] sm:$0xff] %vm309, %v2293
  %v2300 = vld [vmem:[#allocation4 + $0x10] sm:$0xff]
  %v2301 = vld [vmem:[#allocation4 + $0x18] sm:$0xff]
  %v2302 = vld [vmem:[#allocation4 + $0x20] sm:$0xff]
  %2306 = vrot.lane.b32.xlu0 %v2300, 94
  %v2307 = vpop.permute.xlu0 %2306
  %2308 = vrot.lane.b32.xlu0 %v2301, 94
  %v2309 = vpop.permute.xlu0 %2308
  %2310 = vrot.lane.b32.xlu0 %v2302, 94
  %v2311 = vpop.permute.xlu0 %2310
  %v2312 = vsel %vm390, %v2307, %v2309
  %v2313 = vsel %vm390, %v2309, %v2311
  %2316 = vst [vmem:[#allocation5 + $0x60] sm:$0xff] %v2312
  %2317 = vst.msk [vmem:[#allocation5 + $0x68] sm:$0xff] %vm309, %v2313
  %v2318 = vld [vmem:[#allocation4 + $0x10] sm:$0xff]
  %v2319 = vld [vmem:[#allocation4 + $0x18] sm:$0xff]
  %v2320 = vld [vmem:[#allocation4 + $0x20] sm:$0xff]
  %2324 = vrot.lane.b32.xlu0 %v2318, 93
  %v2325 = vpop.permute.xlu0 %2324
  %2326 = vrot.lane.b32.xlu0 %v2319, 93
  %v2327 = vpop.permute.xlu0 %2326
  %2328 = vrot.lane.b32.xlu0 %v2320, 93
  %v2329 = vpop.permute.xlu0 %2328
  %vm2330 = vcmask 760832
  %v2331 = vsel %vm2330, %v2325, %v2327
  %v2332 = vsel %vm2330, %v2327, %v2329
  %2335 = vst [vmem:[#allocation5 + $0x70] sm:$0xff] %v2331
  %2336 = vst.msk [vmem:[#allocation5 + $0x78] sm:$0xff] %vm309, %v2332
  %v2337 = vld [vmem:[#allocation4 + $0x10] sm:$0xff]
  %v2338 = vld [vmem:[#allocation4 + $0x18] sm:$0xff]
  %v2339 = vld [vmem:[#allocation4 + $0x20] sm:$0xff]
  %2343 = vrot.lane.b32.xlu0 %v2337, 92
  %v2344 = vpop.permute.xlu0 %2343
  %2345 = vrot.lane.b32.xlu0 %v2338, 92
  %v2346 = vpop.permute.xlu0 %2345
  %2347 = vrot.lane.b32.xlu0 %v2339, 92
  %v2348 = vpop.permute.xlu0 %2347
  %vm2349 = vcmask 752640
  %v2350 = vsel %vm2349, %v2344, %v2346
  %v2351 = vsel %vm2349, %v2346, %v2348
  %2354 = vst [vmem:[#allocation5 + $0x80] sm:$0xff] %v2350
  %2355 = vst.msk [vmem:[#allocation5 + $0x88] sm:$0xff] %vm309, %v2351
  %v2356 = vld [vmem:[#allocation3 + $0x10] sm:$0xff]
  %v2357 = vld [vmem:[#allocation3 + $0x18] sm:$0xff]
  %v2358 = vld [vmem:[#allocation3 + $0x50] sm:$0xff]
  %v2359 = vld [vmem:[#allocation3 + $0x58] sm:$0xff]
  %v2360 = vld [vmem:[#allocation3 + $0x90] sm:$0xff]
  %v2361 = vld [vmem:[#allocation3 + $0x98] sm:$0xff]
  %v2362 = vld [vmem:[#allocation3 + $0xd0] sm:$0xff]
  %v2363 = vld [vmem:[#allocation3 + $0xd8] sm:$0xff]
  %v2364 = vld [vmem:[%s7] sm:$0xff]
  %v2365 = vld [vmem:[%s7 + $0x8] sm:$0xff]
  %v2366 = vld [vmem:[%s7 + $0x10] sm:$0xff]
  %v2367 = vld [vmem:[%s7 + $0x18] sm:$0xff]
  %v2368 = vld [vmem:[#allocation5] sm:$0xff]
  %v2369 = vld [vmem:[#allocation5 + $0x8] sm:$0xff]
  %v2370 = vld [vmem:[#allocation5 + $0x10] sm:$0xff]
  %v2371 = vld [vmem:[#allocation5 + $0x18] sm:$0xff]
  %v2372 = vld [vmem:[#allocation5 + $0x20] sm:$0xff]
  %v2373 = vld [vmem:[#allocation5 + $0x28] sm:$0xff]
  %v2374 = vld [vmem:[#allocation5 + $0x30] sm:$0xff]
  %v2375 = vld [vmem:[#allocation5 + $0x38] sm:$0xff]
  %v2376 = vld [vmem:[#allocation5 + $0x40] sm:$0xff]
  %v2377 = vld [vmem:[#allocation5 + $0x48] sm:$0xff]
  %v2378 = vld [vmem:[#allocation5 + $0x50] sm:$0xff]
  %v2379 = vld [vmem:[#allocation5 + $0x58] sm:$0xff]
  %v2380 = vld [vmem:[#allocation5 + $0x60] sm:$0xff]
  %v2381 = vld [vmem:[#allocation5 + $0x68] sm:$0xff]
  %v2382 = vld [vmem:[#allocation5 + $0x70] sm:$0xff]
  %v2383 = vld [vmem:[#allocation5 + $0x78] sm:$0xff]
  %v2384 = vld [vmem:[#allocation5 + $0x80] sm:$0xff]
  %v2385 = vld [vmem:[#allocation5 + $0x88] sm:$0xff]
  %v2387 = vsel %vm1478, %v2364, 0
  %v2390 = vsel %vm1478, %v2365, 0
  %v2393 = vsel %vm1478, %v2366, 0
  %v2396 = vsel %vm1478, %v2367, 0
  %2398 = vmatprep.subr.mxu0 %v2369
  %2399 = vmatpush1.msra.mxu0 %v2368
  %2400 = vmatprep.subr.mxu0 %v2371
  %2401 = vmatpush1.msra.mxu0 %v2370
  %2402 = vmatprep.subr.mxu0 %v2373
  %2403 = vmatpush1.msra.mxu0 %v2372
  %2404 = vmatprep.subr.mxu0 %v2375
  %2405 = vmatpush1.msra.mxu0 %v2374
  %2406 = vmatprep.subr.mxu0 %v2377
  %2407 = vmatpush1.msra.mxu0 %v2376
  %2408 = vmatprep.subr.mxu0 %v2379
  %2409 = vmatpush1.msra.mxu0 %v2378
  %2410 = vmatprep.subr.mxu0 %v2381
  %2411 = vmatpush1.msra.mxu0 %v2380
  %2412 = vmatprep.subr.mxu0 %v2383
  %2413 = vmatpush1.msra.mxu0 %v2382
  %2414 = vmatprep.subr.mxu0 %v2385
  %2415 = vmatpush1.msra.mxu0 %v2384
  %2416 = vmatprep.subr.mxu0 0.0
  %2417 = vmatpush1.msra.mxu0 0.0
  %2418 = vmatprep.subr.mxu0 0.0
  %2419 = vmatpush1.msra.mxu0 0.0
  %2420 = vmatprep.subr.mxu0 0.0
  %2421 = vmatpush1.msra.mxu0 0.0
  %2422 = vmatprep.subr.mxu0 0.0
  %2423 = vmatpush1.msra.mxu0 0.0
  %2424 = vmatprep.subr.mxu0 0.0
  %2425 = vmatpush1.msra.mxu0 0.0
  %2426 = vmatprep.subr.mxu0 0.0
  %2427 = vmatpush1.msra.mxu0 0.0
  %2428 = vmatprep.subr.mxu0 0.0
  %2429 = vmatpush1.msra.mxu0 0.0
  %2430 = vmatprep.subr.mxu0 0.0
  %2431 = vmatpush1.msra.mxu0 0.0
  %2432 = vmatprep.subr.mxu0 0.0
  %2433 = vmatpush1.msra.mxu0 0.0
  %2434 = vmatprep.subr.mxu0 0.0
  %2435 = vmatpush1.msra.mxu0 0.0
  %2436 = vmatprep.subr.mxu0 0.0
  %2437 = vmatpush1.msra.mxu0 0.0
  %2438 = vmatprep.subr.mxu0 0.0
  %2439 = vmatpush1.msra.mxu0 0.0
  %2440 = vmatprep.subr.mxu0 0.0
  %2441 = vmatpush1.msra.mxu0 0.0
  %2442 = vmatprep.subr.mxu0 0.0
  %2443 = vmatpush1.msra.mxu0 0.0
  %2444 = vmatprep.subr.mxu0 0.0
  %2445 = vmatpush1.msra.mxu0 0.0
  %2446 = vmatprep.subr.mxu0 0.0
  %2447 = vmatpush1.msra.mxu0 0.0
  %2448 = vmatprep.subr.mxu0 0.0
  %2449 = vmatpush1.msra.mxu0 0.0
  %2450 = vmatprep.subr.mxu0 0.0
  %2451 = vmatpush1.msra.mxu0 0.0
  %2452 = vmatprep.subr.mxu0 0.0
  %2453 = vmatpush1.msra.mxu0 0.0
  %2454 = vmatprep.subr.mxu0 0.0
  %2455 = vmatpush1.msra.mxu0 0.0
  %2456 = vmatprep.subr.mxu0 0.0
  %2457 = vmatpush1.msra.mxu0 0.0
  %2458 = vmatprep.subr.mxu0 0.0
  %2459 = vmatpush1.msra.mxu0 0.0
  %2460 = vmatprep.subr.mxu0 0.0
  %2461 = vmatpush1.msra.mxu0 0.0
  %2462 = vmatprep.mubr.f32.mxu0 0.0
  %2463 = vmatmul.mubr.f32.gmra.mrb[0].mxu0 %v2387
  %v2464 = vpop.f32.mrb[0].mxu0
  %v2465 = vadd.f32 0.0, %v2464
  %v2466 = vpop.f32.mrb[0].mxu0
  %v2467 = vadd.f32 0.0, %v2466
  %2468 = vmatprep.mubr.f32.mxu0 0.0
  %2469 = vmatmul.mubr.f32.gmra.mrb[0].mxu0 %v2390
  %v2470 = vpop.f32.mrb[0].mxu0
  %v2471 = vadd.f32 0.0, %v2470
  %v2472 = vpop.f32.mrb[0].mxu0
  %v2473 = vadd.f32 0.0, %v2472
  %2474 = vmatprep.mubr.f32.mxu0 0.0
  %2475 = vmatmul.mubr.f32.gmra.mrb[0].mxu0 %v2393
  %v2476 = vpop.f32.mrb[0].mxu0
  %v2477 = vadd.f32 0.0, %v2476
  %v2478 = vpop.f32.mrb[0].mxu0
  %v2479 = vadd.f32 0.0, %v2478
  %2480 = vmatprep.mubr.f32.mxu0 0.0
  %2481 = vmatmul.mubr.f32.gmra.mrb[0].mxu0 %v2396
  %v2482 = vpop.f32.mrb[0].mxu0
  %v2483 = vadd.f32 0.0, %v2482
  %v2484 = vpop.f32.mrb[0].mxu0
  %v2485 = vadd.f32 0.0, %v2484
  %2486 = vdwg.mxu0
  %2495 = vrot.lane.b32.xlu0 %v2465, 2
  %v2496 = vpop.permute.xlu0 %2495
  %2497 = vrot.lane.b32.xlu0 %v2467, 2
  %v2498 = vpop.permute.xlu0 %2497
  %2499 = vrot.lane.b32.xlu0 %v2471, 2
  %v2500 = vpop.permute.xlu0 %2499
  %2501 = vrot.lane.b32.xlu0 %v2473, 2
  %v2502 = vpop.permute.xlu0 %2501
  %2503 = vrot.lane.b32.xlu0 %v2477, 2
  %v2504 = vpop.permute.xlu0 %2503
  %2505 = vrot.lane.b32.xlu0 %v2479, 2
  %v2506 = vpop.permute.xlu0 %2505
  %2507 = vrot.lane.b32.xlu0 %v2483, 2
  %v2508 = vpop.permute.xlu0 %2507
  %2509 = vrot.lane.b32.xlu0 %v2485, 2
  %v2510 = vpop.permute.xlu0 %2509
  %vm2511 = vcmask 15360
  %v2512 = vsel %vm2511, %v2496, %v2498
  %v2513 = vsel %vm2511, %v2500, %v2502
  %v2514 = vsel %vm2511, %v2504, %v2506
  %v2515 = vsel %vm2511, %v2508, %v2510
  %v2524 = vadd.f32 %v2356, %v2496
  %v2525 = vadd.f32 %v2357, %v2512
  %v2526 = vadd.f32 %v2358, %v2500
  %v2527 = vadd.f32 %v2359, %v2513
  %v2528 = vadd.f32 %v2360, %v2504
  %v2529 = vadd.f32 %v2361, %v2514
  %v2530 = vadd.f32 %v2362, %v2508
  %v2531 = vadd.f32 %v2363, %v2515
  %v2532 = vsub.f32 0.0, %v2524
  %v2533 = vsub.f32 0.0, %v2525
  %v2534 = vsub.f32 0.0, %v2526
  %v2535 = vsub.f32 0.0, %v2527
  %v2536 = vsub.f32 0.0, %v2528
  %v2537 = vsub.f32 0.0, %v2529
  %v2538 = vmul.f32 %v2532, 1.442695
  %v2539 = vpow.pop %v2538
  %v2540 = vmul.f32 %v2533, 1.442695
  %v2541 = vpow.pop %v2540
  %v2542 = vmul.f32 %v2534, 1.442695
  %v2543 = vpow.pop %v2542
  %v2544 = vmul.f32 %v2535, 1.442695
  %v2545 = vpow.pop %v2544
  %v2546 = vmul.f32 %v2536, 1.442695
  %v2547 = vpow.pop %v2546
  %v2548 = vmul.f32 %v2537, 1.442695
  %v2549 = vpow.pop %v2548
  %v2550 = vadd.f32 %v2539, 1.0
  %v2551 = vadd.f32 %v2541, 1.0
  %v2552 = vadd.f32 %v2543, 1.0
  %v2553 = vadd.f32 %v2545, 1.0
  %v2554 = vadd.f32 %v2547, 1.0
  %v2555 = vadd.f32 %v2549, 1.0
  %v2556 = vrcp.pop %v2550
  %v2557 = vrcp.pop %v2551
  %v2558 = vrcp.pop %v2552
  %v2559 = vrcp.pop %v2553
  %v2560 = vrcp.pop %v2554
  %v2561 = vrcp.pop %v2555
  %v2562 = vtanh.pop %v2530
  %v2563 = vtanh.pop %v2531
  %2566 = vrot.lane.b32.xlu0 %v2185, 2
  %v2567 = vpop.permute.xlu0 %2566
  %2568 = vrot.lane.b32.xlu0 %v2186, 2
  %v2569 = vpop.permute.xlu0 %2568
  %v2570 = vsel %vm2511, %v2567, %v2569
  %v2573 = vmul.f32 %v2558, %v2567
  %v2574 = vmul.f32 %v2559, %v2570
  %v2575 = vmul.f32 %v2556, %v2562
  %v2576 = vmul.f32 %v2557, %v2563
  %v2577 = vadd.f32 %v2573, %v2575
  %v2578 = vadd.f32 %v2574, %v2576
  %v2579 = vtanh.pop %v2577
  %v2580 = vtanh.pop %v2578
  %v2581 = vmul.f32 %v2560, %v2579
  %v2582 = vmul.f32 %v2561, %v2580
  %2583 = vrot.lane.b32.xlu0 %v2195, 2
  %v2584 = vpop.permute.xlu0 %2583
  %2585 = vrot.lane.b32.xlu0 %v2199, 2
  %v2586 = vpop.permute.xlu0 %2585
  %v2587 = vsel %vm2511, %v2584, %v2586
  %v2590 = vmul.f32 %v2581, %v2584
  %v2591 = vmul.f32 %v2582, %v2587
  %2594 = vrot.lane.b32.xlu0 %v2590, 19
  %v2595 = vpop.permute.xlu0 %2594
  %2596 = vrot.lane.b32.xlu0 %v2591, 19
  %v2597 = vpop.permute.xlu0 %2596
  %v2598 = vsel %vm2210, %v2595, %v2597
  %vm2601 = vcmask 1047720
  %2602 = vst.msk [vmem:[#allocation4 + $0x20] sm:$0xff] %vm2601, %v2595
  %vm2603 = vcmask 957440
  %2604 = vst.msk [vmem:[#allocation4 + $0x28] sm:$0xff] %vm2603, %v2598
  %v2605 = vld [vmem:[#allocation4 + $0x20] sm:$0xff]
  %v2606 = vld [vmem:[#allocation4 + $0x28] sm:$0xff]
  %2609 = vrot.lane.b32.xlu0 %v2605, 124
  %v2610 = vpop.permute.xlu0 %2609
  %2611 = vrot.lane.b32.xlu0 %v2606, 124
  %v2612 = vpop.permute.xlu0 %2611
  %v2613 = vsel %vm2253, %v2610, %v2612
  %2616 = vst [vmem:[#allocation5] sm:$0xff] %v2613
  %2617 = vst.msk [vmem:[#allocation5 + $0x8] sm:$0xff] %vm309, %v2612
  %v2618 = vld [vmem:[#allocation4 + $0x20] sm:$0xff]
  %v2619 = vld [vmem:[#allocation4 + $0x28] sm:$0xff]
  %2622 = vrot.lane.b32.xlu0 %v2618, 123
  %v2623 = vpop.permute.xlu0 %2622
  %2624 = vrot.lane.b32.xlu0 %v2619, 123
  %v2625 = vpop.permute.xlu0 %2624
  %vm2626 = vcmask 1006592
  %v2627 = vsel %vm2626, %v2623, %v2625
  %2630 = vst [vmem:[#allocation5 + $0x10] sm:$0xff] %v2627
  %2631 = vst.msk [vmem:[#allocation5 + $0x18] sm:$0xff] %vm309, %v2625
  %v2632 = vld [vmem:[#allocation4 + $0x20] sm:$0xff]
  %v2633 = vld [vmem:[#allocation4 + $0x28] sm:$0xff]
  %2636 = vrot.lane.b32.xlu0 %v2632, 122
  %v2637 = vpop.permute.xlu0 %2636
  %2638 = vrot.lane.b32.xlu0 %v2633, 122
  %v2639 = vpop.permute.xlu0 %2638
  %vm2640 = vcmask 998400
  %v2641 = vsel %vm2640, %v2637, %v2639
  %2644 = vst [vmem:[#allocation5 + $0x20] sm:$0xff] %v2641
  %2645 = vst.msk [vmem:[#allocation5 + $0x28] sm:$0xff] %vm309, %v2639
  %v2646 = vld [vmem:[#allocation4 + $0x20] sm:$0xff]
  %v2647 = vld [vmem:[#allocation4 + $0x28] sm:$0xff]
  %2650 = vrot.lane.b32.xlu0 %v2646, 108
  %v2651 = vpop.permute.xlu0 %2650
  %2652 = vrot.lane.b32.xlu0 %v2647, 108
  %v2653 = vpop.permute.xlu0 %2652
  %v2654 = vsel %vm2294, %v2651, %v2653
  %2657 = vst [vmem:[#allocation5 + $0x30] sm:$0xff] %v2654
  %2658 = vst.msk [vmem:[#allocation5 + $0x38] sm:$0xff] %vm309, %v2653
  %v2659 = vld [vmem:[#allocation4 + $0x20] sm:$0xff]
  %v2660 = vld [vmem:[#allocation4 + $0x28] sm:$0xff]
  %2663 = vrot.lane.b32.xlu0 %v2659, 107
  %v2664 = vpop.permute.xlu0 %2663
  %2665 = vrot.lane.b32.xlu0 %v2660, 107
  %v2666 = vpop.permute.xlu0 %2665
  %vm2667 = vcmask 875520
  %v2668 = vsel %vm2667, %v2664, %v2666
  %2671 = vst [vmem:[#allocation5 + $0x40] sm:$0xff] %v2668
  %2672 = vst.msk [vmem:[#allocation5 + $0x48] sm:$0xff] %vm309, %v2666
  %v2673 = vld [vmem:[#allocation4 + $0x20] sm:$0xff]
  %v2674 = vld [vmem:[#allocation4 + $0x28] sm:$0xff]
  %2677 = vrot.lane.b32.xlu0 %v2673, 106
  %v2678 = vpop.permute.xlu0 %2677
  %2679 = vrot.lane.b32.xlu0 %v2674, 106
  %v2680 = vpop.permute.xlu0 %2679
  %vm2681 = vcmask 867328
  %v2682 = vsel %vm2681, %v2678, %v2680
  %2685 = vst [vmem:[#allocation5 + $0x50] sm:$0xff] %v2682
  %2686 = vst.msk [vmem:[#allocation5 + $0x58] sm:$0xff] %vm309, %v2680
  %v2687 = vld [vmem:[#allocation4 + $0x20] sm:$0xff]
  %v2688 = vld [vmem:[#allocation4 + $0x28] sm:$0xff]
  %v2689 = vld [vmem:[#allocation4 + $0x30] sm:$0xff]
  %2693 = vrot.lane.b32.xlu0 %v2687, 92
  %v2694 = vpop.permute.xlu0 %2693
  %2695 = vrot.lane.b32.xlu0 %v2688, 92
  %v2696 = vpop.permute.xlu0 %2695
  %2697 = vrot.lane.b32.xlu0 %v2689, 92
  %v2698 = vpop.permute.xlu0 %2697
  %v2699 = vsel %vm2349, %v2694, %v2696
  %v2700 = vsel %vm2349, %v2696, %v2698
  %2703 = vst [vmem:[#allocation5 + $0x60] sm:$0xff] %v2699
  %2704 = vst.msk [vmem:[#allocation5 + $0x68] sm:$0xff] %vm309, %v2700
  %v2705 = vld [vmem:[#allocation4 + $0x20] sm:$0xff]
  %v2706 = vld [vmem:[#allocation4 + $0x28] sm:$0xff]
  %v2707 = vld [vmem:[#allocation4 + $0x30] sm:$0xff]
  %2711 = vrot.lane.b32.xlu0 %v2705, 91
  %v2712 = vpop.permute.xlu0 %2711
  %2713 = vrot.lane.b32.xlu0 %v2706, 91
  %v2714 = vpop.permute.xlu0 %2713
  %2715 = vrot.lane.b32.xlu0 %v2707, 91
  %v2716 = vpop.permute.xlu0 %2715
  %vm2717 = vcmask 744448
  %v2718 = vsel %vm2717, %v2712, %v2714
  %v2719 = vsel %vm2717, %v2714, %v2716
  %2722 = vst [vmem:[#allocation5 + $0x70] sm:$0xff] %v2718
  %2723 = vst.msk [vmem:[#allocation5 + $0x78] sm:$0xff] %vm309, %v2719
  %v2724 = vld [vmem:[#allocation4 + $0x20] sm:$0xff]
  %v2725 = vld [vmem:[#allocation4 + $0x28] sm:$0xff]
  %v2726 = vld [vmem:[#allocation4 + $0x30] sm:$0xff]
  %2730 = vrot.lane.b32.xlu0 %v2724, 90
  %v2731 = vpop.permute.xlu0 %2730
  %2732 = vrot.lane.b32.xlu0 %v2725, 90
  %v2733 = vpop.permute.xlu0 %2732
  %2734 = vrot.lane.b32.xlu0 %v2726, 90
  %v2735 = vpop.permute.xlu0 %2734
  %vm2736 = vcmask 736256
  %v2737 = vsel %vm2736, %v2731, %v2733
  %v2738 = vsel %vm2736, %v2733, %v2735
  %2741 = vst [vmem:[#allocation5 + $0x80] sm:$0xff] %v2737
  %2742 = vst.msk [vmem:[#allocation5 + $0x88] sm:$0xff] %vm309, %v2738
  %v2743 = vld [vmem:[#allocation3 + $0x20] sm:$0xff]
  %v2744 = vld [vmem:[#allocation3 + $0x28] sm:$0xff]
  %v2745 = vld [vmem:[#allocation3 + $0x60] sm:$0xff]
  %v2746 = vld [vmem:[#allocation3 + $0x68] sm:$0xff]
  %v2747 = vld [vmem:[#allocation3 + $0xa0] sm:$0xff]
  %v2748 = vld [vmem:[#allocation3 + $0xa8] sm:$0xff]
  %v2749 = vld [vmem:[#allocation3 + $0xe0] sm:$0xff]
  %v2750 = vld [vmem:[#allocation3 + $0xe8] sm:$0xff]
  %v2751 = vld [vmem:[%s7] sm:$0xff]
  %v2752 = vld [vmem:[%s7 + $0x8] sm:$0xff]
  %v2753 = vld [vmem:[%s7 + $0x10] sm:$0xff]
  %v2754 = vld [vmem:[%s7 + $0x18] sm:$0xff]
  %v2755 = vld [vmem:[#allocation5] sm:$0xff]
  %v2756 = vld [vmem:[#allocation5 + $0x8] sm:$0xff]
  %v2757 = vld [vmem:[#allocation5 + $0x10] sm:$0xff]
  %v2758 = vld [vmem:[#allocation5 + $0x18] sm:$0xff]
  %v2759 = vld [vmem:[#allocation5 + $0x20] sm:$0xff]
  %v2760 = vld [vmem:[#allocation5 + $0x28] sm:$0xff]
  %v2761 = vld [vmem:[#allocation5 + $0x30] sm:$0xff]
  %v2762 = vld [vmem:[#allocation5 + $0x38] sm:$0xff]
  %v2763 = vld [vmem:[#allocation5 + $0x40] sm:$0xff]
  %v2764 = vld [vmem:[#allocation5 + $0x48] sm:$0xff]
  %v2765 = vld [vmem:[#allocation5 + $0x50] sm:$0xff]
  %v2766 = vld [vmem:[#allocation5 + $0x58] sm:$0xff]
  %v2767 = vld [vmem:[#allocation5 + $0x60] sm:$0xff]
  %v2768 = vld [vmem:[#allocation5 + $0x68] sm:$0xff]
  %v2769 = vld [vmem:[#allocation5 + $0x70] sm:$0xff]
  %v2770 = vld [vmem:[#allocation5 + $0x78] sm:$0xff]
  %v2771 = vld [vmem:[#allocation5 + $0x80] sm:$0xff]
  %v2772 = vld [vmem:[#allocation5 + $0x88] sm:$0xff]
  %v2774 = vsel %vm1478, %v2751, 0
  %v2777 = vsel %vm1478, %v2752, 0
  %v2780 = vsel %vm1478, %v2753, 0
  %v2783 = vsel %vm1478, %v2754, 0
  %2785 = vmatprep.subr.mxu0 %v2756
  %2786 = vmatpush1.msra.mxu0 %v2755
  %2787 = vmatprep.subr.mxu0 %v2758
  %2788 = vmatpush1.msra.mxu0 %v2757
  %2789 = vmatprep.subr.mxu0 %v2760
  %2790 = vmatpush1.msra.mxu0 %v2759
  %2791 = vmatprep.subr.mxu0 %v2762
  %2792 = vmatpush1.msra.mxu0 %v2761
  %2793 = vmatprep.subr.mxu0 %v2764
  %2794 = vmatpush1.msra.mxu0 %v2763
  %2795 = vmatprep.subr.mxu0 %v2766
  %2796 = vmatpush1.msra.mxu0 %v2765
  %2797 = vmatprep.subr.mxu0 %v2768
  %2798 = vmatpush1.msra.mxu0 %v2767
  %2799 = vmatprep.subr.mxu0 %v2770
  %2800 = vmatpush1.msra.mxu0 %v2769
  %2801 = vmatprep.subr.mxu0 %v2772
  %2802 = vmatpush1.msra.mxu0 %v2771
  %2803 = vmatprep.subr.mxu0 0.0
  %2804 = vmatpush1.msra.mxu0 0.0
  %2805 = vmatprep.subr.mxu0 0.0
  %2806 = vmatpush1.msra.mxu0 0.0
  %2807 = vmatprep.subr.mxu0 0.0
  %2808 = vmatpush1.msra.mxu0 0.0
  %2809 = vmatprep.subr.mxu0 0.0
  %2810 = vmatpush1.msra.mxu0 0.0
  %2811 = vmatprep.subr.mxu0 0.0
  %2812 = vmatpush1.msra.mxu0 0.0
  %2813 = vmatprep.subr.mxu0 0.0
  %2814 = vmatpush1.msra.mxu0 0.0
  %2815 = vmatprep.subr.mxu0 0.0
  %2816 = vmatpush1.msra.mxu0 0.0
  %2817 = vmatprep.subr.mxu0 0.0
  %2818 = vmatpush1.msra.mxu0 0.0
  %2819 = vmatprep.subr.mxu0 0.0
  %2820 = vmatpush1.msra.mxu0 0.0
  %2821 = vmatprep.subr.mxu0 0.0
  %2822 = vmatpush1.msra.mxu0 0.0
  %2823 = vmatprep.subr.mxu0 0.0
  %2824 = vmatpush1.msra.mxu0 0.0
  %2825 = vmatprep.subr.mxu0 0.0
  %2826 = vmatpush1.msra.mxu0 0.0
  %2827 = vmatprep.subr.mxu0 0.0
  %2828 = vmatpush1.msra.mxu0 0.0
  %2829 = vmatprep.subr.mxu0 0.0
  %2830 = vmatpush1.msra.mxu0 0.0
  %2831 = vmatprep.subr.mxu0 0.0
  %2832 = vmatpush1.msra.mxu0 0.0
  %2833 = vmatprep.subr.mxu0 0.0
  %2834 = vmatpush1.msra.mxu0 0.0
  %2835 = vmatprep.subr.mxu0 0.0
  %2836 = vmatpush1.msra.mxu0 0.0
  %2837 = vmatprep.subr.mxu0 0.0
  %2838 = vmatpush1.msra.mxu0 0.0
  %2839 = vmatprep.subr.mxu0 0.0
  %2840 = vmatpush1.msra.mxu0 0.0
  %2841 = vmatprep.subr.mxu0 0.0
  %2842 = vmatpush1.msra.mxu0 0.0
  %2843 = vmatprep.subr.mxu0 0.0
  %2844 = vmatpush1.msra.mxu0 0.0
  %2845 = vmatprep.subr.mxu0 0.0
  %2846 = vmatpush1.msra.mxu0 0.0
  %2847 = vmatprep.subr.mxu0 0.0
  %2848 = vmatpush1.msra.mxu0 0.0
  %2849 = vmatprep.mubr.f32.mxu0 0.0
  %2850 = vmatmul.mubr.f32.gmra.mrb[0].mxu0 %v2774
  %v2851 = vpop.f32.mrb[0].mxu0
  %v2852 = vadd.f32 0.0, %v2851
  %v2853 = vpop.f32.mrb[0].mxu0
  %v2854 = vadd.f32 0.0, %v2853
  %2855 = vmatprep.mubr.f32.mxu0 0.0
  %2856 = vmatmul.mubr.f32.gmra.mrb[0].mxu0 %v2777
  %v2857 = vpop.f32.mrb[0].mxu0
  %v2858 = vadd.f32 0.0, %v2857
  %v2859 = vpop.f32.mrb[0].mxu0
  %v2860 = vadd.f32 0.0, %v2859
  %2861 = vmatprep.mubr.f32.mxu0 0.0
  %2862 = vmatmul.mubr.f32.gmra.mrb[0].mxu0 %v2780
  %v2863 = vpop.f32.mrb[0].mxu0
  %v2864 = vadd.f32 0.0, %v2863
  %v2865 = vpop.f32.mrb[0].mxu0
  %v2866 = vadd.f32 0.0, %v2865
  %2867 = vmatprep.mubr.f32.mxu0 0.0
  %2868 = vmatmul.mubr.f32.gmra.mrb[0].mxu0 %v2783
  %v2869 = vpop.f32.mrb[0].mxu0
  %v2870 = vadd.f32 0.0, %v2869
  %v2871 = vpop.f32.mrb[0].mxu0
  %v2872 = vadd.f32 0.0, %v2871
  %2873 = vdwg.mxu0
  %2882 = vrot.lane.b32.xlu0 %v2852, 4
  %v2883 = vpop.permute.xlu0 %2882
  %2884 = vrot.lane.b32.xlu0 %v2854, 4
  %v2885 = vpop.permute.xlu0 %2884
  %2886 = vrot.lane.b32.xlu0 %v2858, 4
  %v2887 = vpop.permute.xlu0 %2886
  %2888 = vrot.lane.b32.xlu0 %v2860, 4
  %v2889 = vpop.permute.xlu0 %2888
  %2890 = vrot.lane.b32.xlu0 %v2864, 4
  %v2891 = vpop.permute.xlu0 %2890
  %2892 = vrot.lane.b32.xlu0 %v2866, 4
  %v2893 = vpop.permute.xlu0 %2892
  %2894 = vrot.lane.b32.xlu0 %v2870, 4
  %v2895 = vpop.permute.xlu0 %2894
  %2896 = vrot.lane.b32.xlu0 %v2872, 4
  %v2897 = vpop.permute.xlu0 %2896
  %vm2898 = vcmask 31744
  %v2899 = vsel %vm2898, %v2883, %v2885
  %v2900 = vsel %vm2898, %v2887, %v2889
  %v2901 = vsel %vm2898, %v2891, %v2893
  %v2902 = vsel %vm2898, %v2895, %v2897
  %v2911 = vadd.f32 %v2743, %v2883
  %v2912 = vadd.f32 %v2744, %v2899
  %v2913 = vadd.f32 %v2745, %v2887
  %v2914 = vadd.f32 %v2746, %v2900
  %v2915 = vadd.f32 %v2747, %v2891
  %v2916 = vadd.f32 %v2748, %v2901
  %v2917 = vadd.f32 %v2749, %v2895
  %v2918 = vadd.f32 %v2750, %v2902
  %v2919 = vsub.f32 0.0, %v2911
  %v2920 = vsub.f32 0.0, %v2912
  %v2921 = vsub.f32 0.0, %v2913
  %v2922 = vsub.f32 0.0, %v2914
  %v2923 = vsub.f32 0.0, %v2915
  %v2924 = vsub.f32 0.0, %v2916
  %v2925 = vmul.f32 %v2919, 1.442695
  %v2926 = vpow.pop %v2925
  %v2927 = vmul.f32 %v2920, 1.442695
  %v2928 = vpow.pop %v2927
  %v2929 = vmul.f32 %v2921, 1.442695
  %v2930 = vpow.pop %v2929
  %v2931 = vmul.f32 %v2922, 1.442695
  %v2932 = vpow.pop %v2931
  %v2933 = vmul.f32 %v2923, 1.442695
  %v2934 = vpow.pop %v2933
  %v2935 = vmul.f32 %v2924, 1.442695
  %v2936 = vpow.pop %v2935
  %v2937 = vadd.f32 %v2926, 1.0
  %v2938 = vadd.f32 %v2928, 1.0
  %v2939 = vadd.f32 %v2930, 1.0
  %v2940 = vadd.f32 %v2932, 1.0
  %v2941 = vadd.f32 %v2934, 1.0
  %v2942 = vadd.f32 %v2936, 1.0
  %v2943 = vrcp.pop %v2937
  %v2944 = vrcp.pop %v2938
  %v2945 = vrcp.pop %v2939
  %v2946 = vrcp.pop %v2940
  %v2947 = vrcp.pop %v2941
  %v2948 = vrcp.pop %v2942
  %v2949 = vtanh.pop %v2917
  %v2950 = vtanh.pop %v2918
  %2953 = vrot.lane.b32.xlu0 %v2577, 2
  %v2954 = vpop.permute.xlu0 %2953
  %2955 = vrot.lane.b32.xlu0 %v2578, 2
  %v2956 = vpop.permute.xlu0 %2955
  %v2957 = vsel %vm2511, %v2954, %v2956
  %v2960 = vmul.f32 %v2945, %v2954
  %v2961 = vmul.f32 %v2946, %v2957
  %v2962 = vmul.f32 %v2943, %v2949
  %v2963 = vmul.f32 %v2944, %v2950
  %v2964 = vadd.f32 %v2960, %v2962
  %v2965 = vadd.f32 %v2961, %v2963
  %v2966 = vtanh.pop %v2964
  %v2967 = vtanh.pop %v2965
  %v2968 = vmul.f32 %v2947, %v2966
  %v2969 = vmul.f32 %v2948, %v2967
  %2970 = vrot.lane.b32.xlu0 %v2195, 4
  %v2971 = vpop.permute.xlu0 %2970
  %2972 = vrot.lane.b32.xlu0 %v2199, 4
  %v2973 = vpop.permute.xlu0 %2972
  %v2974 = vsel %vm2898, %v2971, %v2973
  %v2977 = vmul.f32 %v2968, %v2971
  %v2978 = vmul.f32 %v2969, %v2974
  %2981 = vrot.lane.b32.xlu0 %v2977, 19
  %v2982 = vpop.permute.xlu0 %2981
  %2983 = vrot.lane.b32.xlu0 %v2978, 19
  %v2984 = vpop.permute.xlu0 %2983
  %v2985 = vsel %vm2210, %v2982, %v2984
  %vm2988 = vcmask 1047736
  %2989 = vst.msk [vmem:[#allocation4 + $0x30] sm:$0xff] %vm2988, %v2982
  %vm2990 = vcmask 973824
  %2991 = vst.msk [vmem:[#allocation4 + $0x38] sm:$0xff] %vm2990, %v2985
  %v2992 = vld [vmem:[#allocation4 + $0x30] sm:$0xff]
  %v2993 = vld [vmem:[#allocation4 + $0x38] sm:$0xff]
  %2996 = vrot.lane.b32.xlu0 %v2992, 122
  %v2997 = vpop.permute.xlu0 %2996
  %2998 = vrot.lane.b32.xlu0 %v2993, 122
  %v2999 = vpop.permute.xlu0 %2998
  %v3000 = vsel %vm2640, %v2997, %v2999
  %3003 = vst [vmem:[#allocation5] sm:$0xff] %v3000
  %3004 = vst.msk [vmem:[#allocation5 + $0x8] sm:$0xff] %vm309, %v2999
  %v3005 = vld [vmem:[#allocation4 + $0x30] sm:$0xff]
  %v3006 = vld [vmem:[#allocation4 + $0x38] sm:$0xff]
  %3009 = vrot.lane.b32.xlu0 %v3005, 121
  %v3010 = vpop.permute.xlu0 %3009
  %3011 = vrot.lane.b32.xlu0 %v3006, 121
  %v3012 = vpop.permute.xlu0 %3011
  %vm3013 = vcmask 990208
  %v3014 = vsel %vm3013, %v3010, %v3012
  %3017 = vst [vmem:[#allocation5 + $0x10] sm:$0xff] %v3014
  %3018 = vst.msk [vmem:[#allocation5 + $0x18] sm:$0xff] %vm309, %v3012
  %v3019 = vld [vmem:[#allocation4 + $0x30] sm:$0xff]
  %v3020 = vld [vmem:[#allocation4 + $0x38] sm:$0xff]
  %3023 = vrot.lane.b32.xlu0 %v3019, 120
  %v3024 = vpop.permute.xlu0 %3023
  %3025 = vrot.lane.b32.xlu0 %v3020, 120
  %v3026 = vpop.permute.xlu0 %3025
  %vm3027 = vcmask 982016
  %v3028 = vsel %vm3027, %v3024, %v3026
  %3031 = vst [vmem:[#allocation5 + $0x20] sm:$0xff] %v3028
  %3032 = vst.msk [vmem:[#allocation5 + $0x28] sm:$0xff] %vm309, %v3026
  %v3033 = vld [vmem:[#allocation4 + $0x30] sm:$0xff]
  %v3034 = vld [vmem:[#allocation4 + $0x38] sm:$0xff]
  %3037 = vrot.lane.b32.xlu0 %v3033, 106
  %v3038 = vpop.permute.xlu0 %3037
  %3039 = vrot.lane.b32.xlu0 %v3034, 106
  %v3040 = vpop.permute.xlu0 %3039
  %v3041 = vsel %vm2681, %v3038, %v3040
  %3044 = vst [vmem:[#allocation5 + $0x30] sm:$0xff] %v3041
  %3045 = vst.msk [vmem:[#allocation5 + $0x38] sm:$0xff] %vm309, %v3040
  %v3046 = vld [vmem:[#allocation4 + $0x30] sm:$0xff]
  %v3047 = vld [vmem:[#allocation4 + $0x38] sm:$0xff]
  %3050 = vrot.lane.b32.xlu0 %v3046, 105
  %v3051 = vpop.permute.xlu0 %3050
  %3052 = vrot.lane.b32.xlu0 %v3047, 105
  %v3053 = vpop.permute.xlu0 %3052
  %vm3054 = vcmask 859136
  %v3055 = vsel %vm3054, %v3051, %v3053
  %3058 = vst [vmem:[#allocation5 + $0x40] sm:$0xff] %v3055
  %3059 = vst.msk [vmem:[#allocation5 + $0x48] sm:$0xff] %vm309, %v3053
  %v3060 = vld [vmem:[#allocation4 + $0x30] sm:$0xff]
  %v3061 = vld [vmem:[#allocation4 + $0x38] sm:$0xff]
  %3064 = vrot.lane.b32.xlu0 %v3060, 104
  %v3065 = vpop.permute.xlu0 %3064
  %3066 = vrot.lane.b32.xlu0 %v3061, 104
  %v3067 = vpop.permute.xlu0 %3066
  %vm3068 = vcmask 850944
  %v3069 = vsel %vm3068, %v3065, %v3067
  %3072 = vst [vmem:[#allocation5 + $0x50] sm:$0xff] %v3069
  %3073 = vst.msk [vmem:[#allocation5 + $0x58] sm:$0xff] %vm309, %v3067
  %v3074 = vld [vmem:[#allocation4 + $0x30] sm:$0xff]
  %v3075 = vld [vmem:[#allocation4 + $0x38] sm:$0xff]
  %v3076 = vld [vmem:[#allocation4 + $0x40] sm:$0xff]
  %3080 = vrot.lane.b32.xlu0 %v3074, 90
  %v3081 = vpop.permute.xlu0 %3080
  %3082 = vrot.lane.b32.xlu0 %v3075, 90
  %v3083 = vpop.permute.xlu0 %3082
  %3084 = vrot.lane.b32.xlu0 %v3076, 90
  %v3085 = vpop.permute.xlu0 %3084
  %v3086 = vsel %vm2736, %v3081, %v3083
  %v3087 = vsel %vm2736, %v3083, %v3085
  %3090 = vst [vmem:[#allocation5 + $0x60] sm:$0xff] %v3086
  %3091 = vst.msk [vmem:[#allocation5 + $0x68] sm:$0xff] %vm309, %v3087
  %v3092 = vld [vmem:[#allocation4 + $0x30] sm:$0xff]
  %v3093 = vld [vmem:[#allocation4 + $0x38] sm:$0xff]
  %v3094 = vld [vmem:[#allocation4 + $0x40] sm:$0xff]
  %3098 = vrot.lane.b32.xlu0 %v3092, 89
  %v3099 = vpop.permute.xlu0 %3098
  %3100 = vrot.lane.b32.xlu0 %v3093, 89
  %v3101 = vpop.permute.xlu0 %3100
  %3102 = vrot.lane.b32.xlu0 %v3094, 89
  %v3103 = vpop.permute.xlu0 %3102
  %vm3104 = vcmask 728064
  %v3105 = vsel %vm3104, %v3099, %v3101
  %v3106 = vsel %vm3104, %v3101, %v3103
  %3109 = vst [vmem:[#allocation5 + $0x70] sm:$0xff] %v3105
  %3110 = vst.msk [vmem:[#allocation5 + $0x78] sm:$0xff] %vm309, %v3106
  %v3111 = vld [vmem:[#allocation4 + $0x30] sm:$0xff]
  %v3112 = vld [vmem:[#allocation4 + $0x38] sm:$0xff]
  %v3113 = vld [vmem:[#allocation4 + $0x40] sm:$0xff]
  %3117 = vrot.lane.b32.xlu0 %v3111, 88
  %v3118 = vpop.permute.xlu0 %3117
  %3119 = vrot.lane.b32.xlu0 %v3112, 88
  %v3120 = vpop.permute.xlu0 %3119
  %3121 = vrot.lane.b32.xlu0 %v3113, 88
  %v3122 = vpop.permute.xlu0 %3121
  %vm3123 = vcmask 719872
  %v3124 = vsel %vm3123, %v3118, %v3120
  %v3125 = vsel %vm3123, %v3120, %v3122
  %3128 = vst [vmem:[#allocation5 + $0x80] sm:$0xff] %v3124
  %3129 = vst.msk [vmem:[#allocation5 + $0x88] sm:$0xff] %vm309, %v3125
  %v3130 = vld [vmem:[#allocation3 + $0x30] sm:$0xff]
  %v3131 = vld [vmem:[#allocation3 + $0x38] sm:$0xff]
  %v3132 = vld [vmem:[#allocation3 + $0x70] sm:$0xff]
  %v3133 = vld [vmem:[#allocation3 + $0x78] sm:$0xff]
  %v3134 = vld [vmem:[#allocation3 + $0xb0] sm:$0xff]
  %v3135 = vld [vmem:[#allocation3 + $0xb8] sm:$0xff]
  %v3136 = vld [vmem:[#allocation3 + $0xf0] sm:$0xff]
  %v3137 = vld [vmem:[#allocation3 + $0xf8] sm:$0xff]
  %v3138 = vld [vmem:[%s7] sm:$0xff]
  %v3139 = vld [vmem:[%s7 + $0x8] sm:$0xff]
  %v3140 = vld [vmem:[%s7 + $0x10] sm:$0xff]
  %v3141 = vld [vmem:[%s7 + $0x18] sm:$0xff]
  %v3142 = vld [vmem:[#allocation5] sm:$0xff]
  %v3143 = vld [vmem:[#allocation5 + $0x8] sm:$0xff]
  %v3144 = vld [vmem:[#allocation5 + $0x10] sm:$0xff]
  %v3145 = vld [vmem:[#allocation5 + $0x18] sm:$0xff]
  %v3146 = vld [vmem:[#allocation5 + $0x20] sm:$0xff]
  %v3147 = vld [vmem:[#allocation5 + $0x28] sm:$0xff]
  %v3148 = vld [vmem:[#allocation5 + $0x30] sm:$0xff]
  %v3149 = vld [vmem:[#allocation5 + $0x38] sm:$0xff]
  %v3150 = vld [vmem:[#allocation5 + $0x40] sm:$0xff]
  %v3151 = vld [vmem:[#allocation5 + $0x48] sm:$0xff]
  %v3152 = vld [vmem:[#allocation5 + $0x50] sm:$0xff]
  %v3153 = vld [vmem:[#allocation5 + $0x58] sm:$0xff]
  %v3154 = vld [vmem:[#allocation5 + $0x60] sm:$0xff]
  %v3155 = vld [vmem:[#allocation5 + $0x68] sm:$0xff]
  %v3156 = vld [vmem:[#allocation5 + $0x70] sm:$0xff]
  %v3157 = vld [vmem:[#allocation5 + $0x78] sm:$0xff]
  %v3158 = vld [vmem:[#allocation5 + $0x80] sm:$0xff]
  %v3159 = vld [vmem:[#allocation5 + $0x88] sm:$0xff]
  %v3161 = vsel %vm1478, %v3138, 0
  %v3164 = vsel %vm1478, %v3139, 0
  %v3167 = vsel %vm1478, %v3140, 0
  %v3170 = vsel %vm1478, %v3141, 0
  %3172 = vmatprep.subr.mxu0 %v3143
  %3173 = vmatpush1.msra.mxu0 %v3142
  %3174 = vmatprep.subr.mxu0 %v3145
  %3175 = vmatpush1.msra.mxu0 %v3144
  %3176 = vmatprep.subr.mxu0 %v3147
  %3177 = vmatpush1.msra.mxu0 %v3146
  %3178 = vmatprep.subr.mxu0 %v3149
  %3179 = vmatpush1.msra.mxu0 %v3148
  %3180 = vmatprep.subr.mxu0 %v3151
  %3181 = vmatpush1.msra.mxu0 %v3150
  %3182 = vmatprep.subr.mxu0 %v3153
  %3183 = vmatpush1.msra.mxu0 %v3152
  %3184 = vmatprep.subr.mxu0 %v3155
  %3185 = vmatpush1.msra.mxu0 %v3154
  %3186 = vmatprep.subr.mxu0 %v3157
  %3187 = vmatpush1.msra.mxu0 %v3156
  %3188 = vmatprep.subr.mxu0 %v3159
  %3189 = vmatpush1.msra.mxu0 %v3158
  %3190 = vmatprep.subr.mxu0 0.0
  %3191 = vmatpush1.msra.mxu0 0.0
  %3192 = vmatprep.subr.mxu0 0.0
  %3193 = vmatpush1.msra.mxu0 0.0
  %3194 = vmatprep.subr.mxu0 0.0
  %3195 = vmatpush1.msra.mxu0 0.0
  %3196 = vmatprep.subr.mxu0 0.0
  %3197 = vmatpush1.msra.mxu0 0.0
  %3198 = vmatprep.subr.mxu0 0.0
  %3199 = vmatpush1.msra.mxu0 0.0
  %3200 = vmatprep.subr.mxu0 0.0
  %3201 = vmatpush1.msra.mxu0 0.0
  %3202 = vmatprep.subr.mxu0 0.0
  %3203 = vmatpush1.msra.mxu0 0.0
  %3204 = vmatprep.subr.mxu0 0.0
  %3205 = vmatpush1.msra.mxu0 0.0
  %3206 = vmatprep.subr.mxu0 0.0
  %3207 = vmatpush1.msra.mxu0 0.0
  %3208 = vmatprep.subr.mxu0 0.0
  %3209 = vmatpush1.msra.mxu0 0.0
  %3210 = vmatprep.subr.mxu0 0.0
  %3211 = vmatpush1.msra.mxu0 0.0
  %3212 = vmatprep.subr.mxu0 0.0
  %3213 = vmatpush1.msra.mxu0 0.0
  %3214 = vmatprep.subr.mxu0 0.0
  %3215 = vmatpush1.msra.mxu0 0.0
  %3216 = vmatprep.subr.mxu0 0.0
  %3217 = vmatpush1.msra.mxu0 0.0
  %3218 = vmatprep.subr.mxu0 0.0
  %3219 = vmatpush1.msra.mxu0 0.0
  %3220 = vmatprep.subr.mxu0 0.0
  %3221 = vmatpush1.msra.mxu0 0.0
  %3222 = vmatprep.subr.mxu0 0.0
  %3223 = vmatpush1.msra.mxu0 0.0
  %3224 = vmatprep.subr.mxu0 0.0
  %3225 = vmatpush1.msra.mxu0 0.0
  %3226 = vmatprep.subr.mxu0 0.0
  %3227 = vmatpush1.msra.mxu0 0.0
  %3228 = vmatprep.subr.mxu0 0.0
  %3229 = vmatpush1.msra.mxu0 0.0
  %3230 = vmatprep.subr.mxu0 0.0
  %3231 = vmatpush1.msra.mxu0 0.0
  %3232 = vmatprep.subr.mxu0 0.0
  %3233 = vmatpush1.msra.mxu0 0.0
  %3234 = vmatprep.subr.mxu0 0.0
  %3235 = vmatpush1.msra.mxu0 0.0
  %3236 = vmatprep.mubr.f32.mxu0 0.0
  %3237 = vmatmul.mubr.f32.gmra.mrb[0].mxu0 %v3161
  %v3238 = vpop.f32.mrb[0].mxu0
  %v3239 = vadd.f32 0.0, %v3238
  %v3240 = vpop.f32.mrb[0].mxu0
  %v3241 = vadd.f32 0.0, %v3240
  %3242 = vmatprep.mubr.f32.mxu0 0.0
  %3243 = vmatmul.mubr.f32.gmra.mrb[0].mxu0 %v3164
  %v3244 = vpop.f32.mrb[0].mxu0
  %v3245 = vadd.f32 0.0, %v3244
  %v3246 = vpop.f32.mrb[0].mxu0
  %v3247 = vadd.f32 0.0, %v3246
  %3248 = vmatprep.mubr.f32.mxu0 0.0
  %3249 = vmatmul.mubr.f32.gmra.mrb[0].mxu0 %v3167
  %v3250 = vpop.f32.mrb[0].mxu0
  %v3251 = vadd.f32 0.0, %v3250
  %v3252 = vpop.f32.mrb[0].mxu0
  %v3253 = vadd.f32 0.0, %v3252
  %3254 = vmatprep.mubr.f32.mxu0 0.0
  %3255 = vmatmul.mubr.f32.gmra.mrb[0].mxu0 %v3170
  %v3256 = vpop.f32.mrb[0].mxu0
  %v3257 = vadd.f32 0.0, %v3256
  %v3258 = vpop.f32.mrb[0].mxu0
  %v3259 = vadd.f32 0.0, %v3258
  %3260 = vdwg.mxu0
  %3269 = vrot.lane.b32.xlu0 %v3239, 6
  %v3270 = vpop.permute.xlu0 %3269
  %3271 = vrot.lane.b32.xlu0 %v3241, 6
  %v3272 = vpop.permute.xlu0 %3271
  %3273 = vrot.lane.b32.xlu0 %v3245, 6
  %v3274 = vpop.permute.xlu0 %3273
  %3275 = vrot.lane.b32.xlu0 %v3247, 6
  %v3276 = vpop.permute.xlu0 %3275
  %3277 = vrot.lane.b32.xlu0 %v3251, 6
  %v3278 = vpop.permute.xlu0 %3277
  %3279 = vrot.lane.b32.xlu0 %v3253, 6
  %v3280 = vpop.permute.xlu0 %3279
  %3281 = vrot.lane.b32.xlu0 %v3257, 6
  %v3282 = vpop.permute.xlu0 %3281
  %3283 = vrot.lane.b32.xlu0 %v3259, 6
  %v3284 = vpop.permute.xlu0 %3283
  %vm3285 = vcmask 48128
  %v3286 = vsel %vm3285, %v3270, %v3272
  %v3287 = vsel %vm3285, %v3274, %v3276
  %v3288 = vsel %vm3285, %v3278, %v3280
  %v3289 = vsel %vm3285, %v3282, %v3284
  %v3298 = vadd.f32 %v3130, %v3270
  %v3299 = vadd.f32 %v3131, %v3286
  %v3300 = vadd.f32 %v3132, %v3274
  %v3301 = vadd.f32 %v3133, %v3287
  %v3302 = vadd.f32 %v3134, %v3278
  %v3303 = vadd.f32 %v3135, %v3288
  %v3304 = vadd.f32 %v3136, %v3282
  %v3305 = vadd.f32 %v3137, %v3289
  %v3306 = vsub.f32 0.0, %v3298
  %v3307 = vsub.f32 0.0, %v3299
  %v3308 = vsub.f32 0.0, %v3300
  %v3309 = vsub.f32 0.0, %v3301
  %v3310 = vsub.f32 0.0, %v3302
  %v3311 = vsub.f32 0.0, %v3303
  %v3312 = vmul.f32 %v3306, 1.442695
  %v3313 = vpow.pop %v3312
  %v3314 = vmul.f32 %v3307, 1.442695
  %v3315 = vpow.pop %v3314
  %v3316 = vmul.f32 %v3308, 1.442695
  %v3317 = vpow.pop %v3316
  %v3318 = vmul.f32 %v3309, 1.442695
  %v3319 = vpow.pop %v3318
  %v3320 = vmul.f32 %v3310, 1.442695
  %v3321 = vpow.pop %v3320
  %v3322 = vmul.f32 %v3311, 1.442695
  %v3323 = vpow.pop %v3322
  %v3324 = vadd.f32 %v3313, 1.0
  %v3325 = vadd.f32 %v3315, 1.0
  %v3326 = vadd.f32 %v3317, 1.0
  %v3327 = vadd.f32 %v3319, 1.0
  %v3328 = vadd.f32 %v3321, 1.0
  %v3329 = vadd.f32 %v3323, 1.0
  %v3330 = vrcp.pop %v3324
  %v3331 = vrcp.pop %v3325
  %v3332 = vrcp.pop %v3326
  %v3333 = vrcp.pop %v3327
  %v3334 = vrcp.pop %v3328
  %v3335 = vrcp.pop %v3329
  %v3336 = vtanh.pop %v3304
  %v3337 = vtanh.pop %v3305
  %3340 = vrot.lane.b32.xlu0 %v2964, 2
  %v3341 = vpop.permute.xlu0 %3340
  %3342 = vrot.lane.b32.xlu0 %v2965, 2
  %v3343 = vpop.permute.xlu0 %3342
  %v3344 = vsel %vm2511, %v3341, %v3343
  %v3347 = vmul.f32 %v3332, %v3341
  %v3348 = vmul.f32 %v3333, %v3344
  %v3349 = vmul.f32 %v3330, %v3336
  %v3350 = vmul.f32 %v3331, %v3337
  %v3351 = vadd.f32 %v3347, %v3349
  %v3352 = vadd.f32 %v3348, %v3350
  %v3353 = vtanh.pop %v3351
  %v3354 = vtanh.pop %v3352
  %v3355 = vmul.f32 %v3334, %v3353
  %v3356 = vmul.f32 %v3335, %v3354
  %3357 = vrot.lane.b32.xlu0 %v2195, 6
  %v3358 = vpop.permute.xlu0 %3357
  %3359 = vrot.lane.b32.xlu0 %v2199, 6
  %v3360 = vpop.permute.xlu0 %3359
  %v3361 = vsel %vm3285, %v3358, %v3360
  %v3364 = vmul.f32 %v3355, %v3358
  %v3365 = vmul.f32 %v3356, %v3361
  %3368 = vrot.lane.b32.xlu0 %v3364, 19
  %v3369 = vpop.permute.xlu0 %3368
  %3370 = vrot.lane.b32.xlu0 %v3365, 19
  %v3371 = vpop.permute.xlu0 %3370
  %v3372 = vsel %vm2210, %v3369, %v3371
  %vm3375 = vcmask 1047752
  %3376 = vst.msk [vmem:[#allocation4 + $0x40] sm:$0xff] %vm3375, %v3369
  %3377 = vst.msk [vmem:[#allocation4 + $0x48] sm:$0xff] %vm3013, %v3372
  %v3378 = vld [vmem:[#allocation4 + $0x10] sm:$0xff]
  %v3379 = vld [vmem:[#allocation4 + $0x18] sm:$0xff]
  %v3380 = vld [vmem:[#allocation4 + $0x20] sm:$0xff]
  %v3381 = vld [vmem:[#allocation4 + $0x28] sm:$0xff]
  %v3382 = vld [vmem:[#allocation4 + $0x30] sm:$0xff]
  %v3383 = vld [vmem:[#allocation4 + $0x38] sm:$0xff]
  %v3384 = vld [vmem:[#allocation4 + $0x40] sm:$0xff]
  %v3385 = vld [vmem:[#allocation4 + $0x48] sm:$0xff]
  %3394 = vrot.lane.b32.xlu0 %v3378, 109
  %v3395 = vpop.permute.xlu0 %3394
  %3396 = vrot.lane.b32.xlu0 %v3379, 109
  %v3397 = vpop.permute.xlu0 %3396
  %3398 = vrot.lane.b32.xlu0 %v3380, 109
  %v3399 = vpop.permute.xlu0 %3398
  %3400 = vrot.lane.b32.xlu0 %v3381, 109
  %v3401 = vpop.permute.xlu0 %3400
  %3402 = vrot.lane.b32.xlu0 %v3382, 109
  %v3403 = vpop.permute.xlu0 %3402
  %3404 = vrot.lane.b32.xlu0 %v3383, 109
  %v3405 = vpop.permute.xlu0 %3404
  %3406 = vrot.lane.b32.xlu0 %v3384, 109
  %v3407 = vpop.permute.xlu0 %3406
  %3408 = vrot.lane.b32.xlu0 %v3385, 109
  %v3409 = vpop.permute.xlu0 %3408
  %v3410 = vsel %vm2280, %v3395, %v3397
  %v3411 = vsel %vm2280, %v3397, %v3399
  %v3412 = vsel %vm2280, %v3399, %v3401
  %v3413 = vsel %vm2280, %v3401, %v3403
  %v3414 = vsel %vm2280, %v3403, %v3405
  %v3415 = vsel %vm2280, %v3405, %v3407
  %v3416 = vsel %vm2280, %v3407, %v3409
  %3425 = vst [vmem:[#allocation6] sm:$0xff] %v3410
  %3426 = vst [vmem:[#allocation6 + $0x8] sm:$0xff] %v3411
  %3427 = vst [vmem:[#allocation6 + $0x10] sm:$0xff] %v3412
  %3428 = vst [vmem:[#allocation6 + $0x18] sm:$0xff] %v3413
  %3429 = vst [vmem:[#allocation6 + $0x20] sm:$0xff] %v3414
  %3430 = vst [vmem:[#allocation6 + $0x28] sm:$0xff] %v3415
  %3431 = vst [vmem:[#allocation6 + $0x30] sm:$0xff] %v3416
  %vm3432 = vcmask 572416
  %3433 = vst.msk [vmem:[#allocation6 + $0x38] sm:$0xff] %vm3432, %v3409
  %v3434 = vld [vmem:[#allocation4 + $0x10] sm:$0xff]
  %v3435 = vld [vmem:[#allocation4 + $0x18] sm:$0xff]
  %v3436 = vld [vmem:[#allocation4 + $0x20] sm:$0xff]
  %v3437 = vld [vmem:[#allocation4 + $0x28] sm:$0xff]
  %v3438 = vld [vmem:[#allocation4 + $0x30] sm:$0xff]
  %v3439 = vld [vmem:[#allocation4 + $0x38] sm:$0xff]
  %v3440 = vld [vmem:[#allocation4 + $0x40] sm:$0xff]
  %v3441 = vld [vmem:[#allocation4 + $0x48] sm:$0xff]
  %3450 = vrot.lane.b32.xlu0 %v3434, 108
  %v3451 = vpop.permute.xlu0 %3450
  %3452 = vrot.lane.b32.xlu0 %v3435, 108
  %v3453 = vpop.permute.xlu0 %3452
  %3454 = vrot.lane.b32.xlu0 %v3436, 108
  %v3455 = vpop.permute.xlu0 %3454
  %3456 = vrot.lane.b32.xlu0 %v3437, 108
  %v3457 = vpop.permute.xlu0 %3456
  %3458 = vrot.lane.b32.xlu0 %v3438, 108
  %v3459 = vpop.permute.xlu0 %3458
  %3460 = vrot.lane.b32.xlu0 %v3439, 108
  %v3461 = vpop.permute.xlu0 %3460
  %3462 = vrot.lane.b32.xlu0 %v3440, 108
  %v3463 = vpop.permute.xlu0 %3462
  %3464 = vrot.lane.b32.xlu0 %v3441, 108
  %v3465 = vpop.permute.xlu0 %3464
  %v3466 = vsel %vm2294, %v3451, %v3453
  %v3467 = vsel %vm2294, %v3453, %v3455
  %v3468 = vsel %vm2294, %v3455, %v3457
  %v3469 = vsel %vm2294, %v3457, %v3459
  %v3470 = vsel %vm2294, %v3459, %v3461
  %v3471 = vsel %vm2294, %v3461, %v3463
  %v3472 = vsel %vm2294, %v3463, %v3465
  %3481 = vst [vmem:[#allocation6 + $0x40] sm:$0xff] %v3466
  %3482 = vst [vmem:[#allocation6 + $0x48] sm:$0xff] %v3467
  %3483 = vst [vmem:[#allocation6 + $0x50] sm:$0xff] %v3468
  %3484 = vst [vmem:[#allocation6 + $0x58] sm:$0xff] %v3469
  %3485 = vst [vmem:[#allocation6 + $0x60] sm:$0xff] %v3470
  %3486 = vst [vmem:[#allocation6 + $0x68] sm:$0xff] %v3471
  %3487 = vst [vmem:[#allocation6 + $0x70] sm:$0xff] %v3472
  %3488 = vst.msk [vmem:[#allocation6 + $0x78] sm:$0xff] %vm3432, %v3465
  %v3489 = vld [vmem:[#allocation4 + $0x10] sm:$0xff]
  %v3490 = vld [vmem:[#allocation4 + $0x18] sm:$0xff]
  %v3491 = vld [vmem:[#allocation4 + $0x20] sm:$0xff]
  %v3492 = vld [vmem:[#allocation4 + $0x28] sm:$0xff]
  %v3493 = vld [vmem:[#allocation4 + $0x30] sm:$0xff]
  %v3494 = vld [vmem:[#allocation4 + $0x38] sm:$0xff]
  %v3495 = vld [vmem:[#allocation4 + $0x40] sm:$0xff]
  %v3496 = vld [vmem:[#allocation4 + $0x48] sm:$0xff]
  %3505 = vrot.lane.b32.xlu0 %v3489, 107
  %v3506 = vpop.permute.xlu0 %3505
  %3507 = vrot.lane.b32.xlu0 %v3490, 107
  %v3508 = vpop.permute.xlu0 %3507
  %3509 = vrot.lane.b32.xlu0 %v3491, 107
  %v3510 = vpop.permute.xlu0 %3509
  %3511 = vrot.lane.b32.xlu0 %v3492, 107
  %v3512 = vpop.permute.xlu0 %3511
  %3513 = vrot.lane.b32.xlu0 %v3493, 107
  %v3514 = vpop.permute.xlu0 %3513
  %3515 = vrot.lane.b32.xlu0 %v3494, 107
  %v3516 = vpop.permute.xlu0 %3515
  %3517 = vrot.lane.b32.xlu0 %v3495, 107
  %v3518 = vpop.permute.xlu0 %3517
  %3519 = vrot.lane.b32.xlu0 %v3496, 107
  %v3520 = vpop.permute.xlu0 %3519
  %v3521 = vsel %vm2667, %v3506, %v3508
  %v3522 = vsel %vm2667, %v3508, %v3510
  %v3523 = vsel %vm2667, %v3510, %v3512
  %v3524 = vsel %vm2667, %v3512, %v3514
  %v3525 = vsel %vm2667, %v3514, %v3516
  %v3526 = vsel %vm2667, %v3516, %v3518
  %v3527 = vsel %vm2667, %v3518, %v3520
  %3536 = vst [vmem:[#allocation6 + $0x80] sm:$0xff] %v3521
  %3537 = vst [vmem:[#allocation6 + $0x88] sm:$0xff] %v3522
  %3538 = vst [vmem:[#allocation6 + $0x90] sm:$0xff] %v3523
  %3539 = vst [vmem:[#allocation6 + $0x98] sm:$0xff] %v3524
  %3540 = vst [vmem:[#allocation6 + $0xa0] sm:$0xff] %v3525
  %3541 = vst [vmem:[#allocation6 + $0xa8] sm:$0xff] %v3526
  %3542 = vst [vmem:[#allocation6 + $0xb0] sm:$0xff] %v3527
  %3543 = vst.msk [vmem:[#allocation6 + $0xb8] sm:$0xff] %vm3432, %v3520
  %v3544 = vld [vmem:[#allocation4 + $0x10] sm:$0xff]
  %v3545 = vld [vmem:[#allocation4 + $0x18] sm:$0xff]
  %v3546 = vld [vmem:[#allocation4 + $0x20] sm:$0xff]
  %v3547 = vld [vmem:[#allocation4 + $0x28] sm:$0xff]
  %v3548 = vld [vmem:[#allocation4 + $0x30] sm:$0xff]
  %v3549 = vld [vmem:[#allocation4 + $0x38] sm:$0xff]
  %v3550 = vld [vmem:[#allocation4 + $0x40] sm:$0xff]
  %v3551 = vld [vmem:[#allocation4 + $0x48] sm:$0xff]
  %3560 = vrot.lane.b32.xlu0 %v3544, 93
  %v3561 = vpop.permute.xlu0 %3560
  %3562 = vrot.lane.b32.xlu0 %v3545, 93
  %v3563 = vpop.permute.xlu0 %3562
  %3564 = vrot.lane.b32.xlu0 %v3546, 93
  %v3565 = vpop.permute.xlu0 %3564
  %3566 = vrot.lane.b32.xlu0 %v3547, 93
  %v3567 = vpop.permute.xlu0 %3566
  %3568 = vrot.lane.b32.xlu0 %v3548, 93
  %v3569 = vpop.permute.xlu0 %3568
  %3570 = vrot.lane.b32.xlu0 %v3549, 93
  %v3571 = vpop.permute.xlu0 %3570
  %3572 = vrot.lane.b32.xlu0 %v3550, 93
  %v3573 = vpop.permute.xlu0 %3572
  %3574 = vrot.lane.b32.xlu0 %v3551, 93
  %v3575 = vpop.permute.xlu0 %3574
  %v3576 = vsel %vm2330, %v3561, %v3563
  %v3577 = vsel %vm2330, %v3563, %v3565
  %v3578 = vsel %vm2330, %v3565, %v3567
  %v3579 = vsel %vm2330, %v3567, %v3569
  %v3580 = vsel %vm2330, %v3569, %v3571
  %v3581 = vsel %vm2330, %v3571, %v3573
  %v3582 = vsel %vm2330, %v3573, %v3575
  %3591 = vst [vmem:[#allocation6 + $0xc0] sm:$0xff] %v3576
  %3592 = vst [vmem:[#allocation6 + $0xc8] sm:$0xff] %v3577
  %3593 = vst [vmem:[#allocation6 + $0xd0] sm:$0xff] %v3578
  %3594 = vst [vmem:[#allocation6 + $0xd8] sm:$0xff] %v3579
  %3595 = vst [vmem:[#allocation6 + $0xe0] sm:$0xff] %v3580
  %3596 = vst [vmem:[#allocation6 + $0xe8] sm:$0xff] %v3581
  %3597 = vst [vmem:[#allocation6 + $0xf0] sm:$0xff] %v3582
  %3598 = vst.msk [vmem:[#allocation6 + $0xf8] sm:$0xff] %vm3432, %v3575
  %v3599 = vld [vmem:[#allocation4 + $0x10] sm:$0xff]
  %v3600 = vld [vmem:[#allocation4 + $0x18] sm:$0xff]
  %v3601 = vld [vmem:[#allocation4 + $0x20] sm:$0xff]
  %v3602 = vld [vmem:[#allocation4 + $0x28] sm:$0xff]
  %v3603 = vld [vmem:[#allocation4 + $0x30] sm:$0xff]
  %v3604 = vld [vmem:[#allocation4 + $0x38] sm:$0xff]
  %v3605 = vld [vmem:[#allocation4 + $0x40] sm:$0xff]
  %v3606 = vld [vmem:[#allocation4 + $0x48] sm:$0xff]
  %3615 = vrot.lane.b32.xlu0 %v3599, 92
  %v3616 = vpop.permute.xlu0 %3615
  %3617 = vrot.lane.b32.xlu0 %v3600, 92
  %v3618 = vpop.permute.xlu0 %3617
  %3619 = vrot.lane.b32.xlu0 %v3601, 92
  %v3620 = vpop.permute.xlu0 %3619
  %3621 = vrot.lane.b32.xlu0 %v3602, 92
  %v3622 = vpop.permute.xlu0 %3621
  %3623 = vrot.lane.b32.xlu0 %v3603, 92
  %v3624 = vpop.permute.xlu0 %3623
  %3625 = vrot.lane.b32.xlu0 %v3604, 92
  %v3626 = vpop.permute.xlu0 %3625
  %3627 = vrot.lane.b32.xlu0 %v3605, 92
  %v3628 = vpop.permute.xlu0 %3627
  %3629 = vrot.lane.b32.xlu0 %v3606, 92
  %v3630 = vpop.permute.xlu0 %3629
  %v3631 = vsel %vm2349, %v3616, %v3618
  %v3632 = vsel %vm2349, %v3618, %v3620
  %v3633 = vsel %vm2349, %v3620, %v3622
  %v3634 = vsel %vm2349, %v3622, %v3624
  %v3635 = vsel %vm2349, %v3624, %v3626
  %v3636 = vsel %vm2349, %v3626, %v3628
  %v3637 = vsel %vm2349, %v3628, %v3630
  %3646 = vst [vmem:[#allocation6 + $0x100] sm:$0xff] %v3631
  %3647 = vst [vmem:[#allocation6 + $0x108] sm:$0xff] %v3632
  %3648 = vst [vmem:[#allocation6 + $0x110] sm:$0xff] %v3633
  %3649 = vst [vmem:[#allocation6 + $0x118] sm:$0xff] %v3634
  %3650 = vst [vmem:[#allocation6 + $0x120] sm:$0xff] %v3635
  %3651 = vst [vmem:[#allocation6 + $0x128] sm:$0xff] %v3636
  %3652 = vst [vmem:[#allocation6 + $0x130] sm:$0xff] %v3637
  %3653 = vst.msk [vmem:[#allocation6 + $0x138] sm:$0xff] %vm3432, %v3630
  %v3654 = vld [vmem:[#allocation4 + $0x10] sm:$0xff]
  %v3655 = vld [vmem:[#allocation4 + $0x18] sm:$0xff]
  %v3656 = vld [vmem:[#allocation4 + $0x20] sm:$0xff]
  %v3657 = vld [vmem:[#allocation4 + $0x28] sm:$0xff]
  %v3658 = vld [vmem:[#allocation4 + $0x30] sm:$0xff]
  %v3659 = vld [vmem:[#allocation4 + $0x38] sm:$0xff]
  %v3660 = vld [vmem:[#allocation4 + $0x40] sm:$0xff]
  %v3661 = vld [vmem:[#allocation4 + $0x48] sm:$0xff]
  %3670 = vrot.lane.b32.xlu0 %v3654, 91
  %v3671 = vpop.permute.xlu0 %3670
  %3672 = vrot.lane.b32.xlu0 %v3655, 91
  %v3673 = vpop.permute.xlu0 %3672
  %3674 = vrot.lane.b32.xlu0 %v3656, 91
  %v3675 = vpop.permute.xlu0 %3674
  %3676 = vrot.lane.b32.xlu0 %v3657, 91
  %v3677 = vpop.permute.xlu0 %3676
  %3678 = vrot.lane.b32.xlu0 %v3658, 91
  %v3679 = vpop.permute.xlu0 %3678
  %3680 = vrot.lane.b32.xlu0 %v3659, 91
  %v3681 = vpop.permute.xlu0 %3680
  %3682 = vrot.lane.b32.xlu0 %v3660, 91
  %v3683 = vpop.permute.xlu0 %3682
  %3684 = vrot.lane.b32.xlu0 %v3661, 91
  %v3685 = vpop.permute.xlu0 %3684
  %v3686 = vsel %vm2717, %v3671, %v3673
  %v3687 = vsel %vm2717, %v3673, %v3675
  %v3688 = vsel %vm2717, %v3675, %v3677
  %v3689 = vsel %vm2717, %v3677, %v3679
  %v3690 = vsel %vm2717, %v3679, %v3681
  %v3691 = vsel %vm2717, %v3681, %v3683
  %v3692 = vsel %vm2717, %v3683, %v3685
  %3701 = vst [vmem:[#allocation6 + $0x140] sm:$0xff] %v3686
  %3702 = vst [vmem:[#allocation6 + $0x148] sm:$0xff] %v3687
  %3703 = vst [vmem:[#allocation6 + $0x150] sm:$0xff] %v3688
  %3704 = vst [vmem:[#allocation6 + $0x158] sm:$0xff] %v3689
  %3705 = vst [vmem:[#allocation6 + $0x160] sm:$0xff] %v3690
  %3706 = vst [vmem:[#allocation6 + $0x168] sm:$0xff] %v3691
  %3707 = vst [vmem:[#allocation6 + $0x170] sm:$0xff] %v3692
  %3708 = vst.msk [vmem:[#allocation6 + $0x178] sm:$0xff] %vm3432, %v3685
  %v3709 = vld [vmem:[#allocation4 + $0x10] sm:$0xff]
  %v3710 = vld [vmem:[#allocation4 + $0x18] sm:$0xff]
  %v3711 = vld [vmem:[#allocation4 + $0x20] sm:$0xff]
  %v3712 = vld [vmem:[#allocation4 + $0x28] sm:$0xff]
  %v3713 = vld [vmem:[#allocation4 + $0x30] sm:$0xff]
  %v3714 = vld [vmem:[#allocation4 + $0x38] sm:$0xff]
  %v3715 = vld [vmem:[#allocation4 + $0x40] sm:$0xff]
  %v3716 = vld [vmem:[#allocation4 + $0x48] sm:$0xff]
  %3725 = vrot.lane.b32.xlu0 %v3709, 77
  %v3726 = vpop.permute.xlu0 %3725
  %3727 = vrot.lane.b32.xlu0 %v3710, 77
  %v3728 = vpop.permute.xlu0 %3727
  %3729 = vrot.lane.b32.xlu0 %v3711, 77
  %v3730 = vpop.permute.xlu0 %3729
  %3731 = vrot.lane.b32.xlu0 %v3712, 77
  %v3732 = vpop.permute.xlu0 %3731
  %3733 = vrot.lane.b32.xlu0 %v3713, 77
  %v3734 = vpop.permute.xlu0 %3733
  %3735 = vrot.lane.b32.xlu0 %v3714, 77
  %v3736 = vpop.permute.xlu0 %3735
  %3737 = vrot.lane.b32.xlu0 %v3715, 77
  %v3738 = vpop.permute.xlu0 %3737
  %3739 = vrot.lane.b32.xlu0 %v3716, 77
  %v3740 = vpop.permute.xlu0 %3739
  %vm3741 = vcmask 629760
  %v3742 = vsel %vm3741, %v3726, %v3728
  %v3743 = vsel %vm3741, %v3728, %v3730
  %v3744 = vsel %vm3741, %v3730, %v3732
  %v3745 = vsel %vm3741, %v3732, %v3734
  %v3746 = vsel %vm3741, %v3734, %v3736
  %v3747 = vsel %vm3741, %v3736, %v3738
  %v3748 = vsel %vm3741, %v3738, %v3740
  %3757 = vst [vmem:[#allocation6 + $0x180] sm:$0xff] %v3742
  %3758 = vst [vmem:[#allocation6 + $0x188] sm:$0xff] %v3743
  %3759 = vst [vmem:[#allocation6 + $0x190] sm:$0xff] %v3744
  %3760 = vst [vmem:[#allocation6 + $0x198] sm:$0xff] %v3745
  %3761 = vst [vmem:[#allocation6 + $0x1a0] sm:$0xff] %v3746
  %3762 = vst [vmem:[#allocation6 + $0x1a8] sm:$0xff] %v3747
  %3763 = vst [vmem:[#allocation6 + $0x1b0] sm:$0xff] %v3748
  %3764 = vst.msk [vmem:[#allocation6 + $0x1b8] sm:$0xff] %vm3432, %v3740
  %v3765 = vld [vmem:[#allocation4 + $0x10] sm:$0xff]
  %v3766 = vld [vmem:[#allocation4 + $0x18] sm:$0xff]
  %v3767 = vld [vmem:[#allocation4 + $0x20] sm:$0xff]
  %v3768 = vld [vmem:[#allocation4 + $0x28] sm:$0xff]
  %v3769 = vld [vmem:[#allocation4 + $0x30] sm:$0xff]
  %v3770 = vld [vmem:[#allocation4 + $0x38] sm:$0xff]
  %v3771 = vld [vmem:[#allocation4 + $0x40] sm:$0xff]
  %v3772 = vld [vmem:[#allocation4 + $0x48] sm:$0xff]
  %3781 = vrot.lane.b32.xlu0 %v3765, 76
  %v3782 = vpop.permute.xlu0 %3781
  %3783 = vrot.lane.b32.xlu0 %v3766, 76
  %v3784 = vpop.permute.xlu0 %3783
  %3785 = vrot.lane.b32.xlu0 %v3767, 76
  %v3786 = vpop.permute.xlu0 %3785
  %3787 = vrot.lane.b32.xlu0 %v3768, 76
  %v3788 = vpop.permute.xlu0 %3787
  %3789 = vrot.lane.b32.xlu0 %v3769, 76
  %v3790 = vpop.permute.xlu0 %3789
  %3791 = vrot.lane.b32.xlu0 %v3770, 76
  %v3792 = vpop.permute.xlu0 %3791
  %3793 = vrot.lane.b32.xlu0 %v3771, 76
  %v3794 = vpop.permute.xlu0 %3793
  %3795 = vrot.lane.b32.xlu0 %v3772, 76
  %v3796 = vpop.permute.xlu0 %3795
  %vm3797 = vcmask 621568
  %v3798 = vsel %vm3797, %v3782, %v3784
  %v3799 = vsel %vm3797, %v3784, %v3786
  %v3800 = vsel %vm3797, %v3786, %v3788
  %v3801 = vsel %vm3797, %v3788, %v3790
  %v3802 = vsel %vm3797, %v3790, %v3792
  %v3803 = vsel %vm3797, %v3792, %v3794
  %v3804 = vsel %vm3797, %v3794, %v3796
  %3813 = vst [vmem:[#allocation6 + $0x1c0] sm:$0xff] %v3798
  %3814 = vst [vmem:[#allocation6 + $0x1c8] sm:$0xff] %v3799
  %3815 = vst [vmem:[#allocation6 + $0x1d0] sm:$0xff] %v3800
  %3816 = vst [vmem:[#allocation6 + $0x1d8] sm:$0xff] %v3801
  %3817 = vst [vmem:[#allocation6 + $0x1e0] sm:$0xff] %v3802
  %3818 = vst [vmem:[#allocation6 + $0x1e8] sm:$0xff] %v3803
  %3819 = vst [vmem:[#allocation6 + $0x1f0] sm:$0xff] %v3804
  %3820 = vst.msk [vmem:[#allocation6 + $0x1f8] sm:$0xff] %vm3432, %v3796
  %v3821 = vld [vmem:[#allocation4 + $0x10] sm:$0xff]
  %v3822 = vld [vmem:[#allocation4 + $0x18] sm:$0xff]
  %v3823 = vld [vmem:[#allocation4 + $0x20] sm:$0xff]
  %v3824 = vld [vmem:[#allocation4 + $0x28] sm:$0xff]
  %v3825 = vld [vmem:[#allocation4 + $0x30] sm:$0xff]
  %v3826 = vld [vmem:[#allocation4 + $0x38] sm:$0xff]
  %v3827 = vld [vmem:[#allocation4 + $0x40] sm:$0xff]
  %v3828 = vld [vmem:[#allocation4 + $0x48] sm:$0xff]
  %3837 = vrot.lane.b32.xlu0 %v3821, 75
  %v3838 = vpop.permute.xlu0 %3837
  %3839 = vrot.lane.b32.xlu0 %v3822, 75
  %v3840 = vpop.permute.xlu0 %3839
  %3841 = vrot.lane.b32.xlu0 %v3823, 75
  %v3842 = vpop.permute.xlu0 %3841
  %3843 = vrot.lane.b32.xlu0 %v3824, 75
  %v3844 = vpop.permute.xlu0 %3843
  %3845 = vrot.lane.b32.xlu0 %v3825, 75
  %v3846 = vpop.permute.xlu0 %3845
  %3847 = vrot.lane.b32.xlu0 %v3826, 75
  %v3848 = vpop.permute.xlu0 %3847
  %3849 = vrot.lane.b32.xlu0 %v3827, 75
  %v3850 = vpop.permute.xlu0 %3849
  %3851 = vrot.lane.b32.xlu0 %v3828, 75
  %v3852 = vpop.permute.xlu0 %3851
  %vm3853 = vcmask 613376
  %v3854 = vsel %vm3853, %v3838, %v3840
  %v3855 = vsel %vm3853, %v3840, %v3842
  %v3856 = vsel %vm3853, %v3842, %v3844
  %v3857 = vsel %vm3853, %v3844, %v3846
  %v3858 = vsel %vm3853, %v3846, %v3848
  %v3859 = vsel %vm3853, %v3848, %v3850
  %v3860 = vsel %vm3853, %v3850, %v3852
  %3869 = vst [vmem:[#allocation6 + $0x200] sm:$0xff] %v3854
  %3870 = vst [vmem:[#allocation6 + $0x208] sm:$0xff] %v3855
  %3871 = vst [vmem:[#allocation6 + $0x210] sm:$0xff] %v3856
  %3872 = vst [vmem:[#allocation6 + $0x218] sm:$0xff] %v3857
  %3873 = vst [vmem:[#allocation6 + $0x220] sm:$0xff] %v3858
  %3874 = vst [vmem:[#allocation6 + $0x228] sm:$0xff] %v3859
  %3875 = vst [vmem:[#allocation6 + $0x230] sm:$0xff] %v3860
  %3876 = vst.msk [vmem:[#allocation6 + $0x238] sm:$0xff] %vm3432, %v3852
  %v3877 = vld [vmem:[%s9] sm:$0x1]
  %v3878 = vld [vmem:[#allocation6] sm:$0xff]
  %v3879 = vld [vmem:[#allocation6 + $0x8] sm:$0xff]
  %v3880 = vld [vmem:[#allocation6 + $0x10] sm:$0xff]
  %v3881 = vld [vmem:[#allocation6 + $0x18] sm:$0xff]
  %v3882 = vld [vmem:[#allocation6 + $0x20] sm:$0xff]
  %v3883 = vld [vmem:[#allocation6 + $0x28] sm:$0xff]
  %v3884 = vld [vmem:[#allocation6 + $0x30] sm:$0xff]
  %v3885 = vld [vmem:[#allocation6 + $0x38] sm:$0xff]
  %v3886 = vld [vmem:[#allocation6 + $0x40] sm:$0xff]
  %v3887 = vld [vmem:[#allocation6 + $0x48] sm:$0xff]
  %v3888 = vld [vmem:[#allocation6 + $0x50] sm:$0xff]
  %v3889 = vld [vmem:[#allocation6 + $0x58] sm:$0xff]
  %v3890 = vld [vmem:[#allocation6 + $0x60] sm:$0xff]
  %v3891 = vld [vmem:[#allocation6 + $0x68] sm:$0xff]
  %v3892 = vld [vmem:[#allocation6 + $0x70] sm:$0xff]
  %v3893 = vld [vmem:[#allocation6 + $0x78] sm:$0xff]
  %v3894 = vld [vmem:[#allocation6 + $0x80] sm:$0xff]
  %v3895 = vld [vmem:[#allocation6 + $0x88] sm:$0xff]
  %v3896 = vld [vmem:[#allocation6 + $0x90] sm:$0xff]
  %v3897 = vld [vmem:[#allocation6 + $0x98] sm:$0xff]
  %v3898 = vld [vmem:[#allocation6 + $0xa0] sm:$0xff]
  %v3899 = vld [vmem:[#allocation6 + $0xa8] sm:$0xff]
  %v3900 = vld [vmem:[#allocation6 + $0xb0] sm:$0xff]
  %v3901 = vld [vmem:[#allocation6 + $0xb8] sm:$0xff]
  %v3902 = vld [vmem:[#allocation6 + $0xc0] sm:$0xff]
  %v3903 = vld [vmem:[#allocation6 + $0xc8] sm:$0xff]
  %v3904 = vld [vmem:[#allocation6 + $0xd0] sm:$0xff]
  %v3905 = vld [vmem:[#allocation6 + $0xd8] sm:$0xff]
  %v3906 = vld [vmem:[#allocation6 + $0xe0] sm:$0xff]
  %v3907 = vld [vmem:[#allocation6 + $0xe8] sm:$0xff]
  %v3908 = vld [vmem:[#allocation6 + $0xf0] sm:$0xff]
  %v3909 = vld [vmem:[#allocation6 + $0xf8] sm:$0xff]
  %v3910 = vld [vmem:[#allocation6 + $0x100] sm:$0xff]
  %v3911 = vld [vmem:[#allocation6 + $0x108] sm:$0xff]
  %v3912 = vld [vmem:[#allocation6 + $0x110] sm:$0xff]
  %v3913 = vld [vmem:[#allocation6 + $0x118] sm:$0xff]
  %v3914 = vld [vmem:[#allocation6 + $0x120] sm:$0xff]
  %v3915 = vld [vmem:[#allocation6 + $0x128] sm:$0xff]
  %v3916 = vld [vmem:[#allocation6 + $0x130] sm:$0xff]
  %v3917 = vld [vmem:[#allocation6 + $0x138] sm:$0xff]
  %v3918 = vld [vmem:[#allocation6 + $0x140] sm:$0xff]
  %v3919 = vld [vmem:[#allocation6 + $0x148] sm:$0xff]
  %v3920 = vld [vmem:[#allocation6 + $0x150] sm:$0xff]
  %v3921 = vld [vmem:[#allocation6 + $0x158] sm:$0xff]
  %v3922 = vld [vmem:[#allocation6 + $0x160] sm:$0xff]
  %v3923 = vld [vmem:[#allocation6 + $0x168] sm:$0xff]
  %v3924 = vld [vmem:[#allocation6 + $0x170] sm:$0xff]
  %v3925 = vld [vmem:[#allocation6 + $0x178] sm:$0xff]
  %v3926 = vld [vmem:[#allocation6 + $0x180] sm:$0xff]
  %v3927 = vld [vmem:[#allocation6 + $0x188] sm:$0xff]
  %v3928 = vld [vmem:[#allocation6 + $0x190] sm:$0xff]
  %v3929 = vld [vmem:[#allocation6 + $0x198] sm:$0xff]
  %v3930 = vld [vmem:[#allocation6 + $0x1a0] sm:$0xff]
  %v3931 = vld [vmem:[#allocation6 + $0x1a8] sm:$0xff]
  %v3932 = vld [vmem:[#allocation6 + $0x1b0] sm:$0xff]
  %v3933 = vld [vmem:[#allocation6 + $0x1b8] sm:$0xff]
  %v3934 = vld [vmem:[#allocation6 + $0x1c0] sm:$0xff]
  %v3935 = vld [vmem:[#allocation6 + $0x1c8] sm:$0xff]
  %v3936 = vld [vmem:[#allocation6 + $0x1d0] sm:$0xff]
  %v3937 = vld [vmem:[#allocation6 + $0x1d8] sm:$0xff]
  %v3938 = vld [vmem:[#allocation6 + $0x1e0] sm:$0xff]
  %v3939 = vld [vmem:[#allocation6 + $0x1e8] sm:$0xff]
  %v3940 = vld [vmem:[#allocation6 + $0x1f0] sm:$0xff]
  %v3941 = vld [vmem:[#allocation6 + $0x1f8] sm:$0xff]
  %v3942 = vld [vmem:[#allocation6 + $0x200] sm:$0xff]
  %v3943 = vld [vmem:[#allocation6 + $0x208] sm:$0xff]
  %v3944 = vld [vmem:[#allocation6 + $0x210] sm:$0xff]
  %v3945 = vld [vmem:[#allocation6 + $0x218] sm:$0xff]
  %v3946 = vld [vmem:[#allocation6 + $0x220] sm:$0xff]
  %v3947 = vld [vmem:[#allocation6 + $0x228] sm:$0xff]
  %v3948 = vld [vmem:[#allocation6 + $0x230] sm:$0xff]
  %v3949 = vld [vmem:[#allocation6 + $0x238] sm:$0xff]
  %v3950 = vld [vmem:[#allocation7] sm:$0x1]
  %3952 = vset.pattern.permute.xlu0 0
  %3953 = vperm.xlu0 %3952, %v3950
  %v3954 = vpop.permute.xlu0 %3953
  %v3956 = vlaneseq
  %v3957 = vshrl.u32 %v3956, 7
  %v3958 = vsub.s32 0, %v3957
  %v3959 = vrot.slane %v3954, %v3958
  %v3961 = vsel %vm1478, %v3877, 0
  %3963 = vmatprep.subr.mxu0 %v3879
  %3964 = vmatpush1.msra.mxu0 %v3878
  %3965 = vmatprep.subr.mxu0 %v3887
  %3966 = vmatpush1.msra.mxu0 %v3886
  %3967 = vmatprep.subr.mxu0 %v3895
  %3968 = vmatpush1.msra.mxu0 %v3894
  %3969 = vmatprep.subr.mxu0 %v3903
  %3970 = vmatpush1.msra.mxu0 %v3902
  %3971 = vmatprep.subr.mxu0 %v3911
  %3972 = vmatpush1.msra.mxu0 %v3910
  %3973 = vmatprep.subr.mxu0 %v3919
  %3974 = vmatpush1.msra.mxu0 %v3918
  %3975 = vmatprep.subr.mxu0 %v3927
  %3976 = vmatpush1.msra.mxu0 %v3926
  %3977 = vmatprep.subr.mxu0 %v3935
  %3978 = vmatpush1.msra.mxu0 %v3934
  %3979 = vmatprep.subr.mxu0 %v3943
  %3980 = vmatpush1.msra.mxu0 %v3942
  %3981 = vmatprep.subr.mxu0 0.0
  %3982 = vmatpush1.msra.mxu0 0.0
  %3983 = vmatprep.subr.mxu0 0.0
  %3984 = vmatpush1.msra.mxu0 0.0
  %3985 = vmatprep.subr.mxu0 0.0
  %3986 = vmatpush1.msra.mxu0 0.0
  %3987 = vmatprep.subr.mxu0 0.0
  %3988 = vmatpush1.msra.mxu0 0.0
  %3989 = vmatprep.subr.mxu0 0.0
  %3990 = vmatpush1.msra.mxu0 0.0
  %3991 = vmatprep.subr.mxu0 0.0
  %3992 = vmatpush1.msra.mxu0 0.0
  %3993 = vmatprep.subr.mxu0 0.0
  %3994 = vmatpush1.msra.mxu0 0.0
  %3995 = vmatprep.subr.mxu0 0.0
  %3996 = vmatpush1.msra.mxu0 0.0
  %3997 = vmatprep.subr.mxu0 0.0
  %3998 = vmatpush1.msra.mxu0 0.0
  %3999 = vmatprep.subr.mxu0 0.0
  %4000 = vmatpush1.msra.mxu0 0.0
  %4001 = vmatprep.subr.mxu0 0.0
  %4002 = vmatpush1.msra.mxu0 0.0
  %4003 = vmatprep.subr.mxu0 0.0
  %4004 = vmatpush1.msra.mxu0 0.0
  %4005 = vmatprep.subr.mxu0 0.0
  %4006 = vmatpush1.msra.mxu0 0.0
  %4007 = vmatprep.subr.mxu0 0.0
  %4008 = vmatpush1.msra.mxu0 0.0
  %4009 = vmatprep.subr.mxu0 0.0
  %4010 = vmatpush1.msra.mxu0 0.0
  %4011 = vmatprep.subr.mxu0 0.0
  %4012 = vmatpush1.msra.mxu0 0.0
  %4013 = vmatprep.subr.mxu0 0.0
  %4014 = vmatpush1.msra.mxu0 0.0
  %4015 = vmatprep.subr.mxu0 0.0
  %4016 = vmatpush1.msra.mxu0 0.0
  %4017 = vmatprep.subr.mxu0 0.0
  %4018 = vmatpush1.msra.mxu0 0.0
  %4019 = vmatprep.subr.mxu0 0.0
  %4020 = vmatpush1.msra.mxu0 0.0
  %4021 = vmatprep.subr.mxu0 0.0
  %4022 = vmatpush1.msra.mxu0 0.0
  %4023 = vmatprep.subr.mxu0 0.0
  %4024 = vmatpush1.msra.mxu0 0.0
  %4025 = vmatprep.subr.mxu0 0.0
  %4026 = vmatpush1.msra.mxu0 0.0
  %4027 = vmatprep.mubr.f32.mxu0 0.0
  %4028 = vmatmul.mubr.f32.gmra.mrb[0].mxu0 %v3961
  %v4029 = vpop.f32.mrb[0].mxu0
  %v4030 = vadd.f32 %v3959, %v4029
  %v4031 = vpop.f32.mrb[0].mxu0
  %v4032 = vadd.f32 %v3959, %v4031
  %4033 = vdwg.mxu0
  %4034 = vmatprep.subr.mxu0 %v3881
  %4035 = vmatpush1.msra.mxu0 %v3880
  %4036 = vmatprep.subr.mxu0 %v3889
  %4037 = vmatpush1.msra.mxu0 %v3888
  %4038 = vmatprep.subr.mxu0 %v3897
  %4039 = vmatpush1.msra.mxu0 %v3896
  %4040 = vmatprep.subr.mxu0 %v3905
  %4041 = vmatpush1.msra.mxu0 %v3904
  %4042 = vmatprep.subr.mxu0 %v3913
  %4043 = vmatpush1.msra.mxu0 %v3912
  %4044 = vmatprep.subr.mxu0 %v3921
  %4045 = vmatpush1.msra.mxu0 %v3920
  %4046 = vmatprep.subr.mxu0 %v3929
  %4047 = vmatpush1.msra.mxu0 %v3928
  %4048 = vmatprep.subr.mxu0 %v3937
  %4049 = vmatpush1.msra.mxu0 %v3936
  %4050 = vmatprep.subr.mxu0 %v3945
  %4051 = vmatpush1.msra.mxu0 %v3944
  %4052 = vmatprep.subr.mxu0 0.0
  %4053 = vmatpush1.msra.mxu0 0.0
  %4054 = vmatprep.subr.mxu0 0.0
  %4055 = vmatpush1.msra.mxu0 0.0
  %4056 = vmatprep.subr.mxu0 0.0
  %4057 = vmatpush1.msra.mxu0 0.0
  %4058 = vmatprep.subr.mxu0 0.0
  %4059 = vmatpush1.msra.mxu0 0.0
  %4060 = vmatprep.subr.mxu0 0.0
  %4061 = vmatpush1.msra.mxu0 0.0
  %4062 = vmatprep.subr.mxu0 0.0
  %4063 = vmatpush1.msra.mxu0 0.0
  %4064 = vmatprep.subr.mxu0 0.0
  %4065 = vmatpush1.msra.mxu0 0.0
  %4066 = vmatprep.subr.mxu0 0.0
  %4067 = vmatpush1.msra.mxu0 0.0
  %4068 = vmatprep.subr.mxu0 0.0
  %4069 = vmatpush1.msra.mxu0 0.0
  %4070 = vmatprep.subr.mxu0 0.0
  %4071 = vmatpush1.msra.mxu0 0.0
  %4072 = vmatprep.subr.mxu0 0.0
  %4073 = vmatpush1.msra.mxu0 0.0
  %4074 = vmatprep.subr.mxu0 0.0
  %4075 = vmatpush1.msra.mxu0 0.0
  %4076 = vmatprep.subr.mxu0 0.0
  %4077 = vmatpush1.msra.mxu0 0.0
  %4078 = vmatprep.subr.mxu0 0.0
  %4079 = vmatpush1.msra.mxu0 0.0
  %4080 = vmatprep.subr.mxu0 0.0
  %4081 = vmatpush1.msra.mxu0 0.0
  %4082 = vmatprep.subr.mxu0 0.0
  %4083 = vmatpush1.msra.mxu0 0.0
  %4084 = vmatprep.subr.mxu0 0.0
  %4085 = vmatpush1.msra.mxu0 0.0
  %4086 = vmatprep.subr.mxu0 0.0
  %4087 = vmatpush1.msra.mxu0 0.0
  %4088 = vmatprep.subr.mxu0 0.0
  %4089 = vmatpush1.msra.mxu0 0.0
  %4090 = vmatprep.subr.mxu0 0.0
  %4091 = vmatpush1.msra.mxu0 0.0
  %4092 = vmatprep.subr.mxu0 0.0
  %4093 = vmatpush1.msra.mxu0 0.0
  %4094 = vmatprep.subr.mxu0 0.0
  %4095 = vmatpush1.msra.mxu0 0.0
  %4096 = vmatprep.subr.mxu0 0.0
  %4097 = vmatpush1.msra.mxu0 0.0
  %4098 = vmatprep.mubr.f32.mxu0 0.0
  %4099 = vmatmul.mubr.f32.gmra.mrb[0].mxu0 %v3961
  %v4100 = vpop.f32.mrb[0].mxu0
  %v4101 = vadd.f32 %v3959, %v4100
  %v4102 = vpop.f32.mrb[0].mxu0
  %v4103 = vadd.f32 %v3959, %v4102
  %4104 = vdwg.mxu0
  %4105 = vmatprep.subr.mxu0 %v3883
  %4106 = vmatpush1.msra.mxu0 %v3882
  %4107 = vmatprep.subr.mxu0 %v3891
  %4108 = vmatpush1.msra.mxu0 %v3890
  %4109 = vmatprep.subr.mxu0 %v3899
  %4110 = vmatpush1.msra.mxu0 %v3898
  %4111 = vmatprep.subr.mxu0 %v3907
  %4112 = vmatpush1.msra.mxu0 %v3906
  %4113 = vmatprep.subr.mxu0 %v3915
  %4114 = vmatpush1.msra.mxu0 %v3914
  %4115 = vmatprep.subr.mxu0 %v3923
  %4116 = vmatpush1.msra.mxu0 %v3922
  %4117 = vmatprep.subr.mxu0 %v3931
  %4118 = vmatpush1.msra.mxu0 %v3930
  %4119 = vmatprep.subr.mxu0 %v3939
  %4120 = vmatpush1.msra.mxu0 %v3938
  %4121 = vmatprep.subr.mxu0 %v3947
  %4122 = vmatpush1.msra.mxu0 %v3946
  %4123 = vmatprep.subr.mxu0 0.0
  %4124 = vmatpush1.msra.mxu0 0.0
  %4125 = vmatprep.subr.mxu0 0.0
  %4126 = vmatpush1.msra.mxu0 0.0
  %4127 = vmatprep.subr.mxu0 0.0
  %4128 = vmatpush1.msra.mxu0 0.0
  %4129 = vmatprep.subr.mxu0 0.0
  %4130 = vmatpush1.msra.mxu0 0.0
  %4131 = vmatprep.subr.mxu0 0.0
  %4132 = vmatpush1.msra.mxu0 0.0
  %4133 = vmatprep.subr.mxu0 0.0
  %4134 = vmatpush1.msra.mxu0 0.0
  %4135 = vmatprep.subr.mxu0 0.0
  %4136 = vmatpush1.msra.mxu0 0.0
  %4137 = vmatprep.subr.mxu0 0.0
  %4138 = vmatpush1.msra.mxu0 0.0
  %4139 = vmatprep.subr.mxu0 0.0
  %4140 = vmatpush1.msra.mxu0 0.0
  %4141 = vmatprep.subr.mxu0 0.0
  %4142 = vmatpush1.msra.mxu0 0.0
  %4143 = vmatprep.subr.mxu0 0.0
  %4144 = vmatpush1.msra.mxu0 0.0
  %4145 = vmatprep.subr.mxu0 0.0
  %4146 = vmatpush1.msra.mxu0 0.0
  %4147 = vmatprep.subr.mxu0 0.0
  %4148 = vmatpush1.msra.mxu0 0.0
  %4149 = vmatprep.subr.mxu0 0.0
  %4150 = vmatpush1.msra.mxu0 0.0
  %4151 = vmatprep.subr.mxu0 0.0
  %4152 = vmatpush1.msra.mxu0 0.0
  %4153 = vmatprep.subr.mxu0 0.0
  %4154 = vmatpush1.msra.mxu0 0.0
  %4155 = vmatprep.subr.mxu0 0.0
  %4156 = vmatpush1.msra.mxu0 0.0
  %4157 = vmatprep.subr.mxu0 0.0
  %4158 = vmatpush1.msra.mxu0 0.0
  %4159 = vmatprep.subr.mxu0 0.0
  %4160 = vmatpush1.msra.mxu0 0.0
  %4161 = vmatprep.subr.mxu0 0.0
  %4162 = vmatpush1.msra.mxu0 0.0
  %4163 = vmatprep.subr.mxu0 0.0
  %4164 = vmatpush1.msra.mxu0 0.0
  %4165 = vmatprep.subr.mxu0 0.0
  %4166 = vmatpush1.msra.mxu0 0.0
  %4167 = vmatprep.subr.mxu0 0.0
  %4168 = vmatpush1.msra.mxu0 0.0
  %4169 = vmatprep.mubr.f32.mxu0 0.0
  %4170 = vmatmul.mubr.f32.gmra.mrb[0].mxu0 %v3961
  %v4171 = vpop.f32.mrb[0].mxu0
  %v4172 = vadd.f32 %v3959, %v4171
  %v4173 = vpop.f32.mrb[0].mxu0
  %v4174 = vadd.f32 %v3959, %v4173
  %4175 = vdwg.mxu0
  %4176 = vmatprep.subr.mxu0 %v3885
  %4177 = vmatpush1.msra.mxu0 %v3884
  %4178 = vmatprep.subr.mxu0 %v3893
  %4179 = vmatpush1.msra.mxu0 %v3892
  %4180 = vmatprep.subr.mxu0 %v3901
  %4181 = vmatpush1.msra.mxu0 %v3900
  %4182 = vmatprep.subr.mxu0 %v3909
  %4183 = vmatpush1.msra.mxu0 %v3908
  %4184 = vmatprep.subr.mxu0 %v3917
  %4185 = vmatpush1.msra.mxu0 %v3916
  %4186 = vmatprep.subr.mxu0 %v3925
  %4187 = vmatpush1.msra.mxu0 %v3924
  %4188 = vmatprep.subr.mxu0 %v3933
  %4189 = vmatpush1.msra.mxu0 %v3932
  %4190 = vmatprep.subr.mxu0 %v3941
  %4191 = vmatpush1.msra.mxu0 %v3940
  %4192 = vmatprep.subr.mxu0 %v3949
  %4193 = vmatpush1.msra.mxu0 %v3948
  %4194 = vmatprep.subr.mxu0 0.0
  %4195 = vmatpush1.msra.mxu0 0.0
  %4196 = vmatprep.subr.mxu0 0.0
  %4197 = vmatpush1.msra.mxu0 0.0
  %4198 = vmatprep.subr.mxu0 0.0
  %4199 = vmatpush1.msra.mxu0 0.0
  %4200 = vmatprep.subr.mxu0 0.0
  %4201 = vmatpush1.msra.mxu0 0.0
  %4202 = vmatprep.subr.mxu0 0.0
  %4203 = vmatpush1.msra.mxu0 0.0
  %4204 = vmatprep.subr.mxu0 0.0
  %4205 = vmatpush1.msra.mxu0 0.0
  %4206 = vmatprep.subr.mxu0 0.0
  %4207 = vmatpush1.msra.mxu0 0.0
  %4208 = vmatprep.subr.mxu0 0.0
  %4209 = vmatpush1.msra.mxu0 0.0
  %4210 = vmatprep.subr.mxu0 0.0
  %4211 = vmatpush1.msra.mxu0 0.0
  %4212 = vmatprep.subr.mxu0 0.0
  %4213 = vmatpush1.msra.mxu0 0.0
  %4214 = vmatprep.subr.mxu0 0.0
  %4215 = vmatpush1.msra.mxu0 0.0
  %4216 = vmatprep.subr.mxu0 0.0
  %4217 = vmatpush1.msra.mxu0 0.0
  %4218 = vmatprep.subr.mxu0 0.0
  %4219 = vmatpush1.msra.mxu0 0.0
  %4220 = vmatprep.subr.mxu0 0.0
  %4221 = vmatpush1.msra.mxu0 0.0
  %4222 = vmatprep.subr.mxu0 0.0
  %4223 = vmatpush1.msra.mxu0 0.0
  %4224 = vmatprep.subr.mxu0 0.0
  %4225 = vmatpush1.msra.mxu0 0.0
  %4226 = vmatprep.subr.mxu0 0.0
  %4227 = vmatpush1.msra.mxu0 0.0
  %4228 = vmatprep.subr.mxu0 0.0
  %4229 = vmatpush1.msra.mxu0 0.0
  %4230 = vmatprep.subr.mxu0 0.0
  %4231 = vmatpush1.msra.mxu0 0.0
  %4232 = vmatprep.subr.mxu0 0.0
  %4233 = vmatpush1.msra.mxu0 0.0
  %4234 = vmatprep.subr.mxu0 0.0
  %4235 = vmatpush1.msra.mxu0 0.0
  %4236 = vmatprep.subr.mxu0 0.0
  %4237 = vmatpush1.msra.mxu0 0.0
  %4238 = vmatprep.subr.mxu0 0.0
  %4239 = vmatpush1.msra.mxu0 0.0
  %4240 = vmatprep.mubr.f32.mxu0 0.0
  %4241 = vmatmul.mubr.f32.gmra.mrb[0].mxu0 %v3961
  %v4242 = vpop.f32.mrb[0].mxu0
  %v4243 = vadd.f32 %v3959, %v4242
  %v4244 = vpop.f32.mrb[0].mxu0
  %v4245 = vadd.f32 %v3959, %v4244
  %4246 = vdwg.mxu0
  %v4255 = vcombine.low %v4030, %v4032
  %v4256 = vcombine.low %v4101, %v4103
  %v4257 = vcombine.low %v4172, %v4174
  %v4258 = vcombine.low %v4243, %v4245
  %v4260 = vunpack.c.l.s4 1966171168
  %v4261 = vunpack.c.0.s8 %v4260
  %v4262 = vlaneseq
  %v4263 = vshrl.u32 %v4262, 7
  %v4264 = vsub.s32 %v4261, %v4263
  %v4265 = vrot.slane %v4255, %v4264
  %v4267 = vunpack.c.l.s4 1966171168
  %v4268 = vunpack.c.0.s8 %v4267
  %v4269 = vlaneseq
  %v4270 = vshrl.u32 %v4269, 7
  %v4271 = vsub.s32 %v4268, %v4270
  %v4272 = vrot.slane %v4256, %v4271
  %v4274 = vunpack.c.l.s4 1966171168
  %v4275 = vunpack.c.0.s8 %v4274
  %v4276 = vlaneseq
  %v4277 = vshrl.u32 %v4276, 7
  %v4278 = vsub.s32 %v4275, %v4277
  %v4279 = vrot.slane %v4257, %v4278
  %v4281 = vunpack.c.l.s4 1966171168
  %v4282 = vunpack.c.0.s8 %v4281
  %v4283 = vlaneseq
  %v4284 = vshrl.u32 %v4283, 7
  %v4285 = vsub.s32 %v4282, %v4284
  %v4286 = vrot.slane %v4258, %v4285
  %v4287 = vcombine.low %v4265, %v4272
  %v4288 = vcombine.low %v4279, %v4286
  %v4290 = vunpack.c.l.s4 1966171168
  %v4291 = vunpack.c.0.s8 %v4290
  %v4292 = vlaneseq
  %v4293 = vshrl.u32 %v4292, 7
  %v4294 = vsub.s32 %v4291, %v4293
  %v4295 = vrot.slane %v4287, %v4294
  %v4297 = vunpack.c.l.s4 1966171168
  %v4298 = vunpack.c.0.s8 %v4297
  %v4299 = vlaneseq
  %v4300 = vshrl.u32 %v4299, 7
  %v4301 = vsub.s32 %v4298, %v4300
  %v4302 = vrot.slane %v4288, %v4301
  %v4303 = vcombine.low %v4295, %v4302
  %v4305 = vlaneseq
  %vm4306 = vcmp.ge.s32.totalorder %v4305, 0
  %vm4307 = vcmp.lt.s32.totalorder %v4305, 966
  %vm4308 = vmand %vm4306, %vm4307
  %4309 = vst.msk [vmem:[%s12] sm:$0xff] %vm4308, %v4303
  // Predicated region
  $region50: #{convlstm_discriminator3_forward.1} parent=0 // pred_check
    _
  $region51: #{convlstm_discriminator3_forward.1} parent=0 // pred_check_branch
    %4311 = sbr.rel (0) target = $region53
  $region52: #{convlstm_discriminator3_forward.1} parent=0 // pred_region
    _
  $region53: #{convlstm_discriminator3_forward.1} parent=0 // pred_fallthru
    _
  // Predicated region
  $region54: #{convlstm_discriminator3_forward.1} parent=0 // pred_check
    _
  $region55: #{convlstm_discriminator3_forward.1} parent=0 // pred_check_branch
    %4313 = sbr.rel (0) target = $region57
  $region56: #{convlstm_discriminator3_forward.1} parent=0 // pred_region
    _
  $region57: #{convlstm_discriminator3_forward.1} parent=0 // pred_fallthru
    _

</llo_original>
